<compile_context>
chip_gen: v7x
topology: tpu7x:2x2x1
jax: 0.10.0
libtpu: 0.0.40
codegen_flags: <defaults>
</compile_context>

<pallas_src>
import functools

import numpy as np
import jax
import jax.numpy as jnp
from jax.experimental import pallas as pl
from jax.experimental.pallas import tpu as pltpu

D_FFN = 1024          # fixed inside FFN in the reference module
LN_EPS = 1e-5         # torch.nn.LayerNorm default


def _round_up(x, m):
    return (x + m - 1) // m * m


def _pad_to(x, shape):
    pads = [(0, s - d) for s, d in zip(shape, x.shape)]
    if any(p[1] for p in pads):
        return jnp.pad(x, pads)
    return x


def _tpu_generation_info():
    """Best-effort query: (per-core VMEM bytes, TensorCores per chip)."""
    vmem_cap = 64 << 20          # conservative default (v7x has 64 MiB / core)
    num_tc = 1
    try:
        info = pltpu.get_tpu_info()
        for attr in ("vmem_capacity_bytes", "vmem_bytes", "vmem_size_bytes"):
            v = getattr(info, attr, None)
            if v:
                vmem_cap = int(v)
                break
    except Exception:
        pass
    try:
        kind = jax.devices()[0].device_kind.lower()
        if ("v4" in kind) or ("v5p" in kind) or ("v7" in kind):
            num_tc = 2           # megacore / dual-TC chips
    except Exception:
        pass
    return vmem_cap, num_tc


def _siamese_attn_kernel(
    d_real,                                                 # static: real d_model
    q_ref, k_ref, v_ref,                                    # (BB,Lqp,DP) f32, (BB,KC,DP) bf16 x2
    wq_ref, wk_ref, wv_ref, kx_ref, sbias_ref,              # projections, dummy-key slab, score bias
    w1_ref, b1_ref, w2_ref, b2_ref,                         # fusion MLP 1/2
    w3a_ref, w3b_ref, w3c_ref, b3_ref,                      # fusion linear3 (pre-split)
    fw1_ref, fb1_ref, fw2_ref, fb2_ref,                     # FFN
    gamma_ref, beta_ref, dmask_ref,                         # LayerNorm affine + real-D lane mask
    out_ref, attn_ref):                                     # outputs
    BB, Lqp, DP = q_ref.shape
    KC = k_ref.shape[1]
    KP = attn_ref.shape[2]
    f32 = jnp.float32
    bf16 = jnp.bfloat16

    q_in = q_ref[...]                                       # (BB, Lqp, DP) f32
    residual = q_in.reshape(BB * Lqp, DP)                   # exact f32 residual

    qb = residual.astype(bf16)
    kb = k_ref[...].reshape(BB * KC, DP)                    # already bf16
    vb = v_ref[...].reshape(BB * KC, DP)

    # Siamese Q/K/V projections (no bias).  1/sqrt(D) is already folded into wq.
    q_p = jnp.dot(qb, wq_ref[...], preferred_element_type=f32)      # (BB*Lqp, DP)
    k_p = jnp.dot(kb, wk_ref[...], preferred_element_type=f32)      # (BB*KC, DP)
    v_p = jnp.dot(vb, wv_ref[...], preferred_element_type=f32)      # (BB*KC, DP)

    # Inject the (un-projected) dummy key at row Lk; padded key rows stay exactly zero.
    k_p3 = k_p.reshape(BB, KC, DP) + kx_ref[...]                     # (BB, KC, DP)
    v_p3 = v_p.reshape(BB, KC, DP)
    q_p3 = q_p.reshape(BB, Lqp, DP)

    # Scaled dot-product attention, contracting on D (no explicit K transpose).
    scores = jnp.einsum("bqd,bkd->bqk",
                        q_p3.astype(bf16), k_p3.astype(bf16),
                        preferred_element_type=f32)                  # (BB, Lqp, KC)
    scores = scores + sbias_ref[...]                                 # additive pad-column mask

    m = jnp.max(scores, axis=-1, keepdims=True)
    p = jnp.exp(scores - m)
    inv_denom = pl.reciprocal(jnp.sum(p, axis=-1, keepdims=True), approx=True)
    attn = p * inv_denom                                             # (BB, Lqp, KC) f32

    out = jnp.einsum("bqk,bkd->bqd",
                     attn.astype(bf16), v_p3.astype(bf16),
                     preferred_element_type=f32)                     # (BB, Lqp, DP)
    out2 = out.reshape(BB * Lqp, DP)

    # Fusion MLPs: linear1(out*res), linear2(res-out), linear3 via pre-split slices.
    o1 = jnp.maximum(
        jnp.dot((out2 * residual).astype(bf16), w1_ref[...],
                preferred_element_type=f32) + b1_ref[...], 0.0)
    o2 = jnp.maximum(
        jnp.dot((residual - out2).astype(bf16), w2_ref[...],
                preferred_element_type=f32) + b2_ref[...], 0.0)
    o3 = (jnp.dot(o1.astype(bf16), w3a_ref[...], preferred_element_type=f32)
          + jnp.dot(o2.astype(bf16), w3b_ref[...], preferred_element_type=f32)
          + jnp.dot(residual.astype(bf16), w3c_ref[...], preferred_element_type=f32)
          + b3_ref[...])

    # FFN (d_model -> 1024 -> d_model) with residual, then LayerNorm.
    h = jnp.maximum(
        jnp.dot(o3.astype(bf16), fw1_ref[...],
                preferred_element_type=f32) + fb1_ref[...], 0.0)
    t2 = jnp.dot(h.astype(bf16), fw2_ref[...],
                 preferred_element_type=f32) + fb2_ref[...]
    y = o3 + t2

    # Two-pass (centered) LayerNorm over the REAL feature width.  Padded feature
    # columns of y are exactly zero, so the mean over d_real is a plain sum; the
    # centered value is re-masked so padded columns don't pollute the variance.
    inv_d = 1.0 / d_real
    mean = jnp.sum(y, axis=-1, keepdims=True) * inv_d
    yc = (y - mean) * dmask_ref[...]
    var = jnp.sum(yc * yc, axis=-1, keepdims=True) * inv_d
    y_n = yc * jax.lax.rsqrt(var + LN_EPS)
    y_n = y_n * gamma_ref[...] + beta_ref[...]

    out_ref[...] = y_n.reshape(BB, Lqp, DP)

    # Lane-dense bf16 attention output: zero the KP-wide block, then write the KC
    # real columns (KC is a 16 multiple, so the partial store stays aligned).
    attn_b = attn.astype(bf16)
    if KC == KP:
        attn_ref[...] = attn_b
    else:
        attn_ref[...] = jnp.zeros_like(attn_ref)
        attn_ref[:, :, :KC] = attn_b


def single_head_siamese_attention(q, k, v, params):
    """q: (B, Lq, D), k/v: (B, Lk, D) -> (out (B, Lq, D) f32, attn (B, Lq, Lk+1) f32)."""
    B, Lq, D = q.shape
    Lk = k.shape[1]
    f32, bf16 = jnp.float32, jnp.bfloat16

    DP = _round_up(D, 128)                 # lane-dense feature width
    Dh = D // 2
    DhP = _round_up(max(Dh, 1), 128)       # lane-dense half width (fusion MLP outputs)
    KC = _round_up(Lk + 1, 16)             # compact key/value rows (bf16 sublane multiple)
    KP = _round_up(Lk + 1, 128)            # lane-dense attn output width
    Lqp = _round_up(Lq, 8)                 # sublane-friendly query rows

    vmem_cap, num_tc = _tpu_generation_info()
    vmem_limit = int(max(32 << 20, min(vmem_cap * 3 // 4, 100 << 20)))

    # ---- weights (padded to lane-dense widths, matmul operands in bf16) ----
    inv_temp = 1.0 / np.sqrt(D)
    w3 = params["w3"]                                            # (2D, D)
    kx = jnp.zeros((KC, DP), f32).at[Lk, :D].set(params["dummy"][0])
    sbias = jnp.where(jnp.arange(KC) <= Lk, 0.0, -1e30).astype(f32).reshape(1, KC)
    dmask = (jnp.arange(DP) < D).astype(f32).reshape(1, DP)

    weights = [
        _pad_to(params["wq"] * inv_temp, (DP, DP)).astype(bf16),
        _pad_to(params["wk"], (DP, DP)).astype(bf16),
        _pad_to(params["wv"], (DP, DP)).astype(bf16),
        kx,
        sbias,
        _pad_to(params["w1"], (DP, DhP)).astype(bf16),
        _pad_to(params["b1"], (1, DhP)).astype(f32),
        _pad_to(params["w2"], (DP, DhP)).astype(bf16),
        _pad_to(params["b2"], (1, DhP)).astype(f32),
        _pad_to(w3[:Dh], (DhP, DP)).astype(bf16),
        _pad_to(w3[Dh:2 * Dh], (DhP, DP)).astype(bf16),
        _pad_to(w3[2 * Dh:], (DP, DP)).astype(bf16),
        _pad_to(params["b3"], (1, DP)).astype(f32),
        _pad_to(params["fw1"], (DP, D_FFN)).astype(bf16),
        params["fb1"].astype(f32),
        _pad_to(params["fw2"], (D_FFN, DP)).astype(bf16),
        _pad_to(params["fb2"], (1, DP)).astype(f32),
        _pad_to(params["gamma"], (1, DP)).astype(f32),
        _pad_to(params["beta"], (1, DP)).astype(f32),
        dmask,
    ]
    weight_bytes = sum(int(np.prod(w.shape)) * w.dtype.itemsize for w in weights)

    # ---- batch blocking (generation-aware) ----
    rows_target = 512
    bb = max(1, min(B, max(1, rows_target // max(Lqp, 1))))
    if num_tc > 1 and B >= num_tc:
        bb = min(bb, max(1, B // num_tc))      # keep >= num_tc grid steps for dual-TC chips

    def step_bytes(bb_):
        # double-buffered q (f32) + k/v (bf16) inputs and out (f32) + attn (bf16) outputs
        return 2 * (bb_ * Lqp * DP * 4 + 2 * bb_ * KC * DP * 2
                    + bb_ * Lqp * DP * 4 + bb_ * Lqp * KP * 2)

    # Conservatively budget weights x2 (falls back if single-buffering is unavailable).
    budget = max(vmem_limit - 2 * weight_bytes - (4 << 20), 8 << 20)
    while bb > 1 and step_bytes(bb) > budget:
        bb -= 1

    Bp = _round_up(B, bb)
    nsteps = Bp // bb

    # ---- activations: q stays f32 (residual), k/v go to HBM as bf16 ----
    q_pad = _pad_to(q.astype(f32), (Bp, Lqp, DP))
    k_pad = _pad_to(k.astype(f32), (Bp, KC, DP)).astype(bf16)
    v_pad = _pad_to(v.astype(f32), (Bp, KC, DP)).astype(bf16)

    def make_call(single_buffer_weights):
        def wspec(arr):
            kwargs = {}
            if single_buffer_weights:
                kwargs["pipeline_mode"] = pl.Buffered(1)   # grid-invariant: DMA once, 1 buffer
            return pl.BlockSpec(arr.shape, lambda b, n=arr.ndim: (0,) * n, **kwargs)

        in_specs = [
            pl.BlockSpec((bb, Lqp, DP), lambda b: (b, 0, 0)),
            pl.BlockSpec((bb, KC, DP), lambda b: (b, 0, 0)),
            pl.BlockSpec((bb, KC, DP), lambda b: (b, 0, 0)),
        ] + [wspec(w) for w in weights]

        out_specs = (
            pl.BlockSpec((bb, Lqp, DP), lambda b: (b, 0, 0)),
            pl.BlockSpec((bb, Lqp, KP), lambda b: (b, 0, 0)),
        )
        out_shape = (
            jax.ShapeDtypeStruct((Bp, Lqp, DP), f32),
            jax.ShapeDtypeStruct((Bp, Lqp, KP), bf16),
        )
        return pl.pallas_call(
            functools.partial(_siamese_attn_kernel, D),
            out_shape=out_shape,
            grid_spec=pltpu.PrefetchScalarGridSpec(
                num_scalar_prefetch=0,
                grid=(nsteps,),
                in_specs=in_specs,
                out_specs=out_specs,
            ),
            compiler_params=pltpu.CompilerParams(
                dimension_semantics=("parallel",),
                vmem_limit_bytes=vmem_limit),
        )

    args = (q_pad, k_pad, v_pad, *weights)
    if hasattr(pl, "Buffered"):
        try:
            out_pad, attn_pad = make_call(True)(*args)
        except Exception:
            # pipeline_mode not supported by this Pallas version -> default buffering.
            out_pad, attn_pad = make_call(False)(*args)
    else:
        out_pad, attn_pad = make_call(False)(*args)

    out = out_pad[:B, :Lq, :D]
    attn = attn_pad[:B, :Lq, :Lk + 1].astype(f32)
    return out, attn


def init_params(key, d_model):
    ks = jax.random.split(key, 16)
    std_qkv = np.sqrt(2.0 / (d_model + d_model))

    def lin(k, fan_in, fan_out):
        bound = 1.0 / np.sqrt(fan_in)
        kw, kb = jax.random.split(k)
        w = jax.random.uniform(kw, (fan_in, fan_out), jnp.float32, -bound, bound)
        b = jax.random.uniform(kb, (1, fan_out), jnp.float32, -bound, bound)
        return w, b

    p = {}
    p["wq"] = std_qkv * jax.random.normal(ks[0], (d_model, d_model), jnp.float32)
    p["wk"] = std_qkv * jax.random.normal(ks[1], (d_model, d_model), jnp.float32)
    p["wv"] = std_qkv * jax.random.normal(ks[2], (d_model, d_model), jnp.float32)
    p["dummy"] = jax.random.normal(ks[3], (1, d_model), jnp.float32)
    p["w1"], p["b1"] = lin(ks[4], d_model, d_model // 2)
    p["w2"], p["b2"] = lin(ks[5], d_model, d_model // 2)
    p["w3"], p["b3"] = lin(ks[6], 2 * d_model, d_model)
    p["fw1"], p["fb1"] = lin(ks[7], d_model, D_FFN)
    p["fw2"], p["fb2"] = lin(ks[8], D_FFN, d_model)
    p["gamma"] = jnp.ones((1, d_model), jnp.float32)
    p["beta"] = jnp.zeros((1, d_model), jnp.float32)
    return p


def reference_forward(q, k, v, p):
    """Pure-JAX reference mirroring the PyTorch forward (dropout = 0) with the same
    bf16-on-MXU / f32-accumulate numerics the kernel uses."""
    B, Lq, D = q.shape
    f32, bf16 = jnp.float32, jnp.bfloat16
    inv_temp = 1.0 / np.sqrt(D)

    def mm(x, w):  # batched x @ w with bf16 operands, f32 accumulation
        return jnp.einsum("bld,df->blf", x.astype(bf16), w.astype(bf16),
                          preferred_element_type=f32)

    residual = q
    qp = mm(q, p["wq"] * inv_temp)
    kp = mm(k, p["wk"])
    vp = mm(v, p["wv"])
    kp = jnp.concatenate([kp, jnp.broadcast_to(p["dummy"][None], (B, 1, D))], axis=1)
    vp = jnp.concatenate([vp, jnp.zeros((B, 1, D), f32)], axis=1)
    scores = jnp.einsum("bqd,bkd->bqk", qp.astype(bf16), kp.astype(bf16),
                        preferred_element_type=f32)
    attn = jax.nn.softmax(scores, axis=-1)
    out = jnp.einsum("bqk,bkd->bqd", attn.astype(bf16), vp.astype(bf16),
                     preferred_element_type=f32)
    o1 = jax.nn.relu(mm(out * residual, p["w1"]) + p["b1"])
    o2 = jax.nn.relu(mm(residual - out, p["w2"]) + p["b2"])
    o3 = mm(jnp.concatenate([o1, o2, residual], axis=-1), p["w3"]) + p["b3"]
    h = jax.nn.relu(mm(o3, p["fw1"]) + p["fb1"])
    t2 = mm(h, p["fw2"]) + p["fb2"]
    y = o3 + t2
    mean = jnp.mean(y, axis=-1, keepdims=True)
    var = jnp.mean((y - mean) ** 2, axis=-1, keepdims=True)
    y = (y - mean) / jnp.sqrt(var + LN_EPS)
    y = y * p["gamma"] + p["beta"]
    return y, attn


if __name__ == "__main__":
    B, Lq, Lk, D = 2, 8, 8, 32
    key = jax.random.PRNGKey(0)
    kq, kk, kv, kp = jax.random.split(key, 4)
    q = jax.random.normal(kq, (B, Lq, D), jnp.float32)
    k = jax.random.normal(kk, (B, Lk, D), jnp.float32)
    v = jax.random.normal(kv, (B, Lk, D), jnp.float32)
    params = init_params(kp, D)

    out, attn = single_head_siamese_attention(q, k, v, params)
    out = jax.block_until_ready(out)
    attn = jax.block_until_ready(attn)

    ref_out, ref_attn = reference_forward(q, k, v, params)
    np.testing.assert_allclose(np.asarray(out, dtype=np.float32),
                               np.asarray(ref_out, dtype=np.float32),
                               rtol=1e-2, atol=1e-2)
    np.testing.assert_allclose(np.asarray(attn, dtype=np.float32),
                               np.asarray(ref_attn, dtype=np.float32),
                               rtol=1e-2, atol=1e-2)

    print("KERNEL_OK")
</pallas_src>

<mosaic_0001>
module attributes {stable_mosaic.version = 11 : i64} {
  func.func @_siamese_attn_kernel(%arg0: i32, %arg1: memref<2x8x128xf32, #tpu.memory_space<vmem>>, %arg2: memref<2x16x128xbf16, #tpu.memory_space<vmem>>, %arg3: memref<2x16x128xbf16, #tpu.memory_space<vmem>>, %arg4: memref<128x128xbf16, #tpu.memory_space<vmem>>, %arg5: memref<128x128xbf16, #tpu.memory_space<vmem>>, %arg6: memref<128x128xbf16, #tpu.memory_space<vmem>>, %arg7: memref<16x128xf32, #tpu.memory_space<vmem>>, %arg8: memref<1x16xf32, #tpu.memory_space<vmem>>, %arg9: memref<128x128xbf16, #tpu.memory_space<vmem>>, %arg10: memref<1x128xf32, #tpu.memory_space<vmem>>, %arg11: memref<128x128xbf16, #tpu.memory_space<vmem>>, %arg12: memref<1x128xf32, #tpu.memory_space<vmem>>, %arg13: memref<128x128xbf16, #tpu.memory_space<vmem>>, %arg14: memref<128x128xbf16, #tpu.memory_space<vmem>>, %arg15: memref<128x128xbf16, #tpu.memory_space<vmem>>, %arg16: memref<1x128xf32, #tpu.memory_space<vmem>>, %arg17: memref<128x1024xbf16, #tpu.memory_space<vmem>>, %arg18: memref<1x1024xf32, #tpu.memory_space<vmem>>, %arg19: memref<1024x128xbf16, #tpu.memory_space<vmem>>, %arg20: memref<1x128xf32, #tpu.memory_space<vmem>>, %arg21: memref<1x128xf32, #tpu.memory_space<vmem>>, %arg22: memref<1x128xf32, #tpu.memory_space<vmem>>, %arg23: memref<1x128xf32, #tpu.memory_space<vmem>>, %arg24: memref<2x8x128xf32, #tpu.memory_space<vmem>>, %arg25: memref<2x8x128xbf16, #tpu.memory_space<vmem>>) attributes {dimension_semantics = [#tpu.dimension_semantics<parallel>], iteration_bounds = array<i64: 1>, scalar_prefetch = 0 : i64, scratch_operands = 0 : i64, tpu.core_type = #tpu.core_type<tc>, window_params = [{transform_indices = @transform_0, window_bounds = array<i64: 2, 8, 128>}, {transform_indices = @transform_1, window_bounds = array<i64: 2, 16, 128>}, {transform_indices = @transform_2, window_bounds = array<i64: 2, 16, 128>}, {pipeline_mode = #tpu.pipeline_mode<synchronous>, transform_indices = @transform_3, window_bounds = array<i64: 128, 128>}, {pipeline_mode = #tpu.pipeline_mode<synchronous>, transform_indices = @transform_4, window_bounds = array<i64: 128, 128>}, {pipeline_mode = #tpu.pipeline_mode<synchronous>, transform_indices = @transform_5, window_bounds = array<i64: 128, 128>}, {pipeline_mode = #tpu.pipeline_mode<synchronous>, transform_indices = @transform_6, window_bounds = array<i64: 16, 128>}, {pipeline_mode = #tpu.pipeline_mode<synchronous>, transform_indices = @transform_7, window_bounds = array<i64: 1, 16>}, {pipeline_mode = #tpu.pipeline_mode<synchronous>, transform_indices = @transform_8, window_bounds = array<i64: 128, 128>}, {pipeline_mode = #tpu.pipeline_mode<synchronous>, transform_indices = @transform_9, window_bounds = array<i64: 1, 128>}, {pipeline_mode = #tpu.pipeline_mode<synchronous>, transform_indices = @transform_10, window_bounds = array<i64: 128, 128>}, {pipeline_mode = #tpu.pipeline_mode<synchronous>, transform_indices = @transform_11, window_bounds = array<i64: 1, 128>}, {pipeline_mode = #tpu.pipeline_mode<synchronous>, transform_indices = @transform_12, window_bounds = array<i64: 128, 128>}, {pipeline_mode = #tpu.pipeline_mode<synchronous>, transform_indices = @transform_13, window_bounds = array<i64: 128, 128>}, {pipeline_mode = #tpu.pipeline_mode<synchronous>, transform_indices = @transform_14, window_bounds = array<i64: 128, 128>}, {pipeline_mode = #tpu.pipeline_mode<synchronous>, transform_indices = @transform_15, window_bounds = array<i64: 1, 128>}, {pipeline_mode = #tpu.pipeline_mode<synchronous>, transform_indices = @transform_16, window_bounds = array<i64: 128, 1024>}, {pipeline_mode = #tpu.pipeline_mode<synchronous>, transform_indices = @transform_17, window_bounds = array<i64: 1, 1024>}, {pipeline_mode = #tpu.pipeline_mode<synchronous>, transform_indices = @transform_18, window_bounds = array<i64: 1024, 128>}, {pipeline_mode = #tpu.pipeline_mode<synchronous>, transform_indices = @transform_19, window_bounds = array<i64: 1, 128>}, {pipeline_mode = #tpu.pipeline_mode<synchronous>, transform_indices = @transform_20, window_bounds = array<i64: 1, 128>}, {pipeline_mode = #tpu.pipeline_mode<synchronous>, transform_indices = @transform_21, window_bounds = array<i64: 1, 128>}, {pipeline_mode = #tpu.pipeline_mode<synchronous>, transform_indices = @transform_22, window_bounds = array<i64: 1, 128>}, {transform_indices = @transform_23, window_bounds = array<i64: 2, 8, 128>}, {transform_indices = @transform_24, window_bounds = array<i64: 2, 8, 128>}]} {
    %c0 = arith.constant 0 : index
    %c0_0 = arith.constant 0 : index
    %c0_1 = arith.constant 0 : index
    %0 = vector.load %arg1[%c0, %c0_0, %c0_1] : memref<2x8x128xf32, #tpu.memory_space<vmem>>, vector<2x8x128xf32>
    %1 = vector.shape_cast %0 : vector<2x8x128xf32> to vector<16x128xf32>
    %2 = arith.truncf %1 : vector<16x128xf32> to vector<16x128xbf16>
    %c0_2 = arith.constant 0 : index
    %c0_3 = arith.constant 0 : index
    %c0_4 = arith.constant 0 : index
    %3 = vector.load %arg2[%c0_2, %c0_3, %c0_4] : memref<2x16x128xbf16, #tpu.memory_space<vmem>>, vector<2x16x128xbf16>
    %4 = vector.shape_cast %3 : vector<2x16x128xbf16> to vector<32x128xbf16>
    %c0_5 = arith.constant 0 : index
    %c0_6 = arith.constant 0 : index
    %c0_7 = arith.constant 0 : index
    %5 = vector.load %arg3[%c0_5, %c0_6, %c0_7] : memref<2x16x128xbf16, #tpu.memory_space<vmem>>, vector<2x16x128xbf16>
    %6 = vector.shape_cast %5 : vector<2x16x128xbf16> to vector<32x128xbf16>
    %c0_8 = arith.constant 0 : index
    %c0_9 = arith.constant 0 : index
    %7 = vector.load %arg4[%c0_8, %c0_9] : memref<128x128xbf16, #tpu.memory_space<vmem>>, vector<128x128xbf16>
    %cst = arith.constant dense<0.000000e+00> : vector<16x128xf32>
    %8 = tpu.matmul %2, %7, %cst {dimension_numbers = #tpu.dot_dimension_numbers<[1], [0], [0], [1], [0, 0, 1, 1], [], []>} : vector<16x128xbf16>, vector<128x128xbf16>, vector<16x128xf32> -> vector<16x128xf32>
    %c0_10 = arith.constant 0 : index
    %c0_11 = arith.constant 0 : index
    %9 = vector.load %arg5[%c0_10, %c0_11] : memref<128x128xbf16, #tpu.memory_space<vmem>>, vector<128x128xbf16>
    %cst_12 = arith.constant dense<0.000000e+00> : vector<32x128xf32>
    %10 = tpu.matmul %4, %9, %cst_12 {dimension_numbers = #tpu.dot_dimension_numbers<[1], [0], [0], [1], [0, 0, 1, 1], [], []>} : vector<32x128xbf16>, vector<128x128xbf16>, vector<32x128xf32> -> vector<32x128xf32>
    %c0_13 = arith.constant 0 : index
    %c0_14 = arith.constant 0 : index
    %11 = vector.load %arg6[%c0_13, %c0_14] : memref<128x128xbf16, #tpu.memory_space<vmem>>, vector<128x128xbf16>
    %cst_15 = arith.constant dense<0.000000e+00> : vector<32x128xf32>
    %12 = tpu.matmul %6, %11, %cst_15 {dimension_numbers = #tpu.dot_dimension_numbers<[1], [0], [0], [1], [0, 0, 1, 1], [], []>} : vector<32x128xbf16>, vector<128x128xbf16>, vector<32x128xf32> -> vector<32x128xf32>
    %13 = vector.shape_cast %10 : vector<32x128xf32> to vector<2x16x128xf32>
    %c0_16 = arith.constant 0 : index
    %c0_17 = arith.constant 0 : index
    %14 = vector.load %arg7[%c0_16, %c0_17] : memref<16x128xf32, #tpu.memory_space<vmem>>, vector<16x128xf32>
    %15 = vector.shape_cast %14 : vector<16x128xf32> to vector<1x16x128xf32>
    %16 = vector.broadcast %15 : vector<1x16x128xf32> to vector<2x16x128xf32>
    %17 = arith.addf %13, %16 : vector<2x16x128xf32>
    %18 = vector.shape_cast %12 : vector<32x128xf32> to vector<2x16x128xf32>
    %19 = vector.shape_cast %8 : vector<16x128xf32> to vector<2x8x128xf32>
    %20 = arith.truncf %19 : vector<2x8x128xf32> to vector<2x8x128xbf16>
    %21 = arith.truncf %17 : vector<2x16x128xf32> to vector<2x16x128xbf16>
    "tpu.trace_start"() <{level = 10 : i32, message = "bqd,bkd->bqk"}> : () -> ()
    %cst_18 = arith.constant dense<0.000000e+00> : vector<2x8x16xf32>
    %22 = tpu.matmul %20, %21, %cst_18 {dimension_numbers = #tpu.dot_dimension_numbers<[2], [2], [1], [1], [0, 0, 0, 1, 1, 1], [0], [0]>} : vector<2x8x128xbf16>, vector<2x16x128xbf16>, vector<2x8x16xf32> -> vector<2x8x16xf32>
    "tpu.trace_stop"() : () -> ()
    %c0_19 = arith.constant 0 : index
    %c0_20 = arith.constant 0 : index
    %23 = vector.load %arg8[%c0_19, %c0_20] : memref<1x16xf32, #tpu.memory_space<vmem>>, vector<1x16xf32>
    %24 = vector.shape_cast %23 : vector<1x16xf32> to vector<1x1x16xf32>
    %25 = vector.broadcast %24 : vector<1x1x16xf32> to vector<2x8x16xf32>
    %26 = arith.addf %22, %25 : vector<2x8x16xf32>
    %cst_21 = arith.constant dense<0xFF800000> : vector<2x8xf32>
    %27 = vector.multi_reduction <maximumf>, %26, %cst_21 [2] : vector<2x8x16xf32> to vector<2x8xf32>
    %28 = vector.shape_cast %27 : vector<2x8xf32> to vector<2x8x1xf32>
    %29 = vector.broadcast %28 : vector<2x8x1xf32> to vector<2x8x16xf32>
    %30 = arith.subf %26, %29 : vector<2x8x16xf32>
    %31 = math.exp %30 : vector<2x8x16xf32>
    %cst_22 = arith.constant dense<0.000000e+00> : vector<2x8xf32>
    %32 = vector.multi_reduction <add>, %31, %cst_22 [2] : vector<2x8x16xf32> to vector<2x8xf32>
    %33 = vector.shape_cast %32 : vector<2x8xf32> to vector<2x8x1xf32>
    %34 = tpu.reciprocal %33 {approx = true} : vector<2x8x1xf32> -> vector<2x8x1xf32>
    %35 = vector.broadcast %34 : vector<2x8x1xf32> to vector<2x8x16xf32>
    %36 = arith.mulf %31, %35 : vector<2x8x16xf32>
    %37 = arith.truncf %36 : vector<2x8x16xf32> to vector<2x8x16xbf16>
    %38 = arith.truncf %18 : vector<2x16x128xf32> to vector<2x16x128xbf16>
    "tpu.trace_start"() <{level = 10 : i32, message = "bqk,bkd->bqd"}> : () -> ()
    %cst_23 = arith.constant dense<0.000000e+00> : vector<2x8x128xf32>
    %39 = tpu.matmul %37, %38, %cst_23 {dimension_numbers = #tpu.dot_dimension_numbers<[2], [1], [1], [2], [0, 0, 0, 1, 1, 2], [0], [0]>} : vector<2x8x16xbf16>, vector<2x16x128xbf16>, vector<2x8x128xf32> -> vector<2x8x128xf32>
    "tpu.trace_stop"() : () -> ()
    %40 = vector.shape_cast %39 : vector<2x8x128xf32> to vector<16x128xf32>
    %41 = arith.mulf %40, %1 : vector<16x128xf32>
    %42 = arith.truncf %41 : vector<16x128xf32> to vector<16x128xbf16>
    %c0_24 = arith.constant 0 : index
    %c0_25 = arith.constant 0 : index
    %43 = vector.load %arg9[%c0_24, %c0_25] : memref<128x128xbf16, #tpu.memory_space<vmem>>, vector<128x128xbf16>
    %cst_26 = arith.constant dense<0.000000e+00> : vector<16x128xf32>
    %44 = tpu.matmul %42, %43, %cst_26 {dimension_numbers = #tpu.dot_dimension_numbers<[1], [0], [0], [1], [0, 0, 1, 1], [], []>} : vector<16x128xbf16>, vector<128x128xbf16>, vector<16x128xf32> -> vector<16x128xf32>
    %c0_27 = arith.constant 0 : index
    %c0_28 = arith.constant 0 : index
    %45 = vector.load %arg10[%c0_27, %c0_28] : memref<1x128xf32, #tpu.memory_space<vmem>>, vector<1x128xf32>
    %46 = vector.broadcast %45 : vector<1x128xf32> to vector<16x128xf32>
    %47 = arith.addf %44, %46 : vector<16x128xf32>
    %cst_29 = arith.constant 0.000000e+00 : f32
    %48 = vector.broadcast %cst_29 : f32 to vector<16x128xf32>
    %49 = arith.maximumf %47, %48 : vector<16x128xf32>
    %50 = arith.subf %1, %40 : vector<16x128xf32>
    %51 = arith.truncf %50 : vector<16x128xf32> to vector<16x128xbf16>
    %c0_30 = arith.constant 0 : index
    %c0_31 = arith.constant 0 : index
    %52 = vector.load %arg11[%c0_30, %c0_31] : memref<128x128xbf16, #tpu.memory_space<vmem>>, vector<128x128xbf16>
    %cst_32 = arith.constant dense<0.000000e+00> : vector<16x128xf32>
    %53 = tpu.matmul %51, %52, %cst_32 {dimension_numbers = #tpu.dot_dimension_numbers<[1], [0], [0], [1], [0, 0, 1, 1], [], []>} : vector<16x128xbf16>, vector<128x128xbf16>, vector<16x128xf32> -> vector<16x128xf32>
    %c0_33 = arith.constant 0 : index
    %c0_34 = arith.constant 0 : index
    %54 = vector.load %arg12[%c0_33, %c0_34] : memref<1x128xf32, #tpu.memory_space<vmem>>, vector<1x128xf32>
    %55 = vector.broadcast %54 : vector<1x128xf32> to vector<16x128xf32>
    %56 = arith.addf %53, %55 : vector<16x128xf32>
    %cst_35 = arith.constant 0.000000e+00 : f32
    %57 = vector.broadcast %cst_35 : f32 to vector<16x128xf32>
    %58 = arith.maximumf %56, %57 : vector<16x128xf32>
    %59 = arith.truncf %49 : vector<16x128xf32> to vector<16x128xbf16>
    %c0_36 = arith.constant 0 : index
    %c0_37 = arith.constant 0 : index
    %60 = vector.load %arg13[%c0_36, %c0_37] : memref<128x128xbf16, #tpu.memory_space<vmem>>, vector<128x128xbf16>
    %cst_38 = arith.constant dense<0.000000e+00> : vector<16x128xf32>
    %61 = tpu.matmul %59, %60, %cst_38 {dimension_numbers = #tpu.dot_dimension_numbers<[1], [0], [0], [1], [0, 0, 1, 1], [], []>} : vector<16x128xbf16>, vector<128x128xbf16>, vector<16x128xf32> -> vector<16x128xf32>
    %62 = arith.truncf %58 : vector<16x128xf32> to vector<16x128xbf16>
    %c0_39 = arith.constant 0 : index
    %c0_40 = arith.constant 0 : index
    %63 = vector.load %arg14[%c0_39, %c0_40] : memref<128x128xbf16, #tpu.memory_space<vmem>>, vector<128x128xbf16>
    %cst_41 = arith.constant dense<0.000000e+00> : vector<16x128xf32>
    %64 = tpu.matmul %62, %63, %cst_41 {dimension_numbers = #tpu.dot_dimension_numbers<[1], [0], [0], [1], [0, 0, 1, 1], [], []>} : vector<16x128xbf16>, vector<128x128xbf16>, vector<16x128xf32> -> vector<16x128xf32>
    %65 = arith.addf %61, %64 : vector<16x128xf32>
    %66 = arith.truncf %1 : vector<16x128xf32> to vector<16x128xbf16>
    %c0_42 = arith.constant 0 : index
    %c0_43 = arith.constant 0 : index
    %67 = vector.load %arg15[%c0_42, %c0_43] : memref<128x128xbf16, #tpu.memory_space<vmem>>, vector<128x128xbf16>
    %cst_44 = arith.constant dense<0.000000e+00> : vector<16x128xf32>
    %68 = tpu.matmul %66, %67, %cst_44 {dimension_numbers = #tpu.dot_dimension_numbers<[1], [0], [0], [1], [0, 0, 1, 1], [], []>} : vector<16x128xbf16>, vector<128x128xbf16>, vector<16x128xf32> -> vector<16x128xf32>
    %69 = arith.addf %65, %68 : vector<16x128xf32>
    %c0_45 = arith.constant 0 : index
    %c0_46 = arith.constant 0 : index
    %70 = vector.load %arg16[%c0_45, %c0_46] : memref<1x128xf32, #tpu.memory_space<vmem>>, vector<1x128xf32>
    %71 = vector.broadcast %70 : vector<1x128xf32> to vector<16x128xf32>
    %72 = arith.addf %69, %71 : vector<16x128xf32>
    %73 = arith.truncf %72 : vector<16x128xf32> to vector<16x128xbf16>
    %c0_47 = arith.constant 0 : index
    %c0_48 = arith.constant 0 : index
    %74 = vector.load %arg17[%c0_47, %c0_48] : memref<128x1024xbf16, #tpu.memory_space<vmem>>, vector<128x1024xbf16>
    %cst_49 = arith.constant dense<0.000000e+00> : vector<16x1024xf32>
    %75 = tpu.matmul %73, %74, %cst_49 {dimension_numbers = #tpu.dot_dimension_numbers<[1], [0], [0], [1], [0, 0, 1, 1], [], []>} : vector<16x128xbf16>, vector<128x1024xbf16>, vector<16x1024xf32> -> vector<16x1024xf32>
    %c0_50 = arith.constant 0 : index
    %c0_51 = arith.constant 0 : index
    %76 = vector.load %arg18[%c0_50, %c0_51] : memref<1x1024xf32, #tpu.memory_space<vmem>>, vector<1x1024xf32>
    %77 = vector.broadcast %76 : vector<1x1024xf32> to vector<16x1024xf32>
    %78 = arith.addf %75, %77 : vector<16x1024xf32>
    %cst_52 = arith.constant 0.000000e+00 : f32
    %79 = vector.broadcast %cst_52 : f32 to vector<16x1024xf32>
    %80 = arith.maximumf %78, %79 : vector<16x1024xf32>
    %81 = arith.truncf %80 : vector<16x1024xf32> to vector<16x1024xbf16>
    %c0_53 = arith.constant 0 : index
    %c0_54 = arith.constant 0 : index
    %82 = vector.load %arg19[%c0_53, %c0_54] : memref<1024x128xbf16, #tpu.memory_space<vmem>>, vector<1024x128xbf16>
    %cst_55 = arith.constant dense<0.000000e+00> : vector<16x128xf32>
    %83 = tpu.matmul %81, %82, %cst_55 {dimension_numbers = #tpu.dot_dimension_numbers<[1], [0], [0], [1], [0, 0, 1, 1], [], []>} : vector<16x1024xbf16>, vector<1024x128xbf16>, vector<16x128xf32> -> vector<16x128xf32>
    %c0_56 = arith.constant 0 : index
    %c0_57 = arith.constant 0 : index
    %84 = vector.load %arg20[%c0_56, %c0_57] : memref<1x128xf32, #tpu.memory_space<vmem>>, vector<1x128xf32>
    %85 = vector.broadcast %84 : vector<1x128xf32> to vector<16x128xf32>
    %86 = arith.addf %83, %85 : vector<16x128xf32>
    %87 = arith.addf %72, %86 : vector<16x128xf32>
    %cst_58 = arith.constant dense<0.000000e+00> : vector<16xf32>
    %88 = vector.multi_reduction <add>, %87, %cst_58 [1] : vector<16x128xf32> to vector<16xf32>
    %89 = vector.shape_cast %88 : vector<16xf32> to vector<16x1xf32>
    %cst_59 = arith.constant 3.125000e-02 : f32
    %90 = vector.broadcast %cst_59 : f32 to vector<16x1xf32>
    %91 = arith.mulf %89, %90 : vector<16x1xf32>
    %92 = vector.broadcast %91 : vector<16x1xf32> to vector<16x128xf32>
    %93 = arith.subf %87, %92 : vector<16x128xf32>
    %c0_60 = arith.constant 0 : index
    %c0_61 = arith.constant 0 : index
    %94 = vector.load %arg23[%c0_60, %c0_61] : memref<1x128xf32, #tpu.memory_space<vmem>>, vector<1x128xf32>
    %95 = vector.broadcast %94 : vector<1x128xf32> to vector<16x128xf32>
    %96 = arith.mulf %93, %95 : vector<16x128xf32>
    %97 = arith.mulf %96, %96 : vector<16x128xf32>
    %cst_62 = arith.constant dense<0.000000e+00> : vector<16xf32>
    %98 = vector.multi_reduction <add>, %97, %cst_62 [1] : vector<16x128xf32> to vector<16xf32>
    %99 = vector.shape_cast %98 : vector<16xf32> to vector<16x1xf32>
    %cst_63 = arith.constant 3.125000e-02 : f32
    %100 = vector.broadcast %cst_63 : f32 to vector<16x1xf32>
    %101 = arith.mulf %99, %100 : vector<16x1xf32>
    %cst_64 = arith.constant 9.99999974E-6 : f32
    %102 = vector.broadcast %cst_64 : f32 to vector<16x1xf32>
    %103 = arith.addf %101, %102 : vector<16x1xf32>
    %104 = math.rsqrt %103 : vector<16x1xf32>
    %105 = vector.broadcast %104 : vector<16x1xf32> to vector<16x128xf32>
    %106 = arith.mulf %96, %105 : vector<16x128xf32>
    %c0_65 = arith.constant 0 : index
    %c0_66 = arith.constant 0 : index
    %107 = vector.load %arg21[%c0_65, %c0_66] : memref<1x128xf32, #tpu.memory_space<vmem>>, vector<1x128xf32>
    %108 = vector.broadcast %107 : vector<1x128xf32> to vector<16x128xf32>
    %109 = arith.mulf %106, %108 : vector<16x128xf32>
    %c0_67 = arith.constant 0 : index
    %c0_68 = arith.constant 0 : index
    %110 = vector.load %arg22[%c0_67, %c0_68] : memref<1x128xf32, #tpu.memory_space<vmem>>, vector<1x128xf32>
    %111 = vector.broadcast %110 : vector<1x128xf32> to vector<16x128xf32>
    %112 = arith.addf %109, %111 : vector<16x128xf32>
    %113 = vector.shape_cast %112 : vector<16x128xf32> to vector<2x8x128xf32>
    %c0_69 = arith.constant 0 : index
    %c0_70 = arith.constant 0 : index
    %c0_71 = arith.constant 0 : index
    %114 = vector.load %arg24[%c0_69, %c0_70, %c0_71] : memref<2x8x128xf32, #tpu.memory_space<vmem>>, vector<2x8x128xf32>
    tpu.vector_store %arg24[%c0_69, %c0_70, %c0_71], %113 {strides = array<i32>} : memref<2x8x128xf32, #tpu.memory_space<vmem>>, vector<2x8x128xf32>,
    %115 = arith.truncf %36 : vector<2x8x16xf32> to vector<2x8x16xbf16>
    %cst_72 = arith.constant 0.000000e+00 : bf16
    %116 = vector.broadcast %cst_72 : bf16 to vector<2x8x128xbf16>
    %c0_73 = arith.constant 0 : index
    %c0_74 = arith.constant 0 : index
    %c0_75 = arith.constant 0 : index
    %117 = vector.load %arg25[%c0_73, %c0_74, %c0_75] : memref<2x8x128xbf16, #tpu.memory_space<vmem>>, vector<2x8x128xbf16>
    tpu.vector_store %arg25[%c0_73, %c0_74, %c0_75], %116 {strides = array<i32>} : memref<2x8x128xbf16, #tpu.memory_space<vmem>>, vector<2x8x128xbf16>,
    %c0_76 = arith.constant 0 : index
    %c0_77 = arith.constant 0 : index
    %c0_78 = arith.constant 0 : index
    %118 = vector.load %arg25[%c0_76, %c0_77, %c0_78] : memref<2x8x128xbf16, #tpu.memory_space<vmem>>, vector<2x8x16xbf16>
    tpu.vector_store %arg25[%c0_76, %c0_77, %c0_78], %115 {strides = array<i32>} : memref<2x8x128xbf16, #tpu.memory_space<vmem>>, vector<2x8x16xbf16>,
    return
  }
  func.func @transform_0(%arg0: i32) -> (i32, i32, i32) {
    %c0_i32 = arith.constant 0 : i32
    %c0_i32_0 = arith.constant 0 : i32
    %c0_i32_1 = arith.constant 0 : i32
    return %arg0, %c0_i32, %c0_i32_0 : i32, i32, i32
  }
  func.func @transform_1(%arg0: i32) -> (i32, i32, i32) {
    %c0_i32 = arith.constant 0 : i32
    %c0_i32_0 = arith.constant 0 : i32
    %c0_i32_1 = arith.constant 0 : i32
    return %arg0, %c0_i32, %c0_i32_0 : i32, i32, i32
  }
  func.func @transform_2(%arg0: i32) -> (i32, i32, i32) {
    %c0_i32 = arith.constant 0 : i32
    %c0_i32_0 = arith.constant 0 : i32
    %c0_i32_1 = arith.constant 0 : i32
    return %arg0, %c0_i32, %c0_i32_0 : i32, i32, i32
  }
  func.func @transform_3(%arg0: i32) -> (i32, i32) {
    %c0_i32 = arith.constant 0 : i32
    %c0_i32_0 = arith.constant 0 : i32
    %c0_i32_1 = arith.constant 0 : i32
    return %c0_i32, %c0_i32_0 : i32, i32
  }
  func.func @transform_4(%arg0: i32) -> (i32, i32) {
    %c0_i32 = arith.constant 0 : i32
    %c0_i32_0 = arith.constant 0 : i32
    %c0_i32_1 = arith.constant 0 : i32
    return %c0_i32, %c0_i32_0 : i32, i32
  }
  func.func @transform_5(%arg0: i32) -> (i32, i32) {
    %c0_i32 = arith.constant 0 : i32
    %c0_i32_0 = arith.constant 0 : i32
    %c0_i32_1 = arith.constant 0 : i32
    return %c0_i32, %c0_i32_0 : i32, i32
  }
  func.func @transform_6(%arg0: i32) -> (i32, i32) {
    %c0_i32 = arith.constant 0 : i32
    %c0_i32_0 = arith.constant 0 : i32
    %c0_i32_1 = arith.constant 0 : i32
    return %c0_i32, %c0_i32_0 : i32, i32
  }
  func.func @transform_7(%arg0: i32) -> (i32, i32) {
    %c0_i32 = arith.constant 0 : i32
    %c0_i32_0 = arith.constant 0 : i32
    %c0_i32_1 = arith.constant 0 : i32
    return %c0_i32, %c0_i32_0 : i32, i32
  }
  func.func @transform_8(%arg0: i32) -> (i32, i32) {
    %c0_i32 = arith.constant 0 : i32
    %c0_i32_0 = arith.constant 0 : i32
    %c0_i32_1 = arith.constant 0 : i32
    return %c0_i32, %c0_i32_0 : i32, i32
  }
  func.func @transform_9(%arg0: i32) -> (i32, i32) {
    %c0_i32 = arith.constant 0 : i32
    %c0_i32_0 = arith.constant 0 : i32
    %c0_i32_1 = arith.constant 0 : i32
    return %c0_i32, %c0_i32_0 : i32, i32
  }
  func.func @transform_10(%arg0: i32) -> (i32, i32) {
    %c0_i32 = arith.constant 0 : i32
    %c0_i32_0 = arith.constant 0 : i32
    %c0_i32_1 = arith.constant 0 : i32
    return %c0_i32, %c0_i32_0 : i32, i32
  }
  func.func @transform_11(%arg0: i32) -> (i32, i32) {
    %c0_i32 = arith.constant 0 : i32
    %c0_i32_0 = arith.constant 0 : i32
    %c0_i32_1 = arith.constant 0 : i32
    return %c0_i32, %c0_i32_0 : i32, i32
  }
  func.func @transform_12(%arg0: i32) -> (i32, i32) {
    %c0_i32 = arith.constant 0 : i32
    %c0_i32_0 = arith.constant 0 : i32
    %c0_i32_1 = arith.constant 0 : i32
    return %c0_i32, %c0_i32_0 : i32, i32
  }
  func.func @transform_13(%arg0: i32) -> (i32, i32) {
    %c0_i32 = arith.constant 0 : i32
    %c0_i32_0 = arith.constant 0 : i32
    %c0_i32_1 = arith.constant 0 : i32
    return %c0_i32, %c0_i32_0 : i32, i32
  }
  func.func @transform_14(%arg0: i32) -> (i32, i32) {
    %c0_i32 = arith.constant 0 : i32
    %c0_i32_0 = arith.constant 0 : i32
    %c0_i32_1 = arith.constant 0 : i32
    return %c0_i32, %c0_i32_0 : i32, i32
  }
  func.func @transform_15(%arg0: i32) -> (i32, i32) {
    %c0_i32 = arith.constant 0 : i32
    %c0_i32_0 = arith.constant 0 : i32
    %c0_i32_1 = arith.constant 0 : i32
    return %c0_i32, %c0_i32_0 : i32, i32
  }
  func.func @transform_16(%arg0: i32) -> (i32, i32) {
    %c0_i32 = arith.constant 0 : i32
    %c0_i32_0 = arith.constant 0 : i32
    %c0_i32_1 = arith.constant 0 : i32
    return %c0_i32, %c0_i32_0 : i32, i32
  }
  func.func @transform_17(%arg0: i32) -> (i32, i32) {
    %c0_i32 = arith.constant 0 : i32
    %c0_i32_0 = arith.constant 0 : i32
    %c0_i32_1 = arith.constant 0 : i32
    return %c0_i32, %c0_i32_0 : i32, i32
  }
  func.func @transform_18(%arg0: i32) -> (i32, i32) {
    %c0_i32 = arith.constant 0 : i32
    %c0_i32_0 = arith.constant 0 : i32
    %c0_i32_1 = arith.constant 0 : i32
    return %c0_i32, %c0_i32_0 : i32, i32
  }
  func.func @transform_19(%arg0: i32) -> (i32, i32) {
    %c0_i32 = arith.constant 0 : i32
    %c0_i32_0 = arith.constant 0 : i32
    %c0_i32_1 = arith.constant 0 : i32
    return %c0_i32, %c0_i32_0 : i32, i32
  }
  func.func @transform_20(%arg0: i32) -> (i32, i32) {
    %c0_i32 = arith.constant 0 : i32
    %c0_i32_0 = arith.constant 0 : i32
    %c0_i32_1 = arith.constant 0 : i32
    return %c0_i32, %c0_i32_0 : i32, i32
  }
  func.func @transform_21(%arg0: i32) -> (i32, i32) {
    %c0_i32 = arith.constant 0 : i32
    %c0_i32_0 = arith.constant 0 : i32
    %c0_i32_1 = arith.constant 0 : i32
    return %c0_i32, %c0_i32_0 : i32, i32
  }
  func.func @transform_22(%arg0: i32) -> (i32, i32) {
    %c0_i32 = arith.constant 0 : i32
    %c0_i32_0 = arith.constant 0 : i32
    %c0_i32_1 = arith.constant 0 : i32
    return %c0_i32, %c0_i32_0 : i32, i32
  }
  func.func @transform_23(%arg0: i32) -> (i32, i32, i32) {
    %c0_i32 = arith.constant 0 : i32
    %c0_i32_0 = arith.constant 0 : i32
    %c0_i32_1 = arith.constant 0 : i32
    return %arg0, %c0_i32, %c0_i32_0 : i32, i32, i32
  }
  func.func @transform_24(%arg0: i32) -> (i32, i32, i32) {
    %c0_i32 = arith.constant 0 : i32
    %c0_i32_0 = arith.constant 0 : i32
    %c0_i32_1 = arith.constant 0 : i32
    return %arg0, %c0_i32, %c0_i32_0 : i32, i32, i32
  }
}

module attributes {stable_mosaic.version = 11 : i64} {
  func.func @_siamese_attn_kernel(%arg0: i32, %arg1: memref<2x8x128xf32, #tpu.memory_space<vmem>>, %arg2: memref<2x16x128xbf16, #tpu.memory_space<vmem>>, %arg3: memref<2x16x128xbf16, #tpu.memory_space<vmem>>, %arg4: memref<128x128xbf16, #tpu.memory_space<vmem>>, %arg5: memref<128x128xbf16, #tpu.memory_space<vmem>>, %arg6: memref<128x128xbf16, #tpu.memory_space<vmem>>, %arg7: memref<16x128xf32, #tpu.memory_space<vmem>>, %arg8: memref<1x16xf32, #tpu.memory_space<vmem>>, %arg9: memref<128x128xbf16, #tpu.memory_space<vmem>>, %arg10: memref<1x128xf32, #tpu.memory_space<vmem>>, %arg11: memref<128x128xbf16, #tpu.memory_space<vmem>>, %arg12: memref<1x128xf32, #tpu.memory_space<vmem>>, %arg13: memref<128x128xbf16, #tpu.memory_space<vmem>>, %arg14: memref<128x128xbf16, #tpu.memory_space<vmem>>, %arg15: memref<128x128xbf16, #tpu.memory_space<vmem>>, %arg16: memref<1x128xf32, #tpu.memory_space<vmem>>, %arg17: memref<128x1024xbf16, #tpu.memory_space<vmem>>, %arg18: memref<1x1024xf32, #tpu.memory_space<vmem>>, %arg19: memref<1024x128xbf16, #tpu.memory_space<vmem>>, %arg20: memref<1x128xf32, #tpu.memory_space<vmem>>, %arg21: memref<1x128xf32, #tpu.memory_space<vmem>>, %arg22: memref<1x128xf32, #tpu.memory_space<vmem>>, %arg23: memref<1x128xf32, #tpu.memory_space<vmem>>, %arg24: memref<2x8x128xf32, #tpu.memory_space<vmem>>, %arg25: memref<2x8x128xbf16, #tpu.memory_space<vmem>>) attributes {dimension_semantics = [#tpu.dimension_semantics<parallel>], iteration_bounds = array<i64: 1>, scalar_prefetch = 0 : i64, scratch_operands = 0 : i64, tpu.core_type = #tpu.core_type<tc>, window_params = [{transform_indices = @transform_0, window_bounds = array<i64: 2, 8, 128>}, {transform_indices = @transform_1, window_bounds = array<i64: 2, 16, 128>}, {transform_indices = @transform_2, window_bounds = array<i64: 2, 16, 128>}, {pipeline_mode = #tpu.pipeline_mode<synchronous>, transform_indices = @transform_3, window_bounds = array<i64: 128, 128>}, {pipeline_mode = #tpu.pipeline_mode<synchronous>, transform_indices = @transform_4, window_bounds = array<i64: 128, 128>}, {pipeline_mode = #tpu.pipeline_mode<synchronous>, transform_indices = @transform_5, window_bounds = array<i64: 128, 128>}, {pipeline_mode = #tpu.pipeline_mode<synchronous>, transform_indices = @transform_6, window_bounds = array<i64: 16, 128>}, {pipeline_mode = #tpu.pipeline_mode<synchronous>, transform_indices = @transform_7, window_bounds = array<i64: 1, 16>}, {pipeline_mode = #tpu.pipeline_mode<synchronous>, transform_indices = @transform_8, window_bounds = array<i64: 128, 128>}, {pipeline_mode = #tpu.pipeline_mode<synchronous>, transform_indices = @transform_9, window_bounds = array<i64: 1, 128>}, {pipeline_mode = #tpu.pipeline_mode<synchronous>, transform_indices = @transform_10, window_bounds = array<i64: 128, 128>}, {pipeline_mode = #tpu.pipeline_mode<synchronous>, transform_indices = @transform_11, window_bounds = array<i64: 1, 128>}, {pipeline_mode = #tpu.pipeline_mode<synchronous>, transform_indices = @transform_12, window_bounds = array<i64: 128, 128>}, {pipeline_mode = #tpu.pipeline_mode<synchronous>, transform_indices = @transform_13, window_bounds = array<i64: 128, 128>}, {pipeline_mode = #tpu.pipeline_mode<synchronous>, transform_indices = @transform_14, window_bounds = array<i64: 128, 128>}, {pipeline_mode = #tpu.pipeline_mode<synchronous>, transform_indices = @transform_15, window_bounds = array<i64: 1, 128>}, {pipeline_mode = #tpu.pipeline_mode<synchronous>, transform_indices = @transform_16, window_bounds = array<i64: 128, 1024>}, {pipeline_mode = #tpu.pipeline_mode<synchronous>, transform_indices = @transform_17, window_bounds = array<i64: 1, 1024>}, {pipeline_mode = #tpu.pipeline_mode<synchronous>, transform_indices = @transform_18, window_bounds = array<i64: 1024, 128>}, {pipeline_mode = #tpu.pipeline_mode<synchronous>, transform_indices = @transform_19, window_bounds = array<i64: 1, 128>}, {pipeline_mode = #tpu.pipeline_mode<synchronous>, transform_indices = @transform_20, window_bounds = array<i64: 1, 128>}, {pipeline_mode = #tpu.pipeline_mode<synchronous>, transform_indices = @transform_21, window_bounds = array<i64: 1, 128>}, {pipeline_mode = #tpu.pipeline_mode<synchronous>, transform_indices = @transform_22, window_bounds = array<i64: 1, 128>}, {transform_indices = @transform_23, window_bounds = array<i64: 2, 8, 128>}, {transform_indices = @transform_24, window_bounds = array<i64: 2, 8, 128>}]} {
    %c0 = arith.constant 0 : index
    %c0_0 = arith.constant 0 : index
    %c0_1 = arith.constant 0 : index
    %0 = vector.load %arg1[%c0, %c0_0, %c0_1] : memref<2x8x128xf32, #tpu.memory_space<vmem>>, vector<2x8x128xf32>
    %1 = vector.shape_cast %0 : vector<2x8x128xf32> to vector<16x128xf32>
    %2 = arith.truncf %1 : vector<16x128xf32> to vector<16x128xbf16>
    %c0_2 = arith.constant 0 : index
    %c0_3 = arith.constant 0 : index
    %c0_4 = arith.constant 0 : index
    %3 = vector.load %arg2[%c0_2, %c0_3, %c0_4] : memref<2x16x128xbf16, #tpu.memory_space<vmem>>, vector<2x16x128xbf16>
    %4 = vector.shape_cast %3 : vector<2x16x128xbf16> to vector<32x128xbf16>
    %c0_5 = arith.constant 0 : index
    %c0_6 = arith.constant 0 : index
    %c0_7 = arith.constant 0 : index
    %5 = vector.load %arg3[%c0_5, %c0_6, %c0_7] : memref<2x16x128xbf16, #tpu.memory_space<vmem>>, vector<2x16x128xbf16>
    %6 = vector.shape_cast %5 : vector<2x16x128xbf16> to vector<32x128xbf16>
    %c0_8 = arith.constant 0 : index
    %c0_9 = arith.constant 0 : index
    %7 = vector.load %arg4[%c0_8, %c0_9] : memref<128x128xbf16, #tpu.memory_space<vmem>>, vector<128x128xbf16>
    %cst = arith.constant dense<0.000000e+00> : vector<16x128xf32>
    %8 = tpu.matmul %2, %7, %cst {dimension_numbers = #tpu.dot_dimension_numbers<[1], [0], [0], [1], [0, 0, 1, 1], [], []>} : vector<16x128xbf16>, vector<128x128xbf16>, vector<16x128xf32> -> vector<16x128xf32>
    %c0_10 = arith.constant 0 : index
    %c0_11 = arith.constant 0 : index
    %9 = vector.load %arg5[%c0_10, %c0_11] : memref<128x128xbf16, #tpu.memory_space<vmem>>, vector<128x128xbf16>
    %cst_12 = arith.constant dense<0.000000e+00> : vector<32x128xf32>
    %10 = tpu.matmul %4, %9, %cst_12 {dimension_numbers = #tpu.dot_dimension_numbers<[1], [0], [0], [1], [0, 0, 1, 1], [], []>} : vector<32x128xbf16>, vector<128x128xbf16>, vector<32x128xf32> -> vector<32x128xf32>
    %c0_13 = arith.constant 0 : index
    %c0_14 = arith.constant 0 : index
    %11 = vector.load %arg6[%c0_13, %c0_14] : memref<128x128xbf16, #tpu.memory_space<vmem>>, vector<128x128xbf16>
    %cst_15 = arith.constant dense<0.000000e+00> : vector<32x128xf32>
    %12 = tpu.matmul %6, %11, %cst_15 {dimension_numbers = #tpu.dot_dimension_numbers<[1], [0], [0], [1], [0, 0, 1, 1], [], []>} : vector<32x128xbf16>, vector<128x128xbf16>, vector<32x128xf32> -> vector<32x128xf32>
    %13 = vector.shape_cast %10 : vector<32x128xf32> to vector<2x16x128xf32>
    %c0_16 = arith.constant 0 : index
    %c0_17 = arith.constant 0 : index
    %14 = vector.load %arg7[%c0_16, %c0_17] : memref<16x128xf32, #tpu.memory_space<vmem>>, vector<16x128xf32>
    %15 = vector.shape_cast %14 : vector<16x128xf32> to vector<1x16x128xf32>
    %16 = vector.broadcast %15 : vector<1x16x128xf32> to vector<2x16x128xf32>
    %17 = arith.addf %13, %16 : vector<2x16x128xf32>
    %18 = vector.shape_cast %12 : vector<32x128xf32> to vector<2x16x128xf32>
    %19 = vector.shape_cast %8 : vector<16x128xf32> to vector<2x8x128xf32>
    %20 = arith.truncf %19 : vector<2x8x128xf32> to vector<2x8x128xbf16>
    %21 = arith.truncf %17 : vector<2x16x128xf32> to vector<2x16x128xbf16>
    "tpu.trace_start"() <{level = 10 : i32, message = "bqd,bkd->bqk"}> : () -> ()
    %cst_18 = arith.constant dense<0.000000e+00> : vector<2x8x16xf32>
    %22 = tpu.matmul %20, %21, %cst_18 {dimension_numbers = #tpu.dot_dimension_numbers<[2], [2], [1], [1], [0, 0, 0, 1, 1, 1], [0], [0]>} : vector<2x8x128xbf16>, vector<2x16x128xbf16>, vector<2x8x16xf32> -> vector<2x8x16xf32>
    "tpu.trace_stop"() : () -> ()
    %c0_19 = arith.constant 0 : index
    %c0_20 = arith.constant 0 : index
    %23 = vector.load %arg8[%c0_19, %c0_20] : memref<1x16xf32, #tpu.memory_space<vmem>>, vector<1x16xf32>
    %24 = vector.shape_cast %23 : vector<1x16xf32> to vector<1x1x16xf32>
    %25 = vector.broadcast %24 : vector<1x1x16xf32> to vector<2x8x16xf32>
    %26 = arith.addf %22, %25 : vector<2x8x16xf32>
    %cst_21 = arith.constant dense<0xFF800000> : vector<2x8xf32>
    %27 = vector.multi_reduction <maximumf>, %26, %cst_21 [2] : vector<2x8x16xf32> to vector<2x8xf32>
    %28 = vector.shape_cast %27 : vector<2x8xf32> to vector<2x8x1xf32>
    %29 = vector.broadcast %28 : vector<2x8x1xf32> to vector<2x8x16xf32>
    %30 = arith.subf %26, %29 : vector<2x8x16xf32>
    %31 = math.exp %30 : vector<2x8x16xf32>
    %cst_22 = arith.constant dense<0.000000e+00> : vector<2x8xf32>
    %32 = vector.multi_reduction <add>, %31, %cst_22 [2] : vector<2x8x16xf32> to vector<2x8xf32>
    %33 = vector.shape_cast %32 : vector<2x8xf32> to vector<2x8x1xf32>
    %34 = tpu.reciprocal %33 {approx = true} : vector<2x8x1xf32> -> vector<2x8x1xf32>
    %35 = vector.broadcast %34 : vector<2x8x1xf32> to vector<2x8x16xf32>
    %36 = arith.mulf %31, %35 : vector<2x8x16xf32>
    %37 = arith.truncf %36 : vector<2x8x16xf32> to vector<2x8x16xbf16>
    %38 = arith.truncf %18 : vector<2x16x128xf32> to vector<2x16x128xbf16>
    "tpu.trace_start"() <{level = 10 : i32, message = "bqk,bkd->bqd"}> : () -> ()
    %cst_23 = arith.constant dense<0.000000e+00> : vector<2x8x128xf32>
    %39 = tpu.matmul %37, %38, %cst_23 {dimension_numbers = #tpu.dot_dimension_numbers<[2], [1], [1], [2], [0, 0, 0, 1, 1, 2], [0], [0]>} : vector<2x8x16xbf16>, vector<2x16x128xbf16>, vector<2x8x128xf32> -> vector<2x8x128xf32>
    "tpu.trace_stop"() : () -> ()
    %40 = vector.shape_cast %39 : vector<2x8x128xf32> to vector<16x128xf32>
    %41 = arith.mulf %40, %1 : vector<16x128xf32>
    %42 = arith.truncf %41 : vector<16x128xf32> to vector<16x128xbf16>
    %c0_24 = arith.constant 0 : index
    %c0_25 = arith.constant 0 : index
    %43 = vector.load %arg9[%c0_24, %c0_25] : memref<128x128xbf16, #tpu.memory_space<vmem>>, vector<128x128xbf16>
    %cst_26 = arith.constant dense<0.000000e+00> : vector<16x128xf32>
    %44 = tpu.matmul %42, %43, %cst_26 {dimension_numbers = #tpu.dot_dimension_numbers<[1], [0], [0], [1], [0, 0, 1, 1], [], []>} : vector<16x128xbf16>, vector<128x128xbf16>, vector<16x128xf32> -> vector<16x128xf32>
    %c0_27 = arith.constant 0 : index
    %c0_28 = arith.constant 0 : index
    %45 = vector.load %arg10[%c0_27, %c0_28] : memref<1x128xf32, #tpu.memory_space<vmem>>, vector<1x128xf32>
    %46 = vector.broadcast %45 : vector<1x128xf32> to vector<16x128xf32>
    %47 = arith.addf %44, %46 : vector<16x128xf32>
    %cst_29 = arith.constant 0.000000e+00 : f32
    %48 = vector.broadcast %cst_29 : f32 to vector<16x128xf32>
    %49 = arith.maximumf %47, %48 : vector<16x128xf32>
    %50 = arith.subf %1, %40 : vector<16x128xf32>
    %51 = arith.truncf %50 : vector<16x128xf32> to vector<16x128xbf16>
    %c0_30 = arith.constant 0 : index
    %c0_31 = arith.constant 0 : index
    %52 = vector.load %arg11[%c0_30, %c0_31] : memref<128x128xbf16, #tpu.memory_space<vmem>>, vector<128x128xbf16>
    %cst_32 = arith.constant dense<0.000000e+00> : vector<16x128xf32>
    %53 = tpu.matmul %51, %52, %cst_32 {dimension_numbers = #tpu.dot_dimension_numbers<[1], [0], [0], [1], [0, 0, 1, 1], [], []>} : vector<16x128xbf16>, vector<128x128xbf16>, vector<16x128xf32> -> vector<16x128xf32>
    %c0_33 = arith.constant 0 : index
    %c0_34 = arith.constant 0 : index
    %54 = vector.load %arg12[%c0_33, %c0_34] : memref<1x128xf32, #tpu.memory_space<vmem>>, vector<1x128xf32>
    %55 = vector.broadcast %54 : vector<1x128xf32> to vector<16x128xf32>
    %56 = arith.addf %53, %55 : vector<16x128xf32>
    %cst_35 = arith.constant 0.000000e+00 : f32
    %57 = vector.broadcast %cst_35 : f32 to vector<16x128xf32>
    %58 = arith.maximumf %56, %57 : vector<16x128xf32>
    %59 = arith.truncf %49 : vector<16x128xf32> to vector<16x128xbf16>
    %c0_36 = arith.constant 0 : index
    %c0_37 = arith.constant 0 : index
    %60 = vector.load %arg13[%c0_36, %c0_37] : memref<128x128xbf16, #tpu.memory_space<vmem>>, vector<128x128xbf16>
    %cst_38 = arith.constant dense<0.000000e+00> : vector<16x128xf32>
    %61 = tpu.matmul %59, %60, %cst_38 {dimension_numbers = #tpu.dot_dimension_numbers<[1], [0], [0], [1], [0, 0, 1, 1], [], []>} : vector<16x128xbf16>, vector<128x128xbf16>, vector<16x128xf32> -> vector<16x128xf32>
    %62 = arith.truncf %58 : vector<16x128xf32> to vector<16x128xbf16>
    %c0_39 = arith.constant 0 : index
    %c0_40 = arith.constant 0 : index
    %63 = vector.load %arg14[%c0_39, %c0_40] : memref<128x128xbf16, #tpu.memory_space<vmem>>, vector<128x128xbf16>
    %cst_41 = arith.constant dense<0.000000e+00> : vector<16x128xf32>
    %64 = tpu.matmul %62, %63, %cst_41 {dimension_numbers = #tpu.dot_dimension_numbers<[1], [0], [0], [1], [0, 0, 1, 1], [], []>} : vector<16x128xbf16>, vector<128x128xbf16>, vector<16x128xf32> -> vector<16x128xf32>
    %65 = arith.addf %61, %64 : vector<16x128xf32>
    %66 = arith.truncf %1 : vector<16x128xf32> to vector<16x128xbf16>
    %c0_42 = arith.constant 0 : index
    %c0_43 = arith.constant 0 : index
    %67 = vector.load %arg15[%c0_42, %c0_43] : memref<128x128xbf16, #tpu.memory_space<vmem>>, vector<128x128xbf16>
    %cst_44 = arith.constant dense<0.000000e+00> : vector<16x128xf32>
    %68 = tpu.matmul %66, %67, %cst_44 {dimension_numbers = #tpu.dot_dimension_numbers<[1], [0], [0], [1], [0, 0, 1, 1], [], []>} : vector<16x128xbf16>, vector<128x128xbf16>, vector<16x128xf32> -> vector<16x128xf32>
    %69 = arith.addf %65, %68 : vector<16x128xf32>
    %c0_45 = arith.constant 0 : index
    %c0_46 = arith.constant 0 : index
    %70 = vector.load %arg16[%c0_45, %c0_46] : memref<1x128xf32, #tpu.memory_space<vmem>>, vector<1x128xf32>
    %71 = vector.broadcast %70 : vector<1x128xf32> to vector<16x128xf32>
    %72 = arith.addf %69, %71 : vector<16x128xf32>
    %73 = arith.truncf %72 : vector<16x128xf32> to vector<16x128xbf16>
    %c0_47 = arith.constant 0 : index
    %c0_48 = arith.constant 0 : index
    %74 = vector.load %arg17[%c0_47, %c0_48] : memref<128x1024xbf16, #tpu.memory_space<vmem>>, vector<128x1024xbf16>
    %cst_49 = arith.constant dense<0.000000e+00> : vector<16x1024xf32>
    %75 = tpu.matmul %73, %74, %cst_49 {dimension_numbers = #tpu.dot_dimension_numbers<[1], [0], [0], [1], [0, 0, 1, 1], [], []>} : vector<16x128xbf16>, vector<128x1024xbf16>, vector<16x1024xf32> -> vector<16x1024xf32>
    %c0_50 = arith.constant 0 : index
    %c0_51 = arith.constant 0 : index
    %76 = vector.load %arg18[%c0_50, %c0_51] : memref<1x1024xf32, #tpu.memory_space<vmem>>, vector<1x1024xf32>
    %77 = vector.broadcast %76 : vector<1x1024xf32> to vector<16x1024xf32>
    %78 = arith.addf %75, %77 : vector<16x1024xf32>
    %cst_52 = arith.constant 0.000000e+00 : f32
    %79 = vector.broadcast %cst_52 : f32 to vector<16x1024xf32>
    %80 = arith.maximumf %78, %79 : vector<16x1024xf32>
    %81 = arith.truncf %80 : vector<16x1024xf32> to vector<16x1024xbf16>
    %c0_53 = arith.constant 0 : index
    %c0_54 = arith.constant 0 : index
    %82 = vector.load %arg19[%c0_53, %c0_54] : memref<1024x128xbf16, #tpu.memory_space<vmem>>, vector<1024x128xbf16>
    %cst_55 = arith.constant dense<0.000000e+00> : vector<16x128xf32>
    %83 = tpu.matmul %81, %82, %cst_55 {dimension_numbers = #tpu.dot_dimension_numbers<[1], [0], [0], [1], [0, 0, 1, 1], [], []>} : vector<16x1024xbf16>, vector<1024x128xbf16>, vector<16x128xf32> -> vector<16x128xf32>
    %c0_56 = arith.constant 0 : index
    %c0_57 = arith.constant 0 : index
    %84 = vector.load %arg20[%c0_56, %c0_57] : memref<1x128xf32, #tpu.memory_space<vmem>>, vector<1x128xf32>
    %85 = vector.broadcast %84 : vector<1x128xf32> to vector<16x128xf32>
    %86 = arith.addf %83, %85 : vector<16x128xf32>
    %87 = arith.addf %72, %86 : vector<16x128xf32>
    %cst_58 = arith.constant dense<0.000000e+00> : vector<16xf32>
    %88 = vector.multi_reduction <add>, %87, %cst_58 [1] : vector<16x128xf32> to vector<16xf32>
    %89 = vector.shape_cast %88 : vector<16xf32> to vector<16x1xf32>
    %cst_59 = arith.constant 3.125000e-02 : f32
    %90 = vector.broadcast %cst_59 : f32 to vector<16x1xf32>
    %91 = arith.mulf %89, %90 : vector<16x1xf32>
    %92 = vector.broadcast %91 : vector<16x1xf32> to vector<16x128xf32>
    %93 = arith.subf %87, %92 : vector<16x128xf32>
    %c0_60 = arith.constant 0 : index
    %c0_61 = arith.constant 0 : index
    %94 = vector.load %arg23[%c0_60, %c0_61] : memref<1x128xf32, #tpu.memory_space<vmem>>, vector<1x128xf32>
    %95 = vector.broadcast %94 : vector<1x128xf32> to vector<16x128xf32>
    %96 = arith.mulf %93, %95 : vector<16x128xf32>
    %97 = arith.mulf %96, %96 : vector<16x128xf32>
    %cst_62 = arith.constant dense<0.000000e+00> : vector<16xf32>
    %98 = vector.multi_reduction <add>, %97, %cst_62 [1] : vector<16x128xf32> to vector<16xf32>
    %99 = vector.shape_cast %98 : vector<16xf32> to vector<16x1xf32>
    %cst_63 = arith.constant 3.125000e-02 : f32
    %100 = vector.broadcast %cst_63 : f32 to vector<16x1xf32>
    %101 = arith.mulf %99, %100 : vector<16x1xf32>
    %cst_64 = arith.constant 9.99999974E-6 : f32
    %102 = vector.broadcast %cst_64 : f32 to vector<16x1xf32>
    %103 = arith.addf %101, %102 : vector<16x1xf32>
    %104 = math.rsqrt %103 : vector<16x1xf32>
    %105 = vector.broadcast %104 : vector<16x1xf32> to vector<16x128xf32>
    %106 = arith.mulf %96, %105 : vector<16x128xf32>
    %c0_65 = arith.constant 0 : index
    %c0_66 = arith.constant 0 : index
    %107 = vector.load %arg21[%c0_65, %c0_66] : memref<1x128xf32, #tpu.memory_space<vmem>>, vector<1x128xf32>
    %108 = vector.broadcast %107 : vector<1x128xf32> to vector<16x128xf32>
    %109 = arith.mulf %106, %108 : vector<16x128xf32>
    %c0_67 = arith.constant 0 : index
    %c0_68 = arith.constant 0 : index
    %110 = vector.load %arg22[%c0_67, %c0_68] : memref<1x128xf32, #tpu.memory_space<vmem>>, vector<1x128xf32>
    %111 = vector.broadcast %110 : vector<1x128xf32> to vector<16x128xf32>
    %112 = arith.addf %109, %111 : vector<16x128xf32>
    %113 = vector.shape_cast %112 : vector<16x128xf32> to vector<2x8x128xf32>
    %c0_69 = arith.constant 0 : index
    %c0_70 = arith.constant 0 : index
    %c0_71 = arith.constant 0 : index
    %114 = vector.load %arg24[%c0_69, %c0_70, %c0_71] : memref<2x8x128xf32, #tpu.memory_space<vmem>>, vector<2x8x128xf32>
    tpu.vector_store %arg24[%c0_69, %c0_70, %c0_71], %113 {strides = array<i32>} : memref<2x8x128xf32, #tpu.memory_space<vmem>>, vector<2x8x128xf32>,
    %115 = arith.truncf %36 : vector<2x8x16xf32> to vector<2x8x16xbf16>
    %cst_72 = arith.constant 0.000000e+00 : bf16
    %116 = vector.broadcast %cst_72 : bf16 to vector<2x8x128xbf16>
    %c0_73 = arith.constant 0 : index
    %c0_74 = arith.constant 0 : index
    %c0_75 = arith.constant 0 : index
    %117 = vector.load %arg25[%c0_73, %c0_74, %c0_75] : memref<2x8x128xbf16, #tpu.memory_space<vmem>>, vector<2x8x128xbf16>
    tpu.vector_store %arg25[%c0_73, %c0_74, %c0_75], %116 {strides = array<i32>} : memref<2x8x128xbf16, #tpu.memory_space<vmem>>, vector<2x8x128xbf16>,
    %c0_76 = arith.constant 0 : index
    %c0_77 = arith.constant 0 : index
    %c0_78 = arith.constant 0 : index
    %118 = vector.load %arg25[%c0_76, %c0_77, %c0_78] : memref<2x8x128xbf16, #tpu.memory_space<vmem>>, vector<2x8x16xbf16>
    tpu.vector_store %arg25[%c0_76, %c0_77, %c0_78], %115 {strides = array<i32>} : memref<2x8x128xbf16, #tpu.memory_space<vmem>>, vector<2x8x16xbf16>,
    return
  }
  func.func @transform_0(%arg0: i32) -> (i32, i32, i32) {
    %c0_i32 = arith.constant 0 : i32
    %c0_i32_0 = arith.constant 0 : i32
    %c0_i32_1 = arith.constant 0 : i32
    return %arg0, %c0_i32, %c0_i32_0 : i32, i32, i32
  }
  func.func @transform_1(%arg0: i32) -> (i32, i32, i32) {
    %c0_i32 = arith.constant 0 : i32
    %c0_i32_0 = arith.constant 0 : i32
    %c0_i32_1 = arith.constant 0 : i32
    return %arg0, %c0_i32, %c0_i32_0 : i32, i32, i32
  }
  func.func @transform_2(%arg0: i32) -> (i32, i32, i32) {
    %c0_i32 = arith.constant 0 : i32
    %c0_i32_0 = arith.constant 0 : i32
    %c0_i32_1 = arith.constant 0 : i32
    return %arg0, %c0_i32, %c0_i32_0 : i32, i32, i32
  }
  func.func @transform_3(%arg0: i32) -> (i32, i32) {
    %c0_i32 = arith.constant 0 : i32
    %c0_i32_0 = arith.constant 0 : i32
    %c0_i32_1 = arith.constant 0 : i32
    return %c0_i32, %c0_i32_0 : i32, i32
  }
  func.func @transform_4(%arg0: i32) -> (i32, i32) {
    %c0_i32 = arith.constant 0 : i32
    %c0_i32_0 = arith.constant 0 : i32
    %c0_i32_1 = arith.constant 0 : i32
    return %c0_i32, %c0_i32_0 : i32, i32
  }
  func.func @transform_5(%arg0: i32) -> (i32, i32) {
    %c0_i32 = arith.constant 0 : i32
    %c0_i32_0 = arith.constant 0 : i32
    %c0_i32_1 = arith.constant 0 : i32
    return %c0_i32, %c0_i32_0 : i32, i32
  }
  func.func @transform_6(%arg0: i32) -> (i32, i32) {
    %c0_i32 = arith.constant 0 : i32
    %c0_i32_0 = arith.constant 0 : i32
    %c0_i32_1 = arith.constant 0 : i32
    return %c0_i32, %c0_i32_0 : i32, i32
  }
  func.func @transform_7(%arg0: i32) -> (i32, i32) {
    %c0_i32 = arith.constant 0 : i32
    %c0_i32_0 = arith.constant 0 : i32
    %c0_i32_1 = arith.constant 0 : i32
    return %c0_i32, %c0_i32_0 : i32, i32
  }
  func.func @transform_8(%arg0: i32) -> (i32, i32) {
    %c0_i32 = arith.constant 0 : i32
    %c0_i32_0 = arith.constant 0 : i32
    %c0_i32_1 = arith.constant 0 : i32
    return %c0_i32, %c0_i32_0 : i32, i32
  }
  func.func @transform_9(%arg0: i32) -> (i32, i32) {
    %c0_i32 = arith.constant 0 : i32
    %c0_i32_0 = arith.constant 0 : i32
    %c0_i32_1 = arith.constant 0 : i32
    return %c0_i32, %c0_i32_0 : i32, i32
  }
  func.func @transform_10(%arg0: i32) -> (i32, i32) {
    %c0_i32 = arith.constant 0 : i32
    %c0_i32_0 = arith.constant 0 : i32
    %c0_i32_1 = arith.constant 0 : i32
    return %c0_i32, %c0_i32_0 : i32, i32
  }
  func.func @transform_11(%arg0: i32) -> (i32, i32) {
    %c0_i32 = arith.constant 0 : i32
    %c0_i32_0 = arith.constant 0 : i32
    %c0_i32_1 = arith.constant 0 : i32
    return %c0_i32, %c0_i32_0 : i32, i32
  }
  func.func @transform_12(%arg0: i32) -> (i32, i32) {
    %c0_i32 = arith.constant 0 : i32
    %c0_i32_0 = arith.constant 0 : i32
    %c0_i32_1 = arith.constant 0 : i32
    return %c0_i32, %c0_i32_0 : i32, i32
  }
  func.func @transform_13(%arg0: i32) -> (i32, i32) {
    %c0_i32 = arith.constant 0 : i32
    %c0_i32_0 = arith.constant 0 : i32
    %c0_i32_1 = arith.constant 0 : i32
    return %c0_i32, %c0_i32_0 : i32, i32
  }
  func.func @transform_14(%arg0: i32) -> (i32, i32) {
    %c0_i32 = arith.constant 0 : i32
    %c0_i32_0 = arith.constant 0 : i32
    %c0_i32_1 = arith.constant 0 : i32
    return %c0_i32, %c0_i32_0 : i32, i32
  }
  func.func @transform_15(%arg0: i32) -> (i32, i32) {
    %c0_i32 = arith.constant 0 : i32
    %c0_i32_0 = arith.constant 0 : i32
    %c0_i32_1 = arith.constant 0 : i32
    return %c0_i32, %c0_i32_0 : i32, i32
  }
  func.func @transform_16(%arg0: i32) -> (i32, i32) {
    %c0_i32 = arith.constant 0 : i32
    %c0_i32_0 = arith.constant 0 : i32
    %c0_i32_1 = arith.constant 0 : i32
    return %c0_i32, %c0_i32_0 : i32, i32
  }
  func.func @transform_17(%arg0: i32) -> (i32, i32) {
    %c0_i32 = arith.constant 0 : i32
    %c0_i32_0 = arith.constant 0 : i32
    %c0_i32_1 = arith.constant 0 : i32
    return %c0_i32, %c0_i32_0 : i32, i32
  }
  func.func @transform_18(%arg0: i32) -> (i32, i32) {
    %c0_i32 = arith.constant 0 : i32
    %c0_i32_0 = arith.constant 0 : i32
    %c0_i32_1 = arith.constant 0 : i32
    return %c0_i32, %c0_i32_0 : i32, i32
  }
  func.func @transform_19(%arg0: i32) -> (i32, i32) {
    %c0_i32 = arith.constant 0 : i32
    %c0_i32_0 = arith.constant 0 : i32
    %c0_i32_1 = arith.constant 0 : i32
    return %c0_i32, %c0_i32_0 : i32, i32
  }
  func.func @transform_20(%arg0: i32) -> (i32, i32) {
    %c0_i32 = arith.constant 0 : i32
    %c0_i32_0 = arith.constant 0 : i32
    %c0_i32_1 = arith.constant 0 : i32
    return %c0_i32, %c0_i32_0 : i32, i32
  }
  func.func @transform_21(%arg0: i32) -> (i32, i32) {
    %c0_i32 = arith.constant 0 : i32
    %c0_i32_0 = arith.constant 0 : i32
    %c0_i32_1 = arith.constant 0 : i32
    return %c0_i32, %c0_i32_0 : i32, i32
  }
  func.func @transform_22(%arg0: i32) -> (i32, i32) {
    %c0_i32 = arith.constant 0 : i32
    %c0_i32_0 = arith.constant 0 : i32
    %c0_i32_1 = arith.constant 0 : i32
    return %c0_i32, %c0_i32_0 : i32, i32
  }
  func.func @transform_23(%arg0: i32) -> (i32, i32, i32) {
    %c0_i32 = arith.constant 0 : i32
    %c0_i32_0 = arith.constant 0 : i32
    %c0_i32_1 = arith.constant 0 : i32
    return %arg0, %c0_i32, %c0_i32_0 : i32, i32, i32
  }
  func.func @transform_24(%arg0: i32) -> (i32, i32, i32) {
    %c0_i32 = arith.constant 0 : i32
    %c0_i32_0 = arith.constant 0 : i32
    %c0_i32_1 = arith.constant 0 : i32
    return %arg0, %c0_i32, %c0_i32_0 : i32, i32, i32
  }
}

</mosaic_0001>

<llo_original>
// kernel: tpu_custom_call.1
$region0: #{tpu_custom_call.1}
  #allocation0 [shape = 'u32[]', space=smem, size = 0x4, offset = 0x4, fixed_abs, tag = 'smem constant byte address 0x4 - core index']
  #allocation1 [shape = 'u32[144,128]{1,0:T(1,128)}', space=vmem, size = 0x12000, scoped, tag = 'internal scratch']
  %s0 = inlined_call_operand.hbm [shape: f32[2,8,128], index: 0, kind: input, shape index: {}]
  %s1 = inlined_call_operand.hbm [shape: bf16[2,16,128], index: 1, kind: input, shape index: {}]
  %s2 = inlined_call_operand.hbm [shape: bf16[2,16,128], index: 2, kind: input, shape index: {}]
  %s3 = inlined_call_operand.hbm [shape: bf16[128,128], index: 3, kind: input, shape index: {}]
  %s4 = inlined_call_operand.hbm [shape: bf16[128,128], index: 4, kind: input, shape index: {}]
  %s5 = inlined_call_operand.hbm [shape: bf16[128,128], index: 5, kind: input, shape index: {}]
  %s6 = inlined_call_operand.vmem [shape: f32[16,128], index: 6, kind: input, shape index: {}]
  %s7 = inlined_call_operand.vmem [shape: f32[1,16], index: 7, kind: input, shape index: {}]
  %s8 = inlined_call_operand.hbm [shape: bf16[128,128], index: 8, kind: input, shape index: {}]
  %s9 = inlined_call_operand.vmem [shape: f32[1,128], index: 9, kind: input, shape index: {}]
  %s10 = inlined_call_operand.hbm [shape: bf16[128,128], index: 10, kind: input, shape index: {}]
  %s11 = inlined_call_operand.vmem [shape: f32[1,128], index: 11, kind: input, shape index: {}]
  %s12 = inlined_call_operand.hbm [shape: bf16[128,128], index: 12, kind: input, shape index: {}]
  %s13 = inlined_call_operand.hbm [shape: bf16[128,128], index: 13, kind: input, shape index: {}]
  %s14 = inlined_call_operand.hbm [shape: bf16[128,128], index: 14, kind: input, shape index: {}]
  %s15 = inlined_call_operand.vmem [shape: f32[1,128], index: 15, kind: input, shape index: {}]
  %s16 = inlined_call_operand.hbm [shape: bf16[128,1024], index: 16, kind: input, shape index: {}]
  %s17 = inlined_call_operand.vmem [shape: f32[1,1024], index: 17, kind: input, shape index: {}]
  %s18 = inlined_call_operand.hbm [shape: bf16[1024,128], index: 18, kind: input, shape index: {}]
  %s19 = inlined_call_operand.vmem [shape: f32[1,128], index: 19, kind: input, shape index: {}]
  %s20 = inlined_call_operand.vmem [shape: f32[1,128], index: 20, kind: input, shape index: {}]
  %s21 = inlined_call_operand.vmem [shape: f32[1,128], index: 21, kind: input, shape index: {}]
  %s22 = inlined_call_operand.vmem [shape: f32[1,128], index: 22, kind: input, shape index: {}]
  %s23 = inlined_call_operand.hbm [shape: f32[2,8,128], index: 23, kind: output, shape index: {0}]
  %s24 = inlined_call_operand.hbm [shape: bf16[2,8,128], index: 24, kind: output, shape index: {1}]
  %25 = xla_tuple %s23, %s24
  %s26 = sld [smem:[#allocation0]]
  $region162: #{tpu_custom_call.1} parent=0
    _
  %s28 = ssub.s32 1, %s26
  %s29 = scalar_select 0, %s28, %s26
  $region1: #{tpu_custom_call.1} parent=0
    #allocation2 [shape = 'u8[8192]{0}', space=vmem, size = 0x2000, scoped, tag = 'input window, operand 0, single buffered']
    #allocation3 [shape = 's32[1]{0}', space=sflag, size = 0x4, scoped, tag = 'scoped memory for tpu_custom_call.1']
    #allocation4 [shape = 's32[1]{0}', space=sflag, size = 0x4, scoped, tag = 'scoped memory for tpu_custom_call.1']
    #allocation5 [shape = 'u8[8192]{0}', space=vmem, size = 0x2000, scoped, tag = 'input window, operand 1, single buffered']
    #allocation6 [shape = 's32[1]{0}', space=sflag, size = 0x4, scoped, tag = 'scoped memory for tpu_custom_call.1']
    #allocation7 [shape = 'u8[8192]{0}', space=vmem, size = 0x2000, scoped, tag = 'input window, operand 2, single buffered']
    #allocation8 [shape = 'u8[32768]{0}', space=vmem, size = 0x8000, scoped, tag = 'input window, operand 3, single buffered']
    #allocation9 [shape = 's32[1]{0}', space=sflag, size = 0x4, scoped, tag = 'scoped memory for tpu_custom_call.1']
    #allocation10 [shape = 'u8[32768]{0}', space=vmem, size = 0x8000, scoped, tag = 'input window, operand 4, single buffered']
    #allocation11 [shape = 'u8[32768]{0}', space=vmem, size = 0x8000, scoped, tag = 'input window, operand 5, single buffered']
    #allocation12 [shape = 's32[1]{0}', space=sflag, size = 0x4, scoped, tag = 'scoped memory for tpu_custom_call.1']
    #allocation13 [shape = 'u8[32768]{0}', space=vmem, size = 0x8000, scoped, tag = 'input window, operand 8, single buffered']
    #allocation14 [shape = 'u8[32768]{0}', space=vmem, size = 0x8000, scoped, tag = 'input window, operand 10, single buffered']
    #allocation15 [shape = 's32[1]{0}', space=sflag, size = 0x4, scoped, tag = 'scoped memory for tpu_custom_call.1']
    #allocation16 [shape = 'u8[32768]{0}', space=vmem, size = 0x8000, scoped, tag = 'input window, operand 12, single buffered']
    #allocation17 [shape = 'u8[32768]{0}', space=vmem, size = 0x8000, scoped, tag = 'input window, operand 13, single buffered']
    #allocation18 [shape = 's32[1]{0}', space=sflag, size = 0x4, scoped, tag = 'scoped memory for tpu_custom_call.1']
    #allocation19 [shape = 'u8[32768]{0}', space=vmem, size = 0x8000, scoped, tag = 'input window, operand 14, single buffered']
    #allocation20 [shape = 'u8[262144]{0}', space=vmem, size = 0x40000, scoped, tag = 'input window, operand 16, single buffered']
    #allocation21 [shape = 's32[1]{0}', space=sflag, size = 0x4, scoped, tag = 'scoped memory for tpu_custom_call.1']
    #allocation22 [shape = 'u8[262144]{0}', space=vmem, size = 0x40000, scoped, tag = 'input window, operand 18, single buffered']
    #allocation23 [shape = 'u8[8192]{0}', space=vmem, size = 0x2000, scoped, tag = 'output window, operand 0, single buffered']
    #allocation24 [shape = 'u8[4096]{0}', space=vmem, size = 0x1000, scoped, tag = 'output window, operand 1, single buffered']
    #allocation25 [shape = 's32[1]{0}', space=sflag, size = 0x4, scoped, tag = 'scoped memory for tpu_custom_call.1']
    %30 = vsyncpa [#allocation3], 0
    %31 = vsyncpa [#allocation6], 0
    %32 = vsyncpa [#allocation9], 0
    %33 = vsyncpa [#allocation12], 0
    %34 = vsyncpa [#allocation15], 0
    %35 = vsyncpa [#allocation18], 0
    %36 = vsyncpa [#allocation21], 0
    %37 = vsyncpa [#allocation4], 0
    %38 = vsyncpa [#allocation25], 0
    // Predicated region
    $region2: #{tpu_custom_call.1} parent=1 // pred_check
      _
    $region3: #{tpu_custom_call.1} parent=1 // pred_check_branch
      %40 = sbr.rel (0) target = $region5
    $region4: #{tpu_custom_call.1} parent=1 // pred_region
      %s42 = ssub.s32 256, 256
      %43 = vsyncadd [#allocation3], %s42
      %s44 = sshll.u32 [#allocation2], 4
      %s45 = int_to_ptr.vmem [resolvable:$true] %s44
      %50 = dma.hbm_to_vmem [thread:$0]  %s0, 256, %s45, [#allocation3], 128, 128, 8
    $region5: #{tpu_custom_call.1} parent=1 // pred_fallthru
      _
    // Predicated region
    $region6: #{tpu_custom_call.1} parent=1 // pred_check
      _
    $region7: #{tpu_custom_call.1} parent=1 // pred_check_branch
      %52 = sbr.rel (0) target = $region9
    $region8: #{tpu_custom_call.1} parent=1 // pred_region
      %s54 = ssub.s32 256, 256
      %55 = vsyncadd [#allocation6], %s54
      %s56 = sshll.u32 [#allocation5], 4
      %s57 = int_to_ptr.vmem [resolvable:$true] %s56
      %62 = dma.hbm_to_vmem [thread:$0]  %s1, 256, %s57, [#allocation6], 64, 64, 4
    $region9: #{tpu_custom_call.1} parent=1 // pred_fallthru
      _
    // Predicated region
    $region10: #{tpu_custom_call.1} parent=1 // pred_check
      _
    $region11: #{tpu_custom_call.1} parent=1 // pred_check_branch
      %64 = sbr.rel (0) target = $region13
    $region12: #{tpu_custom_call.1} parent=1 // pred_region
      %s66 = ssub.s32 256, 256
      %67 = vsyncadd [#allocation6], %s66
      %s68 = sshll.u32 [#allocation7], 4
      %s69 = int_to_ptr.vmem [resolvable:$true] %s68
      %74 = dma.hbm_to_vmem [thread:$0]  %s2, 256, %s69, [#allocation6], 64, 64, 4
    $region13: #{tpu_custom_call.1} parent=1 // pred_fallthru
      _
    // Predicated region
    $region14: #{tpu_custom_call.1} parent=1 // pred_check
      _
    $region15: #{tpu_custom_call.1} parent=1 // pred_check_branch
      %76 = sbr.rel (0) target = $region17
    $region16: #{tpu_custom_call.1} parent=1 // pred_region
      %s78 = ssub.s32 1024, 1024
      %79 = vsyncadd [#allocation9], %s78
      %s80 = sshll.u32 [#allocation8], 4
      %s81 = int_to_ptr.vmem [resolvable:$true] %s80
      %86 = dma.hbm_to_vmem [thread:$0]  %s3, 1024, %s81, [#allocation9], 64, 64, 4
    $region17: #{tpu_custom_call.1} parent=1 // pred_fallthru
      _
    // Predicated region
    $region18: #{tpu_custom_call.1} parent=1 // pred_check
      _
    $region19: #{tpu_custom_call.1} parent=1 // pred_check_branch
      %88 = sbr.rel (0) target = $region21
    $region20: #{tpu_custom_call.1} parent=1 // pred_region
      %s90 = ssub.s32 1024, 1024
      %91 = vsyncadd [#allocation9], %s90
      %s92 = sshll.u32 [#allocation10], 4
      %s93 = int_to_ptr.vmem [resolvable:$true] %s92
      %98 = dma.hbm_to_vmem [thread:$0]  %s4, 1024, %s93, [#allocation9], 64, 64, 4
    $region21: #{tpu_custom_call.1} parent=1 // pred_fallthru
      _
    // Predicated region
    $region22: #{tpu_custom_call.1} parent=1 // pred_check
      _
    $region23: #{tpu_custom_call.1} parent=1 // pred_check_branch
      %100 = sbr.rel (0) target = $region25
    $region24: #{tpu_custom_call.1} parent=1 // pred_region
      %s102 = ssub.s32 1024, 1024
      %103 = vsyncadd [#allocation12], %s102
      %s104 = sshll.u32 [#allocation11], 4
      %s105 = int_to_ptr.vmem [resolvable:$true] %s104
      %110 = dma.hbm_to_vmem [thread:$0]  %s5, 1024, %s105, [#allocation12], 64, 64, 4
    $region25: #{tpu_custom_call.1} parent=1 // pred_fallthru
      _
    // Predicated region
    $region26: #{tpu_custom_call.1} parent=1 // pred_check
      _
    $region27: #{tpu_custom_call.1} parent=1 // pred_check_branch
      %112 = sbr.rel (0) target = $region29
    $region28: #{tpu_custom_call.1} parent=1 // pred_region
      _
    $region29: #{tpu_custom_call.1} parent=1 // pred_fallthru
      _
    // Predicated region
    $region30: #{tpu_custom_call.1} parent=1 // pred_check
      _
    $region31: #{tpu_custom_call.1} parent=1 // pred_check_branch
      %114 = sbr.rel (0) target = $region33
    $region32: #{tpu_custom_call.1} parent=1 // pred_region
      _
    $region33: #{tpu_custom_call.1} parent=1 // pred_fallthru
      _
    // Predicated region
    $region34: #{tpu_custom_call.1} parent=1 // pred_check
      _
    $region35: #{tpu_custom_call.1} parent=1 // pred_check_branch
      %116 = sbr.rel (0) target = $region37
    $region36: #{tpu_custom_call.1} parent=1 // pred_region
      %s118 = ssub.s32 1024, 1024
      %119 = vsyncadd [#allocation12], %s118
      %s120 = sshll.u32 [#allocation13], 4
      %s121 = int_to_ptr.vmem [resolvable:$true] %s120
      %126 = dma.hbm_to_vmem [thread:$0]  %s8, 1024, %s121, [#allocation12], 64, 64, 4
    $region37: #{tpu_custom_call.1} parent=1 // pred_fallthru
      _
    // Predicated region
    $region38: #{tpu_custom_call.1} parent=1 // pred_check
      _
    $region39: #{tpu_custom_call.1} parent=1 // pred_check_branch
      %128 = sbr.rel (0) target = $region41
    $region40: #{tpu_custom_call.1} parent=1 // pred_region
      _
    $region41: #{tpu_custom_call.1} parent=1 // pred_fallthru
      _
    // Predicated region
    $region42: #{tpu_custom_call.1} parent=1 // pred_check
      _
    $region43: #{tpu_custom_call.1} parent=1 // pred_check_branch
      %130 = sbr.rel (0) target = $region45
    $region44: #{tpu_custom_call.1} parent=1 // pred_region
      %s132 = ssub.s32 1024, 1024
      %133 = vsyncadd [#allocation15], %s132
      %s134 = sshll.u32 [#allocation14], 4
      %s135 = int_to_ptr.vmem [resolvable:$true] %s134
      %140 = dma.hbm_to_vmem [thread:$0]  %s10, 1024, %s135, [#allocation15], 64, 64, 4
    $region45: #{tpu_custom_call.1} parent=1 // pred_fallthru
      _
    // Predicated region
    $region46: #{tpu_custom_call.1} parent=1 // pred_check
      _
    $region47: #{tpu_custom_call.1} parent=1 // pred_check_branch
      %142 = sbr.rel (0) target = $region49
    $region48: #{tpu_custom_call.1} parent=1 // pred_region
      _
    $region49: #{tpu_custom_call.1} parent=1 // pred_fallthru
      _
    // Predicated region
    $region50: #{tpu_custom_call.1} parent=1 // pred_check
      _
    $region51: #{tpu_custom_call.1} parent=1 // pred_check_branch
      %144 = sbr.rel (0) target = $region53
    $region52: #{tpu_custom_call.1} parent=1 // pred_region
      %s146 = ssub.s32 1024, 1024
      %147 = vsyncadd [#allocation15], %s146
      %s148 = sshll.u32 [#allocation16], 4
      %s149 = int_to_ptr.vmem [resolvable:$true] %s148
      %154 = dma.hbm_to_vmem [thread:$0]  %s12, 1024, %s149, [#allocation15], 64, 64, 4
    $region53: #{tpu_custom_call.1} parent=1 // pred_fallthru
      _
    // Predicated region
    $region54: #{tpu_custom_call.1} parent=1 // pred_check
      _
    $region55: #{tpu_custom_call.1} parent=1 // pred_check_branch
      %156 = sbr.rel (0) target = $region57
    $region56: #{tpu_custom_call.1} parent=1 // pred_region
      %s158 = ssub.s32 1024, 1024
      %159 = vsyncadd [#allocation18], %s158
      %s160 = sshll.u32 [#allocation17], 4
      %s161 = int_to_ptr.vmem [resolvable:$true] %s160
      %166 = dma.hbm_to_vmem [thread:$0]  %s13, 1024, %s161, [#allocation18], 64, 64, 4
    $region57: #{tpu_custom_call.1} parent=1 // pred_fallthru
      _
    // Predicated region
    $region58: #{tpu_custom_call.1} parent=1 // pred_check
      _
    $region59: #{tpu_custom_call.1} parent=1 // pred_check_branch
      %168 = sbr.rel (0) target = $region61
    $region60: #{tpu_custom_call.1} parent=1 // pred_region
      %s170 = ssub.s32 1024, 1024
      %171 = vsyncadd [#allocation18], %s170
      %s172 = sshll.u32 [#allocation19], 4
      %s173 = int_to_ptr.vmem [resolvable:$true] %s172
      %178 = dma.hbm_to_vmem [thread:$0]  %s14, 1024, %s173, [#allocation18], 64, 64, 4
    $region61: #{tpu_custom_call.1} parent=1 // pred_fallthru
      _
    // Predicated region
    $region62: #{tpu_custom_call.1} parent=1 // pred_check
      _
    $region63: #{tpu_custom_call.1} parent=1 // pred_check_branch
      %180 = sbr.rel (0) target = $region65
    $region64: #{tpu_custom_call.1} parent=1 // pred_region
      _
    $region65: #{tpu_custom_call.1} parent=1 // pred_fallthru
      _
    // Predicated region
    $region66: #{tpu_custom_call.1} parent=1 // pred_check
      _
    $region67: #{tpu_custom_call.1} parent=1 // pred_check_branch
      %182 = sbr.rel (0) target = $region69
    $region68: #{tpu_custom_call.1} parent=1 // pred_region
      %s184 = ssub.s32 8192, 8192
      %185 = vsyncadd [#allocation21], %s184
      %s186 = sshll.u32 [#allocation20], 4
      %s187 = int_to_ptr.vmem [resolvable:$true] %s186
      %192 = dma.hbm_to_vmem [thread:$0]  %s16, 8192, %s187, [#allocation21], 512, 512, 32
    $region69: #{tpu_custom_call.1} parent=1 // pred_fallthru
      _
    // Predicated region
    $region70: #{tpu_custom_call.1} parent=1 // pred_check
      _
    $region71: #{tpu_custom_call.1} parent=1 // pred_check_branch
      %194 = sbr.rel (0) target = $region73
    $region72: #{tpu_custom_call.1} parent=1 // pred_region
      _
    $region73: #{tpu_custom_call.1} parent=1 // pred_fallthru
      _
    // Predicated region
    $region74: #{tpu_custom_call.1} parent=1 // pred_check
      _
    $region75: #{tpu_custom_call.1} parent=1 // pred_check_branch
      %196 = sbr.rel (0) target = $region77
    $region76: #{tpu_custom_call.1} parent=1 // pred_region
      %s198 = ssub.s32 8192, 8192
      %199 = vsyncadd [#allocation21], %s198
      %s200 = sshll.u32 [#allocation22], 4
      %s201 = int_to_ptr.vmem [resolvable:$true] %s200
      %206 = dma.hbm_to_vmem [thread:$0]  %s18, 8192, %s201, [#allocation21], 64, 64, 4
    $region77: #{tpu_custom_call.1} parent=1 // pred_fallthru
      _
    // Predicated region
    $region78: #{tpu_custom_call.1} parent=1 // pred_check
      _
    $region79: #{tpu_custom_call.1} parent=1 // pred_check_branch
      %208 = sbr.rel (0) target = $region81
    $region80: #{tpu_custom_call.1} parent=1 // pred_region
      _
    $region81: #{tpu_custom_call.1} parent=1 // pred_fallthru
      _
    // Predicated region
    $region82: #{tpu_custom_call.1} parent=1 // pred_check
      _
    $region83: #{tpu_custom_call.1} parent=1 // pred_check_branch
      %210 = sbr.rel (0) target = $region85
    $region84: #{tpu_custom_call.1} parent=1 // pred_region
      _
    $region85: #{tpu_custom_call.1} parent=1 // pred_fallthru
      _
    // Predicated region
    $region86: #{tpu_custom_call.1} parent=1 // pred_check
      _
    $region87: #{tpu_custom_call.1} parent=1 // pred_check_branch
      %212 = sbr.rel (0) target = $region89
    $region88: #{tpu_custom_call.1} parent=1 // pred_region
      _
    $region89: #{tpu_custom_call.1} parent=1 // pred_fallthru
      _
    // Predicated region
    $region90: #{tpu_custom_call.1} parent=1 // pred_check
      _
    $region91: #{tpu_custom_call.1} parent=1 // pred_check_branch
      %214 = sbr.rel (0) target = $region93
    $region92: #{tpu_custom_call.1} parent=1 // pred_region
      _
    $region93: #{tpu_custom_call.1} parent=1 // pred_fallthru
      _
    // Predicated region
    $region94: #{tpu_custom_call.1} parent=1 // pred_check
      _
    $region95: #{tpu_custom_call.1} parent=1 // pred_check_branch
      %216 = sbr.rel (0) target = $region97
    $region96: #{tpu_custom_call.1} parent=1 // pred_region
      %217 = dma.done [#allocation3], 256
    $region97: #{tpu_custom_call.1} parent=1 // pred_fallthru
      _
    // Predicated region
    $region98: #{tpu_custom_call.1} parent=1 // pred_check
      _
    $region99: #{tpu_custom_call.1} parent=1 // pred_check_branch
      %219 = sbr.rel (0) target = $region101
    $region100: #{tpu_custom_call.1} parent=1 // pred_region
      %220 = dma.done [#allocation6], 256
    $region101: #{tpu_custom_call.1} parent=1 // pred_fallthru
      _
    // Predicated region
    $region102: #{tpu_custom_call.1} parent=1 // pred_check
      _
    $region103: #{tpu_custom_call.1} parent=1 // pred_check_branch
      %222 = sbr.rel (0) target = $region105
    $region104: #{tpu_custom_call.1} parent=1 // pred_region
      %223 = dma.done [#allocation6], 256
    $region105: #{tpu_custom_call.1} parent=1 // pred_fallthru
      _
    // Predicated region
    $region106: #{tpu_custom_call.1} parent=1 // pred_check
      _
    $region107: #{tpu_custom_call.1} parent=1 // pred_check_branch
      %225 = sbr.rel (0) target = $region109
    $region108: #{tpu_custom_call.1} parent=1 // pred_region
      %226 = dma.done [#allocation9], 1024
    $region109: #{tpu_custom_call.1} parent=1 // pred_fallthru
      _
    // Predicated region
    $region110: #{tpu_custom_call.1} parent=1 // pred_check
      _
    $region111: #{tpu_custom_call.1} parent=1 // pred_check_branch
      %228 = sbr.rel (0) target = $region113
    $region112: #{tpu_custom_call.1} parent=1 // pred_region
      %229 = dma.done [#allocation9], 1024
    $region113: #{tpu_custom_call.1} parent=1 // pred_fallthru
      _
    // Predicated region
    $region114: #{tpu_custom_call.1} parent=1 // pred_check
      _
    $region115: #{tpu_custom_call.1} parent=1 // pred_check_branch
      %231 = sbr.rel (0) target = $region117
    $region116: #{tpu_custom_call.1} parent=1 // pred_region
      %232 = dma.done [#allocation12], 1024
    $region117: #{tpu_custom_call.1} parent=1 // pred_fallthru
      _
    // Predicated region
    $region118: #{tpu_custom_call.1} parent=1 // pred_check
      _
    $region119: #{tpu_custom_call.1} parent=1 // pred_check_branch
      %234 = sbr.rel (0) target = $region121
    $region120: #{tpu_custom_call.1} parent=1 // pred_region
      %235 = dma.done [#allocation12], 1024
    $region121: #{tpu_custom_call.1} parent=1 // pred_fallthru
      _
    // Predicated region
    $region122: #{tpu_custom_call.1} parent=1 // pred_check
      _
    $region123: #{tpu_custom_call.1} parent=1 // pred_check_branch
      %237 = sbr.rel (0) target = $region125
    $region124: #{tpu_custom_call.1} parent=1 // pred_region
      %238 = dma.done [#allocation15], 1024
    $region125: #{tpu_custom_call.1} parent=1 // pred_fallthru
      _
    // Predicated region
    $region126: #{tpu_custom_call.1} parent=1 // pred_check
      _
    $region127: #{tpu_custom_call.1} parent=1 // pred_check_branch
      %240 = sbr.rel (0) target = $region129
    $region128: #{tpu_custom_call.1} parent=1 // pred_region
      %241 = dma.done [#allocation15], 1024
    $region129: #{tpu_custom_call.1} parent=1 // pred_fallthru
      _
    // Predicated region
    $region130: #{tpu_custom_call.1} parent=1 // pred_check
      _
    $region131: #{tpu_custom_call.1} parent=1 // pred_check_branch
      %243 = sbr.rel (0) target = $region133
    $region132: #{tpu_custom_call.1} parent=1 // pred_region
      %244 = dma.done [#allocation18], 1024
    $region133: #{tpu_custom_call.1} parent=1 // pred_fallthru
      _
    // Predicated region
    $region134: #{tpu_custom_call.1} parent=1 // pred_check
      _
    $region135: #{tpu_custom_call.1} parent=1 // pred_check_branch
      %246 = sbr.rel (0) target = $region137
    $region136: #{tpu_custom_call.1} parent=1 // pred_region
      %247 = dma.done [#allocation18], 1024
    $region137: #{tpu_custom_call.1} parent=1 // pred_fallthru
      _
    // Predicated region
    $region138: #{tpu_custom_call.1} parent=1 // pred_check
      _
    $region139: #{tpu_custom_call.1} parent=1 // pred_check_branch
      %249 = sbr.rel (0) target = $region141
    $region140: #{tpu_custom_call.1} parent=1 // pred_region
      %250 = dma.done [#allocation21], 8192
    $region141: #{tpu_custom_call.1} parent=1 // pred_fallthru
      _
    // Predicated region
    $region142: #{tpu_custom_call.1} parent=1 // pred_check
      _
    $region143: #{tpu_custom_call.1} parent=1 // pred_check_branch
      %252 = sbr.rel (0) target = $region145
    $region144: #{tpu_custom_call.1} parent=1 // pred_region
      %253 = dma.done [#allocation21], 8192
    $region145: #{tpu_custom_call.1} parent=1 // pred_fallthru
      _
    %v255 = vld [vmem:[#allocation2] sm:$0xff]
    %v256 = vld [vmem:[#allocation2 + $0x8] sm:$0xff]
    %v257 = vpack.c.bf16 %v256, %v255
    %v258 = vld [vmem:[#allocation5] sm:$0xf]
    %v259 = vld [vmem:[#allocation5 + $0x4] sm:$0xf]
    %v260 = vld [vmem:[#allocation5 + $0x8] sm:$0xf]
    %v261 = vld [vmem:[#allocation5 + $0xc] sm:$0xf]
    %v262 = vld [vmem:[#allocation7] sm:$0xf]
    %v263 = vld [vmem:[#allocation7 + $0x4] sm:$0xf]
    %v264 = vld [vmem:[#allocation7 + $0x8] sm:$0xf]
    %v265 = vld [vmem:[#allocation7 + $0xc] sm:$0xf]
    %v266 = vld [vmem:[#allocation8] sm:$0xf]
    %v267 = vld [vmem:[#allocation8 + $0x4] sm:$0xf]
    %v268 = vld [vmem:[#allocation8 + $0x8] sm:$0xf]
    %v269 = vld [vmem:[#allocation8 + $0xc] sm:$0xf]
    %v270 = vld [vmem:[#allocation8 + $0x10] sm:$0xf]
    %v271 = vld [vmem:[#allocation8 + $0x14] sm:$0xf]
    %v272 = vld [vmem:[#allocation8 + $0x18] sm:$0xf]
    %v273 = vld [vmem:[#allocation8 + $0x1c] sm:$0xf]
    %v274 = vld [vmem:[#allocation8 + $0x20] sm:$0xf]
    %v275 = vld [vmem:[#allocation8 + $0x24] sm:$0xf]
    %v276 = vld [vmem:[#allocation8 + $0x28] sm:$0xf]
    %v277 = vld [vmem:[#allocation8 + $0x2c] sm:$0xf]
    %v278 = vld [vmem:[#allocation8 + $0x30] sm:$0xf]
    %v279 = vld [vmem:[#allocation8 + $0x34] sm:$0xf]
    %v280 = vld [vmem:[#allocation8 + $0x38] sm:$0xf]
    %v281 = vld [vmem:[#allocation8 + $0x3c] sm:$0xf]
    %v298 = vunpack.c.l.b16 %v266
    %v299 = vunpack.c.l.b16 %v267
    %v300 = vunpack.c.l.b16 %v268
    %v301 = vunpack.c.l.b16 %v269
    %v302 = vunpack.c.l.b16 %v270
    %v303 = vunpack.c.l.b16 %v271
    %v304 = vunpack.c.l.b16 %v272
    %v305 = vunpack.c.l.b16 %v273
    %v306 = vunpack.c.l.b16 %v274
    %v307 = vunpack.c.l.b16 %v275
    %v308 = vunpack.c.l.b16 %v276
    %v309 = vunpack.c.l.b16 %v277
    %v310 = vunpack.c.l.b16 %v278
    %v311 = vunpack.c.l.b16 %v279
    %v312 = vunpack.c.l.b16 %v280
    %v313 = vunpack.c.l.b16 %v281
    %v314 = vpack.c.b16 %v299, %v298
    %v315 = vpack.c.b16 %v301, %v300
    %v316 = vpack.c.b16 %v303, %v302
    %v317 = vpack.c.b16 %v305, %v304
    %v318 = vpack.c.b16 %v307, %v306
    %v319 = vpack.c.b16 %v309, %v308
    %v320 = vpack.c.b16 %v311, %v310
    %v321 = vpack.c.b16 %v313, %v312
    %330 = vmatprep.subr.bf16.mxu0 0
    %331 = vmatpush1.bf16.msra.mxu0 %v314
    %332 = vmatprep.subr.bf16.mxu0 0
    %333 = vmatpush1.bf16.msra.mxu0 %v315
    %334 = vmatprep.subr.bf16.mxu0 0
    %335 = vmatpush1.bf16.msra.mxu0 %v316
    %336 = vmatprep.subr.bf16.mxu0 0
    %337 = vmatpush1.bf16.msra.mxu0 %v317
    %338 = vmatprep.subr.bf16.mxu0 0
    %339 = vmatpush1.bf16.msra.mxu0 %v318
    %340 = vmatprep.subr.bf16.mxu0 0
    %341 = vmatpush1.bf16.msra.mxu0 %v319
    %342 = vmatprep.subr.bf16.mxu0 0
    %343 = vmatpush1.bf16.msra.mxu0 %v320
    %344 = vmatprep.subr.bf16.mxu0 0
    %345 = vmatpush1.bf16.msra.mxu0 %v321
    %346 = vmatprep.subr.bf16.mxu0 0
    %347 = vmatpush1.bf16.msra.mxu0 0
    %348 = vmatprep.subr.bf16.mxu0 0
    %349 = vmatpush1.bf16.msra.mxu0 0
    %350 = vmatprep.subr.bf16.mxu0 0
    %351 = vmatpush1.bf16.msra.mxu0 0
    %352 = vmatprep.subr.bf16.mxu0 0
    %353 = vmatpush1.bf16.msra.mxu0 0
    %354 = vmatprep.subr.bf16.mxu0 0
    %355 = vmatpush1.bf16.msra.mxu0 0
    %356 = vmatprep.subr.bf16.mxu0 0
    %357 = vmatpush1.bf16.msra.mxu0 0
    %358 = vmatprep.subr.bf16.mxu0 0
    %359 = vmatpush1.bf16.msra.mxu0 0
    %360 = vmatprep.subr.bf16.mxu0 0
    %361 = vmatpush1.bf16.msra.mxu0 0
    %362 = vmatprep.mubr.bf16.mxu0 0
    %363 = vmatmul.mubr.bf16.gmra.mrb[0].mxu0 %v257
    %v364 = vpop.f32.mrb[0].mxu0
    %v365 = vadd.f32 0.0, %v364
    %v366 = vpop.f32.mrb[0].mxu0
    %v367 = vpop.f32.mrb[0].mxu0
    %v368 = vadd.f32 0.0, %v367
    %v369 = vpop.f32.mrb[0].mxu0
    %370 = vdwg.mxu0
    %v371 = vld [vmem:[#allocation10] sm:$0xf]
    %v372 = vld [vmem:[#allocation10 + $0x4] sm:$0xf]
    %v373 = vld [vmem:[#allocation10 + $0x8] sm:$0xf]
    %v374 = vld [vmem:[#allocation10 + $0xc] sm:$0xf]
    %v375 = vld [vmem:[#allocation10 + $0x10] sm:$0xf]
    %v376 = vld [vmem:[#allocation10 + $0x14] sm:$0xf]
    %v377 = vld [vmem:[#allocation10 + $0x18] sm:$0xf]
    %v378 = vld [vmem:[#allocation10 + $0x1c] sm:$0xf]
    %v379 = vld [vmem:[#allocation10 + $0x20] sm:$0xf]
    %v380 = vld [vmem:[#allocation10 + $0x24] sm:$0xf]
    %v381 = vld [vmem:[#allocation10 + $0x28] sm:$0xf]
    %v382 = vld [vmem:[#allocation10 + $0x2c] sm:$0xf]
    %v383 = vld [vmem:[#allocation10 + $0x30] sm:$0xf]
    %v384 = vld [vmem:[#allocation10 + $0x34] sm:$0xf]
    %v385 = vld [vmem:[#allocation10 + $0x38] sm:$0xf]
    %v386 = vld [vmem:[#allocation10 + $0x3c] sm:$0xf]
    %v391 = vunpack.c.l.b16 %v258
    %v392 = vunpack.c.l.b16 %v259
    %v393 = vunpack.c.l.b16 %v260
    %v394 = vunpack.c.l.b16 %v261
    %v395 = vpack.c.b16 %v392, %v391
    %v396 = vpack.c.b16 %v394, %v393
    %v415 = vunpack.c.l.b16 %v371
    %v416 = vunpack.c.l.b16 %v372
    %v417 = vunpack.c.l.b16 %v373
    %v418 = vunpack.c.l.b16 %v374
    %v419 = vunpack.c.l.b16 %v375
    %v420 = vunpack.c.l.b16 %v376
    %v421 = vunpack.c.l.b16 %v377
    %v422 = vunpack.c.l.b16 %v378
    %v423 = vunpack.c.l.b16 %v379
    %v424 = vunpack.c.l.b16 %v380
    %v425 = vunpack.c.l.b16 %v381
    %v426 = vunpack.c.l.b16 %v382
    %v427 = vunpack.c.l.b16 %v383
    %v428 = vunpack.c.l.b16 %v384
    %v429 = vunpack.c.l.b16 %v385
    %v430 = vunpack.c.l.b16 %v386
    %v431 = vpack.c.b16 %v416, %v415
    %v432 = vpack.c.b16 %v418, %v417
    %v433 = vpack.c.b16 %v420, %v419
    %v434 = vpack.c.b16 %v422, %v421
    %v435 = vpack.c.b16 %v424, %v423
    %v436 = vpack.c.b16 %v426, %v425
    %v437 = vpack.c.b16 %v428, %v427
    %v438 = vpack.c.b16 %v430, %v429
    %447 = vmatprep.subr.bf16.mxu0 0
    %448 = vmatpush1.bf16.msra.mxu0 %v431
    %449 = vmatprep.subr.bf16.mxu0 0
    %450 = vmatpush1.bf16.msra.mxu0 %v432
    %451 = vmatprep.subr.bf16.mxu0 0
    %452 = vmatpush1.bf16.msra.mxu0 %v433
    %453 = vmatprep.subr.bf16.mxu0 0
    %454 = vmatpush1.bf16.msra.mxu0 %v434
    %455 = vmatprep.subr.bf16.mxu0 0
    %456 = vmatpush1.bf16.msra.mxu0 %v435
    %457 = vmatprep.subr.bf16.mxu0 0
    %458 = vmatpush1.bf16.msra.mxu0 %v436
    %459 = vmatprep.subr.bf16.mxu0 0
    %460 = vmatpush1.bf16.msra.mxu0 %v437
    %461 = vmatprep.subr.bf16.mxu0 0
    %462 = vmatpush1.bf16.msra.mxu0 %v438
    %463 = vmatprep.subr.bf16.mxu0 0
    %464 = vmatpush1.bf16.msra.mxu0 0
    %465 = vmatprep.subr.bf16.mxu0 0
    %466 = vmatpush1.bf16.msra.mxu0 0
    %467 = vmatprep.subr.bf16.mxu0 0
    %468 = vmatpush1.bf16.msra.mxu0 0
    %469 = vmatprep.subr.bf16.mxu0 0
    %470 = vmatpush1.bf16.msra.mxu0 0
    %471 = vmatprep.subr.bf16.mxu0 0
    %472 = vmatpush1.bf16.msra.mxu0 0
    %473 = vmatprep.subr.bf16.mxu0 0
    %474 = vmatpush1.bf16.msra.mxu0 0
    %475 = vmatprep.subr.bf16.mxu0 0
    %476 = vmatpush1.bf16.msra.mxu0 0
    %477 = vmatprep.subr.bf16.mxu0 0
    %478 = vmatpush1.bf16.msra.mxu0 0
    %479 = vmatprep.mubr.bf16.mxu0 0
    %480 = vmatmul.mubr.bf16.gmra.mrb[0].mxu0 %v395
    %v481 = vpop.f32.mrb[0].mxu0
    %v482 = vadd.f32 0.0, %v481
    %v483 = vpop.f32.mrb[0].mxu0
    %v484 = vpop.f32.mrb[0].mxu0
    %v485 = vadd.f32 0.0, %v484
    %v486 = vpop.f32.mrb[0].mxu0
    %487 = vmatprep.mubr.bf16.mxu0 0
    %488 = vmatmul.mubr.bf16.gmra.mrb[0].mxu0 %v396
    %v489 = vpop.f32.mrb[0].mxu0
    %v490 = vadd.f32 0.0, %v489
    %v491 = vpop.f32.mrb[0].mxu0
    %v492 = vpop.f32.mrb[0].mxu0
    %v493 = vadd.f32 0.0, %v492
    %v494 = vpop.f32.mrb[0].mxu0
    %495 = vdwg.mxu0
    %v496 = vld [vmem:[#allocation11] sm:$0xf]
    %v497 = vld [vmem:[#allocation11 + $0x4] sm:$0xf]
    %v498 = vld [vmem:[#allocation11 + $0x8] sm:$0xf]
    %v499 = vld [vmem:[#allocation11 + $0xc] sm:$0xf]
    %v500 = vld [vmem:[#allocation11 + $0x10] sm:$0xf]
    %v501 = vld [vmem:[#allocation11 + $0x14] sm:$0xf]
    %v502 = vld [vmem:[#allocation11 + $0x18] sm:$0xf]
    %v503 = vld [vmem:[#allocation11 + $0x1c] sm:$0xf]
    %v504 = vld [vmem:[#allocation11 + $0x20] sm:$0xf]
    %v505 = vld [vmem:[#allocation11 + $0x24] sm:$0xf]
    %v506 = vld [vmem:[#allocation11 + $0x28] sm:$0xf]
    %v507 = vld [vmem:[#allocation11 + $0x2c] sm:$0xf]
    %v508 = vld [vmem:[#allocation11 + $0x30] sm:$0xf]
    %v509 = vld [vmem:[#allocation11 + $0x34] sm:$0xf]
    %v510 = vld [vmem:[#allocation11 + $0x38] sm:$0xf]
    %v511 = vld [vmem:[#allocation11 + $0x3c] sm:$0xf]
    %v516 = vunpack.c.l.b16 %v262
    %v517 = vunpack.c.l.b16 %v263
    %v518 = vunpack.c.l.b16 %v264
    %v519 = vunpack.c.l.b16 %v265
    %v520 = vpack.c.b16 %v517, %v516
    %v521 = vpack.c.b16 %v519, %v518
    %v540 = vunpack.c.l.b16 %v496
    %v541 = vunpack.c.l.b16 %v497
    %v542 = vunpack.c.l.b16 %v498
    %v543 = vunpack.c.l.b16 %v499
    %v544 = vunpack.c.l.b16 %v500
    %v545 = vunpack.c.l.b16 %v501
    %v546 = vunpack.c.l.b16 %v502
    %v547 = vunpack.c.l.b16 %v503
    %v548 = vunpack.c.l.b16 %v504
    %v549 = vunpack.c.l.b16 %v505
    %v550 = vunpack.c.l.b16 %v506
    %v551 = vunpack.c.l.b16 %v507
    %v552 = vunpack.c.l.b16 %v508
    %v553 = vunpack.c.l.b16 %v509
    %v554 = vunpack.c.l.b16 %v510
    %v555 = vunpack.c.l.b16 %v511
    %v556 = vpack.c.b16 %v541, %v540
    %v557 = vpack.c.b16 %v543, %v542
    %v558 = vpack.c.b16 %v545, %v544
    %v559 = vpack.c.b16 %v547, %v546
    %v560 = vpack.c.b16 %v549, %v548
    %v561 = vpack.c.b16 %v551, %v550
    %v562 = vpack.c.b16 %v553, %v552
    %v563 = vpack.c.b16 %v555, %v554
    %572 = vmatprep.subr.bf16.mxu0 0
    %573 = vmatpush1.bf16.msra.mxu0 %v556
    %574 = vmatprep.subr.bf16.mxu0 0
    %575 = vmatpush1.bf16.msra.mxu0 %v557
    %576 = vmatprep.subr.bf16.mxu0 0
    %577 = vmatpush1.bf16.msra.mxu0 %v558
    %578 = vmatprep.subr.bf16.mxu0 0
    %579 = vmatpush1.bf16.msra.mxu0 %v559
    %580 = vmatprep.subr.bf16.mxu0 0
    %581 = vmatpush1.bf16.msra.mxu0 %v560
    %582 = vmatprep.subr.bf16.mxu0 0
    %583 = vmatpush1.bf16.msra.mxu0 %v561
    %584 = vmatprep.subr.bf16.mxu0 0
    %585 = vmatpush1.bf16.msra.mxu0 %v562
    %586 = vmatprep.subr.bf16.mxu0 0
    %587 = vmatpush1.bf16.msra.mxu0 %v563
    %588 = vmatprep.subr.bf16.mxu0 0
    %589 = vmatpush1.bf16.msra.mxu0 0
    %590 = vmatprep.subr.bf16.mxu0 0
    %591 = vmatpush1.bf16.msra.mxu0 0
    %592 = vmatprep.subr.bf16.mxu0 0
    %593 = vmatpush1.bf16.msra.mxu0 0
    %594 = vmatprep.subr.bf16.mxu0 0
    %595 = vmatpush1.bf16.msra.mxu0 0
    %596 = vmatprep.subr.bf16.mxu0 0
    %597 = vmatpush1.bf16.msra.mxu0 0
    %598 = vmatprep.subr.bf16.mxu0 0
    %599 = vmatpush1.bf16.msra.mxu0 0
    %600 = vmatprep.subr.bf16.mxu0 0
    %601 = vmatpush1.bf16.msra.mxu0 0
    %602 = vmatprep.subr.bf16.mxu0 0
    %603 = vmatpush1.bf16.msra.mxu0 0
    %604 = vmatprep.mubr.bf16.mxu0 0
    %605 = vmatmul.mubr.bf16.gmra.mrb[0].mxu0 %v520
    %v606 = vpop.f32.mrb[0].mxu0
    %v607 = vadd.f32 0.0, %v606
    %v608 = vpop.f32.mrb[0].mxu0
    %v609 = vpop.f32.mrb[0].mxu0
    %v610 = vadd.f32 0.0, %v609
    %v611 = vpop.f32.mrb[0].mxu0
    %612 = vmatprep.mubr.bf16.mxu0 0
    %613 = vmatmul.mubr.bf16.gmra.mrb[0].mxu0 %v521
    %v614 = vpop.f32.mrb[0].mxu0
    %v615 = vadd.f32 0.0, %v614
    %v616 = vpop.f32.mrb[0].mxu0
    %v617 = vpop.f32.mrb[0].mxu0
    %v618 = vadd.f32 0.0, %v617
    %v619 = vpop.f32.mrb[0].mxu0
    %620 = vdwg.mxu0
    %v621 = vld [vmem:[%s6] sm:$0xff]
    %v622 = vld [vmem:[%s6 + $0x8] sm:$0xff]
    %v623 = vadd.f32 %v482, %v621
    %v624 = vadd.f32 %v485, %v622
    %v625 = vadd.f32 %v490, %v621
    %v626 = vadd.f32 %v493, %v622
    %v627 = vpack.c.bf16 %v365, %v365
    %v628 = vpack.c.bf16 %v368, %v368
    %v629 = vpack.c.bf16 %v624, %v623
    %v630 = vpack.c.bf16 %v626, %v625
    %v631 = vld [vmem:[%s7] sm:$0x1]
    %v633 = vlaneseq
    %v634 = vshrl.u32 %v633, 7
    %v635 = vsub.s32 0, %v634
    %v636 = vrot.slane %v631, %v635
    %638 = vmatprep.subr.bf16.mxu0 0
    %639 = vmatpush1.bf16.xpose.msra.mxu0 %v629
    %640 = vmatprep.subr.bf16.mxu0 0
    %641 = vmatpush1.bf16.xpose.msra.mxu0 0
    %642 = vmatprep.subr.bf16.mxu0 0
    %643 = vmatpush1.bf16.xpose.msra.mxu0 0
    %644 = vmatprep.subr.bf16.mxu0 0
    %645 = vmatpush1.bf16.xpose.msra.mxu0 0
    %646 = vmatprep.subr.bf16.mxu0 0
    %647 = vmatpush1.bf16.xpose.msra.mxu0 0
    %648 = vmatprep.subr.bf16.mxu0 0
    %649 = vmatpush1.bf16.xpose.msra.mxu0 0
    %650 = vmatprep.subr.bf16.mxu0 0
    %651 = vmatpush1.bf16.xpose.msra.mxu0 0
    %652 = vmatprep.subr.bf16.mxu0 0
    %653 = vmatpush1.bf16.xpose.msra.mxu0 0
    %654 = vmatprep.subr.bf16.mxu0 0
    %655 = vmatpush1.bf16.xpose.msra.mxu0 0
    %656 = vmatprep.subr.bf16.mxu0 0
    %657 = vmatpush1.bf16.xpose.msra.mxu0 0
    %658 = vmatprep.subr.bf16.mxu0 0
    %659 = vmatpush1.bf16.xpose.msra.mxu0 0
    %660 = vmatprep.subr.bf16.mxu0 0
    %661 = vmatpush1.bf16.xpose.msra.mxu0 0
    %662 = vmatprep.subr.bf16.mxu0 0
    %663 = vmatpush1.bf16.xpose.msra.mxu0 0
    %664 = vmatprep.subr.bf16.mxu0 0
    %665 = vmatpush1.bf16.xpose.msra.mxu0 0
    %666 = vmatprep.subr.bf16.mxu0 0
    %667 = vmatpush1.bf16.xpose.msra.mxu0 0
    %668 = vmatprep.subr.bf16.mxu0 0
    %669 = vmatpush1.bf16.xpose.msra.mxu0 0
    %670 = vmatprep.mubr.bf16.mxu0 0
    %671 = vmatmul.mubr.bf16.gmra.mrb[0].mxu0 %v627
    %v672 = vpop.f32.mrb[0].mxu0
    %v673 = vadd.f32 %v636, %v672
    %v674 = vpop.f32.mrb[0].mxu0
    %v675 = vpop.f32.mrb[0].mxu0
    %v676 = vpop.f32.mrb[0].mxu0
    %677 = vdwg.mxu0
    %678 = vmatprep.subr.bf16.mxu0 0
    %679 = vmatpush1.bf16.xpose.msra.mxu0 %v630
    %680 = vmatprep.subr.bf16.mxu0 0
    %681 = vmatpush1.bf16.xpose.msra.mxu0 0
    %682 = vmatprep.subr.bf16.mxu0 0
    %683 = vmatpush1.bf16.xpose.msra.mxu0 0
    %684 = vmatprep.subr.bf16.mxu0 0
    %685 = vmatpush1.bf16.xpose.msra.mxu0 0
    %686 = vmatprep.subr.bf16.mxu0 0
    %687 = vmatpush1.bf16.xpose.msra.mxu0 0
    %688 = vmatprep.subr.bf16.mxu0 0
    %689 = vmatpush1.bf16.xpose.msra.mxu0 0
    %690 = vmatprep.subr.bf16.mxu0 0
    %691 = vmatpush1.bf16.xpose.msra.mxu0 0
    %692 = vmatprep.subr.bf16.mxu0 0
    %693 = vmatpush1.bf16.xpose.msra.mxu0 0
    %694 = vmatprep.subr.bf16.mxu0 0
    %695 = vmatpush1.bf16.xpose.msra.mxu0 0
    %696 = vmatprep.subr.bf16.mxu0 0
    %697 = vmatpush1.bf16.xpose.msra.mxu0 0
    %698 = vmatprep.subr.bf16.mxu0 0
    %699 = vmatpush1.bf16.xpose.msra.mxu0 0
    %700 = vmatprep.subr.bf16.mxu0 0
    %701 = vmatpush1.bf16.xpose.msra.mxu0 0
    %702 = vmatprep.subr.bf16.mxu0 0
    %703 = vmatpush1.bf16.xpose.msra.mxu0 0
    %704 = vmatprep.subr.bf16.mxu0 0
    %705 = vmatpush1.bf16.xpose.msra.mxu0 0
    %706 = vmatprep.subr.bf16.mxu0 0
    %707 = vmatpush1.bf16.xpose.msra.mxu0 0
    %708 = vmatprep.subr.bf16.mxu0 0
    %709 = vmatpush1.bf16.xpose.msra.mxu0 0
    %710 = vmatprep.mubr.bf16.mxu0 0
    %711 = vmatmul.mubr.bf16.gmra.mrb[0].mxu0 %v628
    %v712 = vpop.f32.mrb[0].mxu0
    %v713 = vadd.f32 %v636, %v712
    %v714 = vpop.f32.mrb[0].mxu0
    %v715 = vpop.f32.mrb[0].mxu0
    %v716 = vpop.f32.mrb[0].mxu0
    %717 = vdwg.mxu0
    %vm718 = vcmask 130048
    %v719 = vsel %vm718, %v673, -inf
    %720 = vmax.xlane.f32.xlu0 %v719
    %v721 = vpop.xlane.xlu0 %720
    %v722 = vsel %vm718, %v713, -inf
    %723 = vmax.xlane.f32.xlu0 %v722
    %v724 = vpop.xlane.xlu0 %723
    %v725 = vsub.f32 %v673, %v721
    %v726 = vsub.f32 %v713, %v724
    %v727 = vmul.f32 %v725, 1.442695
    %v728 = vpow.pop %v727
    %v729 = vmul.f32 %v726, 1.442695
    %v730 = vpow.pop %v729
    %v731 = vsel %vm718, %v728, 0.0
    %732 = vadd.xlane.f32.xlu0 %v731
    %v733 = vpop.xlane.xlu0 %732
    %v734 = vsel %vm718, %v730, 0.0
    %735 = vadd.xlane.f32.xlu0 %v734
    %v736 = vpop.xlane.xlu0 %735
    %v737 = vrcp.pop %v733
    %v738 = vrcp.pop %v736
    %v739 = vmul.f32 %v728, %v737
    %v740 = vmul.f32 %v730, %v738
    %v741 = vpack.c.bf16 %v739, %v739
    %v742 = vpack.c.bf16 %v740, %v740
    %v743 = vpack.c.bf16 %v610, %v607
    %v744 = vpack.c.bf16 %v618, %v615
    %v746 = vsel %vm718, %v741, 0
    %748 = vmatprep.subr.bf16.mxu0 0
    %749 = vmatpush1.bf16.msra.mxu0 %v743
    %750 = vmatprep.subr.bf16.mxu0 0
    %751 = vmatpush1.bf16.msra.mxu0 0
    %752 = vmatprep.subr.bf16.mxu0 0
    %753 = vmatpush1.bf16.msra.mxu0 0
    %754 = vmatprep.subr.bf16.mxu0 0
    %755 = vmatpush1.bf16.msra.mxu0 0
    %756 = vmatprep.subr.bf16.mxu0 0
    %757 = vmatpush1.bf16.msra.mxu0 0
    %758 = vmatprep.subr.bf16.mxu0 0
    %759 = vmatpush1.bf16.msra.mxu0 0
    %760 = vmatprep.subr.bf16.mxu0 0
    %761 = vmatpush1.bf16.msra.mxu0 0
    %762 = vmatprep.subr.bf16.mxu0 0
    %763 = vmatpush1.bf16.msra.mxu0 0
    %764 = vmatprep.subr.bf16.mxu0 0
    %765 = vmatpush1.bf16.msra.mxu0 0
    %766 = vmatprep.subr.bf16.mxu0 0
    %767 = vmatpush1.bf16.msra.mxu0 0
    %768 = vmatprep.subr.bf16.mxu0 0
    %769 = vmatpush1.bf16.msra.mxu0 0
    %770 = vmatprep.subr.bf16.mxu0 0
    %771 = vmatpush1.bf16.msra.mxu0 0
    %772 = vmatprep.subr.bf16.mxu0 0
    %773 = vmatpush1.bf16.msra.mxu0 0
    %774 = vmatprep.subr.bf16.mxu0 0
    %775 = vmatpush1.bf16.msra.mxu0 0
    %776 = vmatprep.subr.bf16.mxu0 0
    %777 = vmatpush1.bf16.msra.mxu0 0
    %778 = vmatprep.subr.bf16.mxu0 0
    %779 = vmatpush1.bf16.msra.mxu0 0
    %780 = vmatprep.mubr.bf16.mxu0 0
    %781 = vmatmul.mubr.bf16.gmra.mrb[0].mxu0 %v746
    %v782 = vpop.f32.mrb[0].mxu0
    %v783 = vadd.f32 0.0, %v782
    %v784 = vpop.f32.mrb[0].mxu0
    %v785 = vpop.f32.mrb[0].mxu0
    %v786 = vpop.f32.mrb[0].mxu0
    %787 = vdwg.mxu0
    %v789 = vsel %vm718, %v742, 0
    %791 = vmatprep.subr.bf16.mxu0 0
    %792 = vmatpush1.bf16.msra.mxu0 %v744
    %793 = vmatprep.subr.bf16.mxu0 0
    %794 = vmatpush1.bf16.msra.mxu0 0
    %795 = vmatprep.subr.bf16.mxu0 0
    %796 = vmatpush1.bf16.msra.mxu0 0
    %797 = vmatprep.subr.bf16.mxu0 0
    %798 = vmatpush1.bf16.msra.mxu0 0
    %799 = vmatprep.subr.bf16.mxu0 0
    %800 = vmatpush1.bf16.msra.mxu0 0
    %801 = vmatprep.subr.bf16.mxu0 0
    %802 = vmatpush1.bf16.msra.mxu0 0
    %803 = vmatprep.subr.bf16.mxu0 0
    %804 = vmatpush1.bf16.msra.mxu0 0
    %805 = vmatprep.subr.bf16.mxu0 0
    %806 = vmatpush1.bf16.msra.mxu0 0
    %807 = vmatprep.subr.bf16.mxu0 0
    %808 = vmatpush1.bf16.msra.mxu0 0
    %809 = vmatprep.subr.bf16.mxu0 0
    %810 = vmatpush1.bf16.msra.mxu0 0
    %811 = vmatprep.subr.bf16.mxu0 0
    %812 = vmatpush1.bf16.msra.mxu0 0
    %813 = vmatprep.subr.bf16.mxu0 0
    %814 = vmatpush1.bf16.msra.mxu0 0
    %815 = vmatprep.subr.bf16.mxu0 0
    %816 = vmatpush1.bf16.msra.mxu0 0
    %817 = vmatprep.subr.bf16.mxu0 0
    %818 = vmatpush1.bf16.msra.mxu0 0
    %819 = vmatprep.subr.bf16.mxu0 0
    %820 = vmatpush1.bf16.msra.mxu0 0
    %821 = vmatprep.subr.bf16.mxu0 0
    %822 = vmatpush1.bf16.msra.mxu0 0
    %823 = vmatprep.mubr.bf16.mxu0 0
    %824 = vmatmul.mubr.bf16.gmra.mrb[0].mxu0 %v789
    %v825 = vpop.f32.mrb[0].mxu0
    %v826 = vadd.f32 0.0, %v825
    %v827 = vpop.f32.mrb[0].mxu0
    %v828 = vpop.f32.mrb[0].mxu0
    %v829 = vpop.f32.mrb[0].mxu0
    %830 = vdwg.mxu0
    %v831 = vmul.f32 %v783, %v255
    %v832 = vmul.f32 %v826, %v256
    %v833 = vpack.c.bf16 %v832, %v831
    %v834 = vld [vmem:[#allocation13] sm:$0xf]
    %v835 = vld [vmem:[#allocation13 + $0x4] sm:$0xf]
    %v836 = vld [vmem:[#allocation13 + $0x8] sm:$0xf]
    %v837 = vld [vmem:[#allocation13 + $0xc] sm:$0xf]
    %v838 = vld [vmem:[#allocation13 + $0x10] sm:$0xf]
    %v839 = vld [vmem:[#allocation13 + $0x14] sm:$0xf]
    %v840 = vld [vmem:[#allocation13 + $0x18] sm:$0xf]
    %v841 = vld [vmem:[#allocation13 + $0x1c] sm:$0xf]
    %v842 = vld [vmem:[#allocation13 + $0x20] sm:$0xf]
    %v843 = vld [vmem:[#allocation13 + $0x24] sm:$0xf]
    %v844 = vld [vmem:[#allocation13 + $0x28] sm:$0xf]
    %v845 = vld [vmem:[#allocation13 + $0x2c] sm:$0xf]
    %v846 = vld [vmem:[#allocation13 + $0x30] sm:$0xf]
    %v847 = vld [vmem:[#allocation13 + $0x34] sm:$0xf]
    %v848 = vld [vmem:[#allocation13 + $0x38] sm:$0xf]
    %v849 = vld [vmem:[#allocation13 + $0x3c] sm:$0xf]
    %v850 = vld [vmem:[%s9] sm:$0x1]
    %v852 = vlaneseq
    %v853 = vshrl.u32 %v852, 7
    %v854 = vsub.s32 0, %v853
    %v855 = vrot.slane %v850, %v854
    %v873 = vunpack.c.l.b16 %v834
    %v874 = vunpack.c.l.b16 %v835
    %v875 = vunpack.c.l.b16 %v836
    %v876 = vunpack.c.l.b16 %v837
    %v877 = vunpack.c.l.b16 %v838
    %v878 = vunpack.c.l.b16 %v839
    %v879 = vunpack.c.l.b16 %v840
    %v880 = vunpack.c.l.b16 %v841
    %v881 = vunpack.c.l.b16 %v842
    %v882 = vunpack.c.l.b16 %v843
    %v883 = vunpack.c.l.b16 %v844
    %v884 = vunpack.c.l.b16 %v845
    %v885 = vunpack.c.l.b16 %v846
    %v886 = vunpack.c.l.b16 %v847
    %v887 = vunpack.c.l.b16 %v848
    %v888 = vunpack.c.l.b16 %v849
    %v889 = vpack.c.b16 %v874, %v873
    %v890 = vpack.c.b16 %v876, %v875
    %v891 = vpack.c.b16 %v878, %v877
    %v892 = vpack.c.b16 %v880, %v879
    %v893 = vpack.c.b16 %v882, %v881
    %v894 = vpack.c.b16 %v884, %v883
    %v895 = vpack.c.b16 %v886, %v885
    %v896 = vpack.c.b16 %v888, %v887
    %905 = vmatprep.subr.bf16.mxu0 0
    %906 = vmatpush1.bf16.msra.mxu0 %v889
    %907 = vmatprep.subr.bf16.mxu0 0
    %908 = vmatpush1.bf16.msra.mxu0 %v890
    %909 = vmatprep.subr.bf16.mxu0 0
    %910 = vmatpush1.bf16.msra.mxu0 %v891
    %911 = vmatprep.subr.bf16.mxu0 0
    %912 = vmatpush1.bf16.msra.mxu0 %v892
    %913 = vmatprep.subr.bf16.mxu0 0
    %914 = vmatpush1.bf16.msra.mxu0 %v893
    %915 = vmatprep.subr.bf16.mxu0 0
    %916 = vmatpush1.bf16.msra.mxu0 %v894
    %917 = vmatprep.subr.bf16.mxu0 0
    %918 = vmatpush1.bf16.msra.mxu0 %v895
    %919 = vmatprep.subr.bf16.mxu0 0
    %920 = vmatpush1.bf16.msra.mxu0 %v896
    %921 = vmatprep.subr.bf16.mxu0 0
    %922 = vmatpush1.bf16.msra.mxu0 0
    %923 = vmatprep.subr.bf16.mxu0 0
    %924 = vmatpush1.bf16.msra.mxu0 0
    %925 = vmatprep.subr.bf16.mxu0 0
    %926 = vmatpush1.bf16.msra.mxu0 0
    %927 = vmatprep.subr.bf16.mxu0 0
    %928 = vmatpush1.bf16.msra.mxu0 0
    %929 = vmatprep.subr.bf16.mxu0 0
    %930 = vmatpush1.bf16.msra.mxu0 0
    %931 = vmatprep.subr.bf16.mxu0 0
    %932 = vmatpush1.bf16.msra.mxu0 0
    %933 = vmatprep.subr.bf16.mxu0 0
    %934 = vmatpush1.bf16.msra.mxu0 0
    %935 = vmatprep.subr.bf16.mxu0 0
    %936 = vmatpush1.bf16.msra.mxu0 0
    %937 = vmatprep.mubr.bf16.mxu0 0
    %938 = vmatmul.mubr.bf16.gmra.mrb[0].mxu0 %v833
    %v939 = vpop.f32.mrb[0].mxu0
    %v940 = vadd.f32 %v855, %v939
    %v941 = vpop.f32.mrb[0].mxu0
    %v942 = vpop.f32.mrb[0].mxu0
    %v943 = vadd.f32 %v855, %v942
    %v944 = vpop.f32.mrb[0].mxu0
    %945 = vdwg.mxu0
    %v946 = vmax.f32 %v940, 0.0
    %v947 = vmax.f32 %v943, 0.0
    %v948 = vsub.f32 %v255, %v783
    %v949 = vsub.f32 %v256, %v826
    %v950 = vpack.c.bf16 %v949, %v948
    %v951 = vld [vmem:[#allocation14] sm:$0xf]
    %v952 = vld [vmem:[#allocation14 + $0x4] sm:$0xf]
    %v953 = vld [vmem:[#allocation14 + $0x8] sm:$0xf]
    %v954 = vld [vmem:[#allocation14 + $0xc] sm:$0xf]
    %v955 = vld [vmem:[#allocation14 + $0x10] sm:$0xf]
    %v956 = vld [vmem:[#allocation14 + $0x14] sm:$0xf]
    %v957 = vld [vmem:[#allocation14 + $0x18] sm:$0xf]
    %v958 = vld [vmem:[#allocation14 + $0x1c] sm:$0xf]
    %v959 = vld [vmem:[#allocation14 + $0x20] sm:$0xf]
    %v960 = vld [vmem:[#allocation14 + $0x24] sm:$0xf]
    %v961 = vld [vmem:[#allocation14 + $0x28] sm:$0xf]
    %v962 = vld [vmem:[#allocation14 + $0x2c] sm:$0xf]
    %v963 = vld [vmem:[#allocation14 + $0x30] sm:$0xf]
    %v964 = vld [vmem:[#allocation14 + $0x34] sm:$0xf]
    %v965 = vld [vmem:[#allocation14 + $0x38] sm:$0xf]
    %v966 = vld [vmem:[#allocation14 + $0x3c] sm:$0xf]
    %v967 = vld [vmem:[%s11] sm:$0x1]
    %v969 = vlaneseq
    %v970 = vshrl.u32 %v969, 7
    %v971 = vsub.s32 0, %v970
    %v972 = vrot.slane %v967, %v971
    %v990 = vunpack.c.l.b16 %v951
    %v991 = vunpack.c.l.b16 %v952
    %v992 = vunpack.c.l.b16 %v953
    %v993 = vunpack.c.l.b16 %v954
    %v994 = vunpack.c.l.b16 %v955
    %v995 = vunpack.c.l.b16 %v956
    %v996 = vunpack.c.l.b16 %v957
    %v997 = vunpack.c.l.b16 %v958
    %v998 = vunpack.c.l.b16 %v959
    %v999 = vunpack.c.l.b16 %v960
    %v1000 = vunpack.c.l.b16 %v961
    %v1001 = vunpack.c.l.b16 %v962
    %v1002 = vunpack.c.l.b16 %v963
    %v1003 = vunpack.c.l.b16 %v964
    %v1004 = vunpack.c.l.b16 %v965
    %v1005 = vunpack.c.l.b16 %v966
    %v1006 = vpack.c.b16 %v991, %v990
    %v1007 = vpack.c.b16 %v993, %v992
    %v1008 = vpack.c.b16 %v995, %v994
    %v1009 = vpack.c.b16 %v997, %v996
    %v1010 = vpack.c.b16 %v999, %v998
    %v1011 = vpack.c.b16 %v1001, %v1000
    %v1012 = vpack.c.b16 %v1003, %v1002
    %v1013 = vpack.c.b16 %v1005, %v1004
    %1022 = vmatprep.subr.bf16.mxu0 0
    %1023 = vmatpush1.bf16.msra.mxu0 %v1006
    %1024 = vmatprep.subr.bf16.mxu0 0
    %1025 = vmatpush1.bf16.msra.mxu0 %v1007
    %1026 = vmatprep.subr.bf16.mxu0 0
    %1027 = vmatpush1.bf16.msra.mxu0 %v1008
    %1028 = vmatprep.subr.bf16.mxu0 0
    %1029 = vmatpush1.bf16.msra.mxu0 %v1009
    %1030 = vmatprep.subr.bf16.mxu0 0
    %1031 = vmatpush1.bf16.msra.mxu0 %v1010
    %1032 = vmatprep.subr.bf16.mxu0 0
    %1033 = vmatpush1.bf16.msra.mxu0 %v1011
    %1034 = vmatprep.subr.bf16.mxu0 0
    %1035 = vmatpush1.bf16.msra.mxu0 %v1012
    %1036 = vmatprep.subr.bf16.mxu0 0
    %1037 = vmatpush1.bf16.msra.mxu0 %v1013
    %1038 = vmatprep.subr.bf16.mxu0 0
    %1039 = vmatpush1.bf16.msra.mxu0 0
    %1040 = vmatprep.subr.bf16.mxu0 0
    %1041 = vmatpush1.bf16.msra.mxu0 0
    %1042 = vmatprep.subr.bf16.mxu0 0
    %1043 = vmatpush1.bf16.msra.mxu0 0
    %1044 = vmatprep.subr.bf16.mxu0 0
    %1045 = vmatpush1.bf16.msra.mxu0 0
    %1046 = vmatprep.subr.bf16.mxu0 0
    %1047 = vmatpush1.bf16.msra.mxu0 0
    %1048 = vmatprep.subr.bf16.mxu0 0
    %1049 = vmatpush1.bf16.msra.mxu0 0
    %1050 = vmatprep.subr.bf16.mxu0 0
    %1051 = vmatpush1.bf16.msra.mxu0 0
    %1052 = vmatprep.subr.bf16.mxu0 0
    %1053 = vmatpush1.bf16.msra.mxu0 0
    %1054 = vmatprep.mubr.bf16.mxu0 0
    %1055 = vmatmul.mubr.bf16.gmra.mrb[0].mxu0 %v950
    %v1056 = vpop.f32.mrb[0].mxu0
    %v1057 = vadd.f32 %v972, %v1056
    %v1058 = vpop.f32.mrb[0].mxu0
    %v1059 = vpop.f32.mrb[0].mxu0
    %v1060 = vadd.f32 %v972, %v1059
    %v1061 = vpop.f32.mrb[0].mxu0
    %1062 = vdwg.mxu0
    %v1063 = vmax.f32 %v1057, 0.0
    %v1064 = vmax.f32 %v1060, 0.0
    %v1065 = vpack.c.bf16 %v947, %v946
    %v1066 = vld [vmem:[#allocation16] sm:$0xf]
    %v1067 = vld [vmem:[#allocation16 + $0x4] sm:$0xf]
    %v1068 = vld [vmem:[#allocation16 + $0x8] sm:$0xf]
    %v1069 = vld [vmem:[#allocation16 + $0xc] sm:$0xf]
    %v1070 = vld [vmem:[#allocation16 + $0x10] sm:$0xf]
    %v1071 = vld [vmem:[#allocation16 + $0x14] sm:$0xf]
    %v1072 = vld [vmem:[#allocation16 + $0x18] sm:$0xf]
    %v1073 = vld [vmem:[#allocation16 + $0x1c] sm:$0xf]
    %v1074 = vld [vmem:[#allocation16 + $0x20] sm:$0xf]
    %v1075 = vld [vmem:[#allocation16 + $0x24] sm:$0xf]
    %v1076 = vld [vmem:[#allocation16 + $0x28] sm:$0xf]
    %v1077 = vld [vmem:[#allocation16 + $0x2c] sm:$0xf]
    %v1078 = vld [vmem:[#allocation16 + $0x30] sm:$0xf]
    %v1079 = vld [vmem:[#allocation16 + $0x34] sm:$0xf]
    %v1080 = vld [vmem:[#allocation16 + $0x38] sm:$0xf]
    %v1081 = vld [vmem:[#allocation16 + $0x3c] sm:$0xf]
    %v1082 = vpack.c.bf16 %v1064, %v1063
    %v1083 = vld [vmem:[#allocation17] sm:$0xf]
    %v1084 = vld [vmem:[#allocation17 + $0x4] sm:$0xf]
    %v1085 = vld [vmem:[#allocation17 + $0x8] sm:$0xf]
    %v1086 = vld [vmem:[#allocation17 + $0xc] sm:$0xf]
    %v1087 = vld [vmem:[#allocation17 + $0x10] sm:$0xf]
    %v1088 = vld [vmem:[#allocation17 + $0x14] sm:$0xf]
    %v1089 = vld [vmem:[#allocation17 + $0x18] sm:$0xf]
    %v1090 = vld [vmem:[#allocation17 + $0x1c] sm:$0xf]
    %v1091 = vld [vmem:[#allocation17 + $0x20] sm:$0xf]
    %v1092 = vld [vmem:[#allocation17 + $0x24] sm:$0xf]
    %v1093 = vld [vmem:[#allocation17 + $0x28] sm:$0xf]
    %v1094 = vld [vmem:[#allocation17 + $0x2c] sm:$0xf]
    %v1095 = vld [vmem:[#allocation17 + $0x30] sm:$0xf]
    %v1096 = vld [vmem:[#allocation17 + $0x34] sm:$0xf]
    %v1097 = vld [vmem:[#allocation17 + $0x38] sm:$0xf]
    %v1098 = vld [vmem:[#allocation17 + $0x3c] sm:$0xf]
    %v1115 = vunpack.c.l.b16 %v1083
    %v1116 = vunpack.c.l.b16 %v1084
    %v1117 = vunpack.c.l.b16 %v1085
    %v1118 = vunpack.c.l.b16 %v1086
    %v1119 = vunpack.c.l.b16 %v1087
    %v1120 = vunpack.c.l.b16 %v1088
    %v1121 = vunpack.c.l.b16 %v1089
    %v1122 = vunpack.c.l.b16 %v1090
    %v1123 = vunpack.c.l.b16 %v1091
    %v1124 = vunpack.c.l.b16 %v1092
    %v1125 = vunpack.c.l.b16 %v1093
    %v1126 = vunpack.c.l.b16 %v1094
    %v1127 = vunpack.c.l.b16 %v1095
    %v1128 = vunpack.c.l.b16 %v1096
    %v1129 = vunpack.c.l.b16 %v1097
    %v1130 = vunpack.c.l.b16 %v1098
    %v1131 = vpack.c.b16 %v1116, %v1115
    %v1132 = vpack.c.b16 %v1118, %v1117
    %v1133 = vpack.c.b16 %v1120, %v1119
    %v1134 = vpack.c.b16 %v1122, %v1121
    %v1135 = vpack.c.b16 %v1124, %v1123
    %v1136 = vpack.c.b16 %v1126, %v1125
    %v1137 = vpack.c.b16 %v1128, %v1127
    %v1138 = vpack.c.b16 %v1130, %v1129
    %1147 = vmatprep.subr.bf16.mxu0 0
    %1148 = vmatpush1.bf16.msra.mxu0 %v1131
    %1149 = vmatprep.subr.bf16.mxu0 0
    %1150 = vmatpush1.bf16.msra.mxu0 %v1132
    %1151 = vmatprep.subr.bf16.mxu0 0
    %1152 = vmatpush1.bf16.msra.mxu0 %v1133
    %1153 = vmatprep.subr.bf16.mxu0 0
    %1154 = vmatpush1.bf16.msra.mxu0 %v1134
    %1155 = vmatprep.subr.bf16.mxu0 0
    %1156 = vmatpush1.bf16.msra.mxu0 %v1135
    %1157 = vmatprep.subr.bf16.mxu0 0
    %1158 = vmatpush1.bf16.msra.mxu0 %v1136
    %1159 = vmatprep.subr.bf16.mxu0 0
    %1160 = vmatpush1.bf16.msra.mxu0 %v1137
    %1161 = vmatprep.subr.bf16.mxu0 0
    %1162 = vmatpush1.bf16.msra.mxu0 %v1138
    %1163 = vmatprep.subr.bf16.mxu0 0
    %1164 = vmatpush1.bf16.msra.mxu0 0
    %1165 = vmatprep.subr.bf16.mxu0 0
    %1166 = vmatpush1.bf16.msra.mxu0 0
    %1167 = vmatprep.subr.bf16.mxu0 0
    %1168 = vmatpush1.bf16.msra.mxu0 0
    %1169 = vmatprep.subr.bf16.mxu0 0
    %1170 = vmatpush1.bf16.msra.mxu0 0
    %1171 = vmatprep.subr.bf16.mxu0 0
    %1172 = vmatpush1.bf16.msra.mxu0 0
    %1173 = vmatprep.subr.bf16.mxu0 0
    %1174 = vmatpush1.bf16.msra.mxu0 0
    %1175 = vmatprep.subr.bf16.mxu0 0
    %1176 = vmatpush1.bf16.msra.mxu0 0
    %1177 = vmatprep.subr.bf16.mxu0 0
    %1178 = vmatpush1.bf16.msra.mxu0 0
    %1179 = vmatprep.mubr.bf16.mxu0 0
    %1180 = vmatmul.mubr.bf16.gmra.mrb[0].mxu0 %v1082
    %v1181 = vpop.f32.mrb[0].mxu0
    %v1182 = vadd.f32 0.0, %v1181
    %v1183 = vpop.f32.mrb[0].mxu0
    %v1184 = vpop.f32.mrb[0].mxu0
    %v1185 = vadd.f32 0.0, %v1184
    %v1186 = vpop.f32.mrb[0].mxu0
    %1187 = vdwg.mxu0
    %v1204 = vunpack.c.l.b16 %v1066
    %v1205 = vunpack.c.l.b16 %v1067
    %v1206 = vunpack.c.l.b16 %v1068
    %v1207 = vunpack.c.l.b16 %v1069
    %v1208 = vunpack.c.l.b16 %v1070
    %v1209 = vunpack.c.l.b16 %v1071
    %v1210 = vunpack.c.l.b16 %v1072
    %v1211 = vunpack.c.l.b16 %v1073
    %v1212 = vunpack.c.l.b16 %v1074
    %v1213 = vunpack.c.l.b16 %v1075
    %v1214 = vunpack.c.l.b16 %v1076
    %v1215 = vunpack.c.l.b16 %v1077
    %v1216 = vunpack.c.l.b16 %v1078
    %v1217 = vunpack.c.l.b16 %v1079
    %v1218 = vunpack.c.l.b16 %v1080
    %v1219 = vunpack.c.l.b16 %v1081
    %v1220 = vpack.c.b16 %v1205, %v1204
    %v1221 = vpack.c.b16 %v1207, %v1206
    %v1222 = vpack.c.b16 %v1209, %v1208
    %v1223 = vpack.c.b16 %v1211, %v1210
    %v1224 = vpack.c.b16 %v1213, %v1212
    %v1225 = vpack.c.b16 %v1215, %v1214
    %v1226 = vpack.c.b16 %v1217, %v1216
    %v1227 = vpack.c.b16 %v1219, %v1218
    %1236 = vmatprep.subr.bf16.mxu0 0
    %1237 = vmatpush1.bf16.msra.mxu0 %v1220
    %1238 = vmatprep.subr.bf16.mxu0 0
    %1239 = vmatpush1.bf16.msra.mxu0 %v1221
    %1240 = vmatprep.subr.bf16.mxu0 0
    %1241 = vmatpush1.bf16.msra.mxu0 %v1222
    %1242 = vmatprep.subr.bf16.mxu0 0
    %1243 = vmatpush1.bf16.msra.mxu0 %v1223
    %1244 = vmatprep.subr.bf16.mxu0 0
    %1245 = vmatpush1.bf16.msra.mxu0 %v1224
    %1246 = vmatprep.subr.bf16.mxu0 0
    %1247 = vmatpush1.bf16.msra.mxu0 %v1225
    %1248 = vmatprep.subr.bf16.mxu0 0
    %1249 = vmatpush1.bf16.msra.mxu0 %v1226
    %1250 = vmatprep.subr.bf16.mxu0 0
    %1251 = vmatpush1.bf16.msra.mxu0 %v1227
    %1252 = vmatprep.subr.bf16.mxu0 0
    %1253 = vmatpush1.bf16.msra.mxu0 0
    %1254 = vmatprep.subr.bf16.mxu0 0
    %1255 = vmatpush1.bf16.msra.mxu0 0
    %1256 = vmatprep.subr.bf16.mxu0 0
    %1257 = vmatpush1.bf16.msra.mxu0 0
    %1258 = vmatprep.subr.bf16.mxu0 0
    %1259 = vmatpush1.bf16.msra.mxu0 0
    %1260 = vmatprep.subr.bf16.mxu0 0
    %1261 = vmatpush1.bf16.msra.mxu0 0
    %1262 = vmatprep.subr.bf16.mxu0 0
    %1263 = vmatpush1.bf16.msra.mxu0 0
    %1264 = vmatprep.subr.bf16.mxu0 0
    %1265 = vmatpush1.bf16.msra.mxu0 0
    %1266 = vmatprep.subr.bf16.mxu0 0
    %1267 = vmatpush1.bf16.msra.mxu0 0
    %1268 = vmatprep.mubr.bf16.mxu0 0
    %1269 = vmatmul.mubr.bf16.gmra.mrb[0].mxu0 %v1065
    %v1270 = vpop.f32.mrb[0].mxu0
    %v1271 = vadd.f32 %v1182, %v1270
    %v1272 = vpop.f32.mrb[0].mxu0
    %v1273 = vpop.f32.mrb[0].mxu0
    %v1274 = vadd.f32 %v1185, %v1273
    %v1275 = vpop.f32.mrb[0].mxu0
    %1276 = vdwg.mxu0
    %v1277 = vld [vmem:[#allocation19] sm:$0xf]
    %v1278 = vld [vmem:[#allocation19 + $0x4] sm:$0xf]
    %v1279 = vld [vmem:[#allocation19 + $0x8] sm:$0xf]
    %v1280 = vld [vmem:[#allocation19 + $0xc] sm:$0xf]
    %v1281 = vld [vmem:[#allocation19 + $0x10] sm:$0xf]
    %v1282 = vld [vmem:[#allocation19 + $0x14] sm:$0xf]
    %v1283 = vld [vmem:[#allocation19 + $0x18] sm:$0xf]
    %v1284 = vld [vmem:[#allocation19 + $0x1c] sm:$0xf]
    %v1285 = vld [vmem:[#allocation19 + $0x20] sm:$0xf]
    %v1286 = vld [vmem:[#allocation19 + $0x24] sm:$0xf]
    %v1287 = vld [vmem:[#allocation19 + $0x28] sm:$0xf]
    %v1288 = vld [vmem:[#allocation19 + $0x2c] sm:$0xf]
    %v1289 = vld [vmem:[#allocation19 + $0x30] sm:$0xf]
    %v1290 = vld [vmem:[#allocation19 + $0x34] sm:$0xf]
    %v1291 = vld [vmem:[#allocation19 + $0x38] sm:$0xf]
    %v1292 = vld [vmem:[#allocation19 + $0x3c] sm:$0xf]
    %v1309 = vunpack.c.l.b16 %v1277
    %v1310 = vunpack.c.l.b16 %v1278
    %v1311 = vunpack.c.l.b16 %v1279
    %v1312 = vunpack.c.l.b16 %v1280
    %v1313 = vunpack.c.l.b16 %v1281
    %v1314 = vunpack.c.l.b16 %v1282
    %v1315 = vunpack.c.l.b16 %v1283
    %v1316 = vunpack.c.l.b16 %v1284
    %v1317 = vunpack.c.l.b16 %v1285
    %v1318 = vunpack.c.l.b16 %v1286
    %v1319 = vunpack.c.l.b16 %v1287
    %v1320 = vunpack.c.l.b16 %v1288
    %v1321 = vunpack.c.l.b16 %v1289
    %v1322 = vunpack.c.l.b16 %v1290
    %v1323 = vunpack.c.l.b16 %v1291
    %v1324 = vunpack.c.l.b16 %v1292
    %v1325 = vpack.c.b16 %v1310, %v1309
    %v1326 = vpack.c.b16 %v1312, %v1311
    %v1327 = vpack.c.b16 %v1314, %v1313
    %v1328 = vpack.c.b16 %v1316, %v1315
    %v1329 = vpack.c.b16 %v1318, %v1317
    %v1330 = vpack.c.b16 %v1320, %v1319
    %v1331 = vpack.c.b16 %v1322, %v1321
    %v1332 = vpack.c.b16 %v1324, %v1323
    %1341 = vmatprep.subr.bf16.mxu0 0
    %1342 = vmatpush1.bf16.msra.mxu0 %v1325
    %1343 = vmatprep.subr.bf16.mxu0 0
    %1344 = vmatpush1.bf16.msra.mxu0 %v1326
    %1345 = vmatprep.subr.bf16.mxu0 0
    %1346 = vmatpush1.bf16.msra.mxu0 %v1327
    %1347 = vmatprep.subr.bf16.mxu0 0
    %1348 = vmatpush1.bf16.msra.mxu0 %v1328
    %1349 = vmatprep.subr.bf16.mxu0 0
    %1350 = vmatpush1.bf16.msra.mxu0 %v1329
    %1351 = vmatprep.subr.bf16.mxu0 0
    %1352 = vmatpush1.bf16.msra.mxu0 %v1330
    %1353 = vmatprep.subr.bf16.mxu0 0
    %1354 = vmatpush1.bf16.msra.mxu0 %v1331
    %1355 = vmatprep.subr.bf16.mxu0 0
    %1356 = vmatpush1.bf16.msra.mxu0 %v1332
    %1357 = vmatprep.subr.bf16.mxu0 0
    %1358 = vmatpush1.bf16.msra.mxu0 0
    %1359 = vmatprep.subr.bf16.mxu0 0
    %1360 = vmatpush1.bf16.msra.mxu0 0
    %1361 = vmatprep.subr.bf16.mxu0 0
    %1362 = vmatpush1.bf16.msra.mxu0 0
    %1363 = vmatprep.subr.bf16.mxu0 0
    %1364 = vmatpush1.bf16.msra.mxu0 0
    %1365 = vmatprep.subr.bf16.mxu0 0
    %1366 = vmatpush1.bf16.msra.mxu0 0
    %1367 = vmatprep.subr.bf16.mxu0 0
    %1368 = vmatpush1.bf16.msra.mxu0 0
    %1369 = vmatprep.subr.bf16.mxu0 0
    %1370 = vmatpush1.bf16.msra.mxu0 0
    %1371 = vmatprep.subr.bf16.mxu0 0
    %1372 = vmatpush1.bf16.msra.mxu0 0
    %1373 = vmatprep.mubr.bf16.mxu0 0
    %1374 = vmatmul.mubr.bf16.gmra.mrb[0].mxu0 %v257
    %v1375 = vpop.f32.mrb[0].mxu0
    %v1376 = vadd.f32 0.0, %v1375
    %v1377 = vpop.f32.mrb[0].mxu0
    %v1378 = vpop.f32.mrb[0].mxu0
    %v1379 = vadd.f32 0.0, %v1378
    %v1380 = vpop.f32.mrb[0].mxu0
    %1381 = vdwg.mxu0
    %v1382 = vadd.f32 %v1271, %v1376
    %v1383 = vadd.f32 %v1274, %v1379
    %v1384 = vld [vmem:[%s15] sm:$0x1]
    %v1386 = vlaneseq
    %v1387 = vshrl.u32 %v1386, 7
    %v1388 = vsub.s32 0, %v1387
    %v1389 = vrot.slane %v1384, %v1388
    %v1391 = vadd.f32 %v1382, %v1389
    %v1392 = vadd.f32 %v1383, %v1389
    %v1393 = vpack.c.bf16 %v1392, %v1391
    %v1394 = vld [vmem:[#allocation20] sm:$0xff]
    %v1395 = vld [vmem:[#allocation20 + $0x8] sm:$0xff]
    %v1396 = vld [vmem:[#allocation20 + $0x10] sm:$0xff]
    %v1397 = vld [vmem:[#allocation20 + $0x18] sm:$0xff]
    %v1398 = vld [vmem:[#allocation20 + $0x20] sm:$0xff]
    %v1399 = vld [vmem:[#allocation20 + $0x28] sm:$0xff]
    %v1400 = vld [vmem:[#allocation20 + $0x30] sm:$0xff]
    %v1401 = vld [vmem:[#allocation20 + $0x38] sm:$0xff]
    %v1402 = vld [vmem:[#allocation20 + $0x40] sm:$0xff]
    %v1403 = vld [vmem:[#allocation20 + $0x48] sm:$0xff]
    %v1404 = vld [vmem:[#allocation20 + $0x50] sm:$0xff]
    %v1405 = vld [vmem:[#allocation20 + $0x58] sm:$0xff]
    %v1406 = vld [vmem:[#allocation20 + $0x60] sm:$0xff]
    %v1407 = vld [vmem:[#allocation20 + $0x68] sm:$0xff]
    %v1408 = vld [vmem:[#allocation20 + $0x70] sm:$0xff]
    %v1409 = vld [vmem:[#allocation20 + $0x78] sm:$0xff]
    %v1410 = vld [vmem:[#allocation20 + $0x80] sm:$0xff]
    %v1411 = vld [vmem:[#allocation20 + $0x88] sm:$0xff]
    %v1412 = vld [vmem:[#allocation20 + $0x90] sm:$0xff]
    %v1413 = vld [vmem:[#allocation20 + $0x98] sm:$0xff]
    %v1414 = vld [vmem:[#allocation20 + $0xa0] sm:$0xff]
    %v1415 = vld [vmem:[#allocation20 + $0xa8] sm:$0xff]
    %v1416 = vld [vmem:[#allocation20 + $0xb0] sm:$0xff]
    %v1417 = vld [vmem:[#allocation20 + $0xb8] sm:$0xff]
    %v1418 = vld [vmem:[#allocation20 + $0xc0] sm:$0xff]
    %v1419 = vld [vmem:[#allocation20 + $0xc8] sm:$0xff]
    %v1420 = vld [vmem:[#allocation20 + $0xd0] sm:$0xff]
    %v1421 = vld [vmem:[#allocation20 + $0xd8] sm:$0xff]
    %v1422 = vld [vmem:[#allocation20 + $0xe0] sm:$0xff]
    %v1423 = vld [vmem:[#allocation20 + $0xe8] sm:$0xff]
    %v1424 = vld [vmem:[#allocation20 + $0xf0] sm:$0xff]
    %v1425 = vld [vmem:[#allocation20 + $0xf8] sm:$0xff]
    %v1426 = vld [vmem:[#allocation20 + $0x100] sm:$0xff]
    %v1427 = vld [vmem:[#allocation20 + $0x108] sm:$0xff]
    %v1428 = vld [vmem:[#allocation20 + $0x110] sm:$0xff]
    %v1429 = vld [vmem:[#allocation20 + $0x118] sm:$0xff]
    %v1430 = vld [vmem:[#allocation20 + $0x120] sm:$0xff]
    %v1431 = vld [vmem:[#allocation20 + $0x128] sm:$0xff]
    %v1432 = vld [vmem:[#allocation20 + $0x130] sm:$0xff]
    %v1433 = vld [vmem:[#allocation20 + $0x138] sm:$0xff]
    %v1434 = vld [vmem:[#allocation20 + $0x140] sm:$0xff]
    %v1435 = vld [vmem:[#allocation20 + $0x148] sm:$0xff]
    %v1436 = vld [vmem:[#allocation20 + $0x150] sm:$0xff]
    %v1437 = vld [vmem:[#allocation20 + $0x158] sm:$0xff]
    %v1438 = vld [vmem:[#allocation20 + $0x160] sm:$0xff]
    %v1439 = vld [vmem:[#allocation20 + $0x168] sm:$0xff]
    %v1440 = vld [vmem:[#allocation20 + $0x170] sm:$0xff]
    %v1441 = vld [vmem:[#allocation20 + $0x178] sm:$0xff]
    %v1442 = vld [vmem:[#allocation20 + $0x180] sm:$0xff]
    %v1443 = vld [vmem:[#allocation20 + $0x188] sm:$0xff]
    %v1444 = vld [vmem:[#allocation20 + $0x190] sm:$0xff]
    %v1445 = vld [vmem:[#allocation20 + $0x198] sm:$0xff]
    %v1446 = vld [vmem:[#allocation20 + $0x1a0] sm:$0xff]
    %v1447 = vld [vmem:[#allocation20 + $0x1a8] sm:$0xff]
    %v1448 = vld [vmem:[#allocation20 + $0x1b0] sm:$0xff]
    %v1449 = vld [vmem:[#allocation20 + $0x1b8] sm:$0xff]
    %v1450 = vld [vmem:[#allocation20 + $0x1c0] sm:$0xff]
    %v1451 = vld [vmem:[#allocation20 + $0x1c8] sm:$0xff]
    %v1452 = vld [vmem:[#allocation20 + $0x1d0] sm:$0xff]
    %v1453 = vld [vmem:[#allocation20 + $0x1d8] sm:$0xff]
    %v1454 = vld [vmem:[#allocation20 + $0x1e0] sm:$0xff]
    %v1455 = vld [vmem:[#allocation20 + $0x1e8] sm:$0xff]
    %v1456 = vld [vmem:[#allocation20 + $0x1f0] sm:$0xff]
    %v1457 = vld [vmem:[#allocation20 + $0x1f8] sm:$0xff]
    %v1458 = vld [vmem:[%s17] sm:$0xff]
    %v1460 = vlaneseq
    %v1461 = vshrl.u32 %v1460, 7
    %v1462 = vsub.s32 0, %v1461
    %v1463 = vrot.slane %v1458, %v1462
    %v1464 = vlaneseq
    %v1465 = vshrl.u32 %v1464, 7
    %v1466 = vsub.s32 1, %v1465
    %v1467 = vrot.slane %v1458, %v1466
    %v1468 = vlaneseq
    %v1469 = vshrl.u32 %v1468, 7
    %v1470 = vsub.s32 2, %v1469
    %v1471 = vrot.slane %v1458, %v1470
    %v1472 = vlaneseq
    %v1473 = vshrl.u32 %v1472, 7
    %v1474 = vsub.s32 3, %v1473
    %v1475 = vrot.slane %v1458, %v1474
    %v1476 = vlaneseq
    %v1477 = vshrl.u32 %v1476, 7
    %v1478 = vsub.s32 4, %v1477
    %v1479 = vrot.slane %v1458, %v1478
    %v1480 = vlaneseq
    %v1481 = vshrl.u32 %v1480, 7
    %v1482 = vsub.s32 5, %v1481
    %v1483 = vrot.slane %v1458, %v1482
    %v1484 = vlaneseq
    %v1485 = vshrl.u32 %v1484, 7
    %v1486 = vsub.s32 6, %v1485
    %v1487 = vrot.slane %v1458, %v1486
    %v1488 = vlaneseq
    %v1489 = vshrl.u32 %v1488, 7
    %v1490 = vsub.s32 7, %v1489
    %v1491 = vrot.slane %v1458, %v1490
    %v1564 = vunpack.c.l.b16 %v1394
    %v1565 = vunpack.c.h.b16 %v1394
    %v1566 = vunpack.c.l.b16 %v1395
    %v1567 = vunpack.c.h.b16 %v1395
    %v1568 = vunpack.c.l.b16 %v1396
    %v1569 = vunpack.c.h.b16 %v1396
    %v1570 = vunpack.c.l.b16 %v1397
    %v1571 = vunpack.c.h.b16 %v1397
    %v1572 = vunpack.c.l.b16 %v1398
    %v1573 = vunpack.c.h.b16 %v1398
    %v1574 = vunpack.c.l.b16 %v1399
    %v1575 = vunpack.c.h.b16 %v1399
    %v1576 = vunpack.c.l.b16 %v1400
    %v1577 = vunpack.c.h.b16 %v1400
    %v1578 = vunpack.c.l.b16 %v1401
    %v1579 = vunpack.c.h.b16 %v1401
    %v1580 = vunpack.c.l.b16 %v1402
    %v1581 = vunpack.c.h.b16 %v1402
    %v1582 = vunpack.c.l.b16 %v1403
    %v1583 = vunpack.c.h.b16 %v1403
    %v1584 = vunpack.c.l.b16 %v1404
    %v1585 = vunpack.c.h.b16 %v1404
    %v1586 = vunpack.c.l.b16 %v1405
    %v1587 = vunpack.c.h.b16 %v1405
    %v1588 = vunpack.c.l.b16 %v1406
    %v1589 = vunpack.c.h.b16 %v1406
    %v1590 = vunpack.c.l.b16 %v1407
    %v1591 = vunpack.c.h.b16 %v1407
    %v1592 = vunpack.c.l.b16 %v1408
    %v1593 = vunpack.c.h.b16 %v1408
    %v1594 = vunpack.c.l.b16 %v1409
    %v1595 = vunpack.c.h.b16 %v1409
    %v1596 = vunpack.c.l.b16 %v1410
    %v1597 = vunpack.c.h.b16 %v1410
    %v1598 = vunpack.c.l.b16 %v1411
    %v1599 = vunpack.c.h.b16 %v1411
    %v1600 = vunpack.c.l.b16 %v1412
    %v1601 = vunpack.c.h.b16 %v1412
    %v1602 = vunpack.c.l.b16 %v1413
    %v1603 = vunpack.c.h.b16 %v1413
    %v1604 = vunpack.c.l.b16 %v1414
    %v1605 = vunpack.c.h.b16 %v1414
    %v1606 = vunpack.c.l.b16 %v1415
    %v1607 = vunpack.c.h.b16 %v1415
    %v1608 = vunpack.c.l.b16 %v1416
    %v1609 = vunpack.c.h.b16 %v1416
    %v1610 = vunpack.c.l.b16 %v1417
    %v1611 = vunpack.c.h.b16 %v1417
    %v1612 = vunpack.c.l.b16 %v1418
    %v1613 = vunpack.c.h.b16 %v1418
    %v1614 = vunpack.c.l.b16 %v1419
    %v1615 = vunpack.c.h.b16 %v1419
    %v1616 = vunpack.c.l.b16 %v1420
    %v1617 = vunpack.c.h.b16 %v1420
    %v1618 = vunpack.c.l.b16 %v1421
    %v1619 = vunpack.c.h.b16 %v1421
    %v1620 = vunpack.c.l.b16 %v1422
    %v1621 = vunpack.c.h.b16 %v1422
    %v1622 = vunpack.c.l.b16 %v1423
    %v1623 = vunpack.c.h.b16 %v1423
    %v1624 = vunpack.c.l.b16 %v1424
    %v1625 = vunpack.c.h.b16 %v1424
    %v1626 = vunpack.c.l.b16 %v1425
    %v1627 = vunpack.c.h.b16 %v1425
    %v1628 = vunpack.c.l.b16 %v1426
    %v1629 = vunpack.c.h.b16 %v1426
    %v1630 = vunpack.c.l.b16 %v1427
    %v1631 = vunpack.c.h.b16 %v1427
    %v1632 = vunpack.c.l.b16 %v1428
    %v1633 = vunpack.c.h.b16 %v1428
    %v1634 = vunpack.c.l.b16 %v1429
    %v1635 = vunpack.c.h.b16 %v1429
    %v1636 = vunpack.c.l.b16 %v1430
    %v1637 = vunpack.c.h.b16 %v1430
    %v1638 = vunpack.c.l.b16 %v1431
    %v1639 = vunpack.c.h.b16 %v1431
    %v1640 = vunpack.c.l.b16 %v1432
    %v1641 = vunpack.c.h.b16 %v1432
    %v1642 = vunpack.c.l.b16 %v1433
    %v1643 = vunpack.c.h.b16 %v1433
    %v1644 = vunpack.c.l.b16 %v1434
    %v1645 = vunpack.c.h.b16 %v1434
    %v1646 = vunpack.c.l.b16 %v1435
    %v1647 = vunpack.c.h.b16 %v1435
    %v1648 = vunpack.c.l.b16 %v1436
    %v1649 = vunpack.c.h.b16 %v1436
    %v1650 = vunpack.c.l.b16 %v1437
    %v1651 = vunpack.c.h.b16 %v1437
    %v1652 = vunpack.c.l.b16 %v1438
    %v1653 = vunpack.c.h.b16 %v1438
    %v1654 = vunpack.c.l.b16 %v1439
    %v1655 = vunpack.c.h.b16 %v1439
    %v1656 = vunpack.c.l.b16 %v1440
    %v1657 = vunpack.c.h.b16 %v1440
    %v1658 = vunpack.c.l.b16 %v1441
    %v1659 = vunpack.c.h.b16 %v1441
    %v1660 = vunpack.c.l.b16 %v1442
    %v1661 = vunpack.c.h.b16 %v1442
    %v1662 = vunpack.c.l.b16 %v1443
    %v1663 = vunpack.c.h.b16 %v1443
    %v1664 = vunpack.c.l.b16 %v1444
    %v1665 = vunpack.c.h.b16 %v1444
    %v1666 = vunpack.c.l.b16 %v1445
    %v1667 = vunpack.c.h.b16 %v1445
    %v1668 = vunpack.c.l.b16 %v1446
    %v1669 = vunpack.c.h.b16 %v1446
    %v1670 = vunpack.c.l.b16 %v1447
    %v1671 = vunpack.c.h.b16 %v1447
    %v1672 = vunpack.c.l.b16 %v1448
    %v1673 = vunpack.c.h.b16 %v1448
    %v1674 = vunpack.c.l.b16 %v1449
    %v1675 = vunpack.c.h.b16 %v1449
    %v1676 = vunpack.c.l.b16 %v1450
    %v1677 = vunpack.c.h.b16 %v1450
    %v1678 = vunpack.c.l.b16 %v1451
    %v1679 = vunpack.c.h.b16 %v1451
    %v1680 = vunpack.c.l.b16 %v1452
    %v1681 = vunpack.c.h.b16 %v1452
    %v1682 = vunpack.c.l.b16 %v1453
    %v1683 = vunpack.c.h.b16 %v1453
    %v1684 = vunpack.c.l.b16 %v1454
    %v1685 = vunpack.c.h.b16 %v1454
    %v1686 = vunpack.c.l.b16 %v1455
    %v1687 = vunpack.c.h.b16 %v1455
    %v1688 = vunpack.c.l.b16 %v1456
    %v1689 = vunpack.c.h.b16 %v1456
    %v1690 = vunpack.c.l.b16 %v1457
    %v1691 = vunpack.c.h.b16 %v1457
    %v1692 = vpack.c.b16 %v1572, %v1564
    %v1693 = vpack.c.b16 %v1573, %v1565
    %v1694 = vpack.c.b16 %v1574, %v1566
    %v1695 = vpack.c.b16 %v1575, %v1567
    %v1696 = vpack.c.b16 %v1576, %v1568
    %v1697 = vpack.c.b16 %v1577, %v1569
    %v1698 = vpack.c.b16 %v1578, %v1570
    %v1699 = vpack.c.b16 %v1579, %v1571
    %v1700 = vpack.c.b16 %v1588, %v1580
    %v1701 = vpack.c.b16 %v1589, %v1581
    %v1702 = vpack.c.b16 %v1590, %v1582
    %v1703 = vpack.c.b16 %v1591, %v1583
    %v1704 = vpack.c.b16 %v1592, %v1584
    %v1705 = vpack.c.b16 %v1593, %v1585
    %v1706 = vpack.c.b16 %v1594, %v1586
    %v1707 = vpack.c.b16 %v1595, %v1587
    %v1708 = vpack.c.b16 %v1604, %v1596
    %v1709 = vpack.c.b16 %v1605, %v1597
    %v1710 = vpack.c.b16 %v1606, %v1598
    %v1711 = vpack.c.b16 %v1607, %v1599
    %v1712 = vpack.c.b16 %v1608, %v1600
    %v1713 = vpack.c.b16 %v1609, %v1601
    %v1714 = vpack.c.b16 %v1610, %v1602
    %v1715 = vpack.c.b16 %v1611, %v1603
    %v1716 = vpack.c.b16 %v1620, %v1612
    %v1717 = vpack.c.b16 %v1621, %v1613
    %v1718 = vpack.c.b16 %v1622, %v1614
    %v1719 = vpack.c.b16 %v1623, %v1615
    %v1720 = vpack.c.b16 %v1624, %v1616
    %v1721 = vpack.c.b16 %v1625, %v1617
    %v1722 = vpack.c.b16 %v1626, %v1618
    %v1723 = vpack.c.b16 %v1627, %v1619
    %v1724 = vpack.c.b16 %v1636, %v1628
    %v1725 = vpack.c.b16 %v1637, %v1629
    %v1726 = vpack.c.b16 %v1638, %v1630
    %v1727 = vpack.c.b16 %v1639, %v1631
    %v1728 = vpack.c.b16 %v1640, %v1632
    %v1729 = vpack.c.b16 %v1641, %v1633
    %v1730 = vpack.c.b16 %v1642, %v1634
    %v1731 = vpack.c.b16 %v1643, %v1635
    %v1732 = vpack.c.b16 %v1652, %v1644
    %v1733 = vpack.c.b16 %v1653, %v1645
    %v1734 = vpack.c.b16 %v1654, %v1646
    %v1735 = vpack.c.b16 %v1655, %v1647
    %v1736 = vpack.c.b16 %v1656, %v1648
    %v1737 = vpack.c.b16 %v1657, %v1649
    %v1738 = vpack.c.b16 %v1658, %v1650
    %v1739 = vpack.c.b16 %v1659, %v1651
    %v1740 = vpack.c.b16 %v1668, %v1660
    %v1741 = vpack.c.b16 %v1669, %v1661
    %v1742 = vpack.c.b16 %v1670, %v1662
    %v1743 = vpack.c.b16 %v1671, %v1663
    %v1744 = vpack.c.b16 %v1672, %v1664
    %v1745 = vpack.c.b16 %v1673, %v1665
    %v1746 = vpack.c.b16 %v1674, %v1666
    %v1747 = vpack.c.b16 %v1675, %v1667
    %v1748 = vpack.c.b16 %v1684, %v1676
    %v1749 = vpack.c.b16 %v1685, %v1677
    %v1750 = vpack.c.b16 %v1686, %v1678
    %v1751 = vpack.c.b16 %v1687, %v1679
    %v1752 = vpack.c.b16 %v1688, %v1680
    %v1753 = vpack.c.b16 %v1689, %v1681
    %v1754 = vpack.c.b16 %v1690, %v1682
    %v1755 = vpack.c.b16 %v1691, %v1683
    %1820 = vmatprep.subr.bf16.mxu0 %v1693
    %1821 = vmatpush1.bf16.msra.mxu0 %v1692
    %1822 = vmatprep.subr.bf16.mxu0 %v1701
    %1823 = vmatpush1.bf16.msra.mxu0 %v1700
    %1824 = vmatprep.subr.bf16.mxu0 %v1709
    %1825 = vmatpush1.bf16.msra.mxu0 %v1708
    %1826 = vmatprep.subr.bf16.mxu0 %v1717
    %1827 = vmatpush1.bf16.msra.mxu0 %v1716
    %1828 = vmatprep.subr.bf16.mxu0 %v1725
    %1829 = vmatpush1.bf16.msra.mxu0 %v1724
    %1830 = vmatprep.subr.bf16.mxu0 %v1733
    %1831 = vmatpush1.bf16.msra.mxu0 %v1732
    %1832 = vmatprep.subr.bf16.mxu0 %v1741
    %1833 = vmatpush1.bf16.msra.mxu0 %v1740
    %1834 = vmatprep.subr.bf16.mxu0 %v1749
    %1835 = vmatpush1.bf16.msra.mxu0 %v1748
    %1836 = vmatprep.subr.bf16.mxu0 0
    %1837 = vmatpush1.bf16.msra.mxu0 0
    %1838 = vmatprep.subr.bf16.mxu0 0
    %1839 = vmatpush1.bf16.msra.mxu0 0
    %1840 = vmatprep.subr.bf16.mxu0 0
    %1841 = vmatpush1.bf16.msra.mxu0 0
    %1842 = vmatprep.subr.bf16.mxu0 0
    %1843 = vmatpush1.bf16.msra.mxu0 0
    %1844 = vmatprep.subr.bf16.mxu0 0
    %1845 = vmatpush1.bf16.msra.mxu0 0
    %1846 = vmatprep.subr.bf16.mxu0 0
    %1847 = vmatpush1.bf16.msra.mxu0 0
    %1848 = vmatprep.subr.bf16.mxu0 0
    %1849 = vmatpush1.bf16.msra.mxu0 0
    %1850 = vmatprep.subr.bf16.mxu0 0
    %1851 = vmatpush1.bf16.msra.mxu0 0
    %1852 = vmatprep.mubr.bf16.mxu0 0
    %1853 = vmatmul.mubr.bf16.gmra.mrb[0].mxu0 %v1393
    %v1854 = vpop.f32.mrb[0].mxu0
    %v1855 = vadd.f32 %v1463, %v1854
    %v1856 = vpop.f32.mrb[0].mxu0
    %v1857 = vadd.f32 %v1467, %v1856
    %v1858 = vpop.f32.mrb[0].mxu0
    %v1859 = vadd.f32 %v1463, %v1858
    %v1860 = vpop.f32.mrb[0].mxu0
    %v1861 = vadd.f32 %v1467, %v1860
    %1862 = vdwg.mxu0
    %1863 = vmatprep.subr.bf16.mxu0 %v1695
    %1864 = vmatpush1.bf16.msra.mxu0 %v1694
    %1865 = vmatprep.subr.bf16.mxu0 %v1703
    %1866 = vmatpush1.bf16.msra.mxu0 %v1702
    %1867 = vmatprep.subr.bf16.mxu0 %v1711
    %1868 = vmatpush1.bf16.msra.mxu0 %v1710
    %1869 = vmatprep.subr.bf16.mxu0 %v1719
    %1870 = vmatpush1.bf16.msra.mxu0 %v1718
    %1871 = vmatprep.subr.bf16.mxu0 %v1727
    %1872 = vmatpush1.bf16.msra.mxu0 %v1726
    %1873 = vmatprep.subr.bf16.mxu0 %v1735
    %1874 = vmatpush1.bf16.msra.mxu0 %v1734
    %1875 = vmatprep.subr.bf16.mxu0 %v1743
    %1876 = vmatpush1.bf16.msra.mxu0 %v1742
    %1877 = vmatprep.subr.bf16.mxu0 %v1751
    %1878 = vmatpush1.bf16.msra.mxu0 %v1750
    %1879 = vmatprep.subr.bf16.mxu0 0
    %1880 = vmatpush1.bf16.msra.mxu0 0
    %1881 = vmatprep.subr.bf16.mxu0 0
    %1882 = vmatpush1.bf16.msra.mxu0 0
    %1883 = vmatprep.subr.bf16.mxu0 0
    %1884 = vmatpush1.bf16.msra.mxu0 0
    %1885 = vmatprep.subr.bf16.mxu0 0
    %1886 = vmatpush1.bf16.msra.mxu0 0
    %1887 = vmatprep.subr.bf16.mxu0 0
    %1888 = vmatpush1.bf16.msra.mxu0 0
    %1889 = vmatprep.subr.bf16.mxu0 0
    %1890 = vmatpush1.bf16.msra.mxu0 0
    %1891 = vmatprep.subr.bf16.mxu0 0
    %1892 = vmatpush1.bf16.msra.mxu0 0
    %1893 = vmatprep.subr.bf16.mxu0 0
    %1894 = vmatpush1.bf16.msra.mxu0 0
    %1895 = vmatprep.mubr.bf16.mxu0 0
    %1896 = vmatmul.mubr.bf16.gmra.mrb[0].mxu0 %v1393
    %v1897 = vpop.f32.mrb[0].mxu0
    %v1898 = vadd.f32 %v1471, %v1897
    %v1899 = vpop.f32.mrb[0].mxu0
    %v1900 = vadd.f32 %v1475, %v1899
    %v1901 = vpop.f32.mrb[0].mxu0
    %v1902 = vadd.f32 %v1471, %v1901
    %v1903 = vpop.f32.mrb[0].mxu0
    %v1904 = vadd.f32 %v1475, %v1903
    %1905 = vdwg.mxu0
    %1906 = vmatprep.subr.bf16.mxu0 %v1697
    %1907 = vmatpush1.bf16.msra.mxu0 %v1696
    %1908 = vmatprep.subr.bf16.mxu0 %v1705
    %1909 = vmatpush1.bf16.msra.mxu0 %v1704
    %1910 = vmatprep.subr.bf16.mxu0 %v1713
    %1911 = vmatpush1.bf16.msra.mxu0 %v1712
    %1912 = vmatprep.subr.bf16.mxu0 %v1721
    %1913 = vmatpush1.bf16.msra.mxu0 %v1720
    %1914 = vmatprep.subr.bf16.mxu0 %v1729
    %1915 = vmatpush1.bf16.msra.mxu0 %v1728
    %1916 = vmatprep.subr.bf16.mxu0 %v1737
    %1917 = vmatpush1.bf16.msra.mxu0 %v1736
    %1918 = vmatprep.subr.bf16.mxu0 %v1745
    %1919 = vmatpush1.bf16.msra.mxu0 %v1744
    %1920 = vmatprep.subr.bf16.mxu0 %v1753
    %1921 = vmatpush1.bf16.msra.mxu0 %v1752
    %1922 = vmatprep.subr.bf16.mxu0 0
    %1923 = vmatpush1.bf16.msra.mxu0 0
    %1924 = vmatprep.subr.bf16.mxu0 0
    %1925 = vmatpush1.bf16.msra.mxu0 0
    %1926 = vmatprep.subr.bf16.mxu0 0
    %1927 = vmatpush1.bf16.msra.mxu0 0
    %1928 = vmatprep.subr.bf16.mxu0 0
    %1929 = vmatpush1.bf16.msra.mxu0 0
    %1930 = vmatprep.subr.bf16.mxu0 0
    %1931 = vmatpush1.bf16.msra.mxu0 0
    %1932 = vmatprep.subr.bf16.mxu0 0
    %1933 = vmatpush1.bf16.msra.mxu0 0
    %1934 = vmatprep.subr.bf16.mxu0 0
    %1935 = vmatpush1.bf16.msra.mxu0 0
    %1936 = vmatprep.subr.bf16.mxu0 0
    %1937 = vmatpush1.bf16.msra.mxu0 0
    %1938 = vmatprep.mubr.bf16.mxu0 0
    %1939 = vmatmul.mubr.bf16.gmra.mrb[0].mxu0 %v1393
    %v1940 = vpop.f32.mrb[0].mxu0
    %v1941 = vadd.f32 %v1479, %v1940
    %v1942 = vpop.f32.mrb[0].mxu0
    %v1943 = vadd.f32 %v1483, %v1942
    %v1944 = vpop.f32.mrb[0].mxu0
    %v1945 = vadd.f32 %v1479, %v1944
    %v1946 = vpop.f32.mrb[0].mxu0
    %v1947 = vadd.f32 %v1483, %v1946
    %1948 = vdwg.mxu0
    %1949 = vmatprep.subr.bf16.mxu0 %v1699
    %1950 = vmatpush1.bf16.msra.mxu0 %v1698
    %1951 = vmatprep.subr.bf16.mxu0 %v1707
    %1952 = vmatpush1.bf16.msra.mxu0 %v1706
    %1953 = vmatprep.subr.bf16.mxu0 %v1715
    %1954 = vmatpush1.bf16.msra.mxu0 %v1714
    %1955 = vmatprep.subr.bf16.mxu0 %v1723
    %1956 = vmatpush1.bf16.msra.mxu0 %v1722
    %1957 = vmatprep.subr.bf16.mxu0 %v1731
    %1958 = vmatpush1.bf16.msra.mxu0 %v1730
    %1959 = vmatprep.subr.bf16.mxu0 %v1739
    %1960 = vmatpush1.bf16.msra.mxu0 %v1738
    %1961 = vmatprep.subr.bf16.mxu0 %v1747
    %1962 = vmatpush1.bf16.msra.mxu0 %v1746
    %1963 = vmatprep.subr.bf16.mxu0 %v1755
    %1964 = vmatpush1.bf16.msra.mxu0 %v1754
    %1965 = vmatprep.subr.bf16.mxu0 0
    %1966 = vmatpush1.bf16.msra.mxu0 0
    %1967 = vmatprep.subr.bf16.mxu0 0
    %1968 = vmatpush1.bf16.msra.mxu0 0
    %1969 = vmatprep.subr.bf16.mxu0 0
    %1970 = vmatpush1.bf16.msra.mxu0 0
    %1971 = vmatprep.subr.bf16.mxu0 0
    %1972 = vmatpush1.bf16.msra.mxu0 0
    %1973 = vmatprep.subr.bf16.mxu0 0
    %1974 = vmatpush1.bf16.msra.mxu0 0
    %1975 = vmatprep.subr.bf16.mxu0 0
    %1976 = vmatpush1.bf16.msra.mxu0 0
    %1977 = vmatprep.subr.bf16.mxu0 0
    %1978 = vmatpush1.bf16.msra.mxu0 0
    %1979 = vmatprep.subr.bf16.mxu0 0
    %1980 = vmatpush1.bf16.msra.mxu0 0
    %1981 = vmatprep.mubr.bf16.mxu0 0
    %1982 = vmatmul.mubr.bf16.gmra.mrb[0].mxu0 %v1393
    %v1983 = vpop.f32.mrb[0].mxu0
    %v1984 = vadd.f32 %v1487, %v1983
    %v1985 = vpop.f32.mrb[0].mxu0
    %v1986 = vadd.f32 %v1491, %v1985
    %v1987 = vpop.f32.mrb[0].mxu0
    %v1988 = vadd.f32 %v1487, %v1987
    %v1989 = vpop.f32.mrb[0].mxu0
    %v1990 = vadd.f32 %v1491, %v1989
    %1991 = vdwg.mxu0
    %v1992 = vmax.f32 %v1855, 0.0
    %v1993 = vmax.f32 %v1857, 0.0
    %v1994 = vmax.f32 %v1898, 0.0
    %v1995 = vmax.f32 %v1900, 0.0
    %v1996 = vmax.f32 %v1941, 0.0
    %v1997 = vmax.f32 %v1943, 0.0
    %v1998 = vmax.f32 %v1984, 0.0
    %v1999 = vmax.f32 %v1986, 0.0
    %v2000 = vmax.f32 %v1859, 0.0
    %v2001 = vmax.f32 %v1861, 0.0
    %v2002 = vmax.f32 %v1902, 0.0
    %v2003 = vmax.f32 %v1904, 0.0
    %v2004 = vmax.f32 %v1945, 0.0
    %v2005 = vmax.f32 %v1947, 0.0
    %v2006 = vmax.f32 %v1988, 0.0
    %v2007 = vmax.f32 %v1990, 0.0
    %v2008 = vpack.c.bf16 %v2000, %v1992
    %v2009 = vpack.c.bf16 %v2001, %v1993
    %v2010 = vpack.c.bf16 %v2002, %v1994
    %v2011 = vpack.c.bf16 %v2003, %v1995
    %v2012 = vpack.c.bf16 %v2004, %v1996
    %v2013 = vpack.c.bf16 %v2005, %v1997
    %v2014 = vpack.c.bf16 %v2006, %v1998
    %v2015 = vpack.c.bf16 %v2007, %v1999
    %v2016 = vld [vmem:[#allocation22] sm:$0xf]
    %v2017 = vld [vmem:[#allocation22 + $0x4] sm:$0xf]
    %v2018 = vld [vmem:[#allocation22 + $0x8] sm:$0xf]
    %v2019 = vld [vmem:[#allocation22 + $0xc] sm:$0xf]
    %v2020 = vld [vmem:[#allocation22 + $0x10] sm:$0xf]
    %v2021 = vld [vmem:[#allocation22 + $0x14] sm:$0xf]
    %v2022 = vld [vmem:[#allocation22 + $0x18] sm:$0xf]
    %v2023 = vld [vmem:[#allocation22 + $0x1c] sm:$0xf]
    %v2024 = vld [vmem:[#allocation22 + $0x20] sm:$0xf]
    %v2025 = vld [vmem:[#allocation22 + $0x24] sm:$0xf]
    %v2026 = vld [vmem:[#allocation22 + $0x28] sm:$0xf]
    %v2027 = vld [vmem:[#allocation22 + $0x2c] sm:$0xf]
    %v2028 = vld [vmem:[#allocation22 + $0x30] sm:$0xf]
    %v2029 = vld [vmem:[#allocation22 + $0x34] sm:$0xf]
    %v2030 = vld [vmem:[#allocation22 + $0x38] sm:$0xf]
    %v2031 = vld [vmem:[#allocation22 + $0x3c] sm:$0xf]
    %v2032 = vld [vmem:[#allocation22 + $0x40] sm:$0xf]
    %v2033 = vld [vmem:[#allocation22 + $0x44] sm:$0xf]
    %v2034 = vld [vmem:[#allocation22 + $0x48] sm:$0xf]
    %v2035 = vld [vmem:[#allocation22 + $0x4c] sm:$0xf]
    %v2036 = vld [vmem:[#allocation22 + $0x50] sm:$0xf]
    %v2037 = vld [vmem:[#allocation22 + $0x54] sm:$0xf]
    %v2038 = vld [vmem:[#allocation22 + $0x58] sm:$0xf]
    %v2039 = vld [vmem:[#allocation22 + $0x5c] sm:$0xf]
    %v2040 = vld [vmem:[#allocation22 + $0x60] sm:$0xf]
    %v2041 = vld [vmem:[#allocation22 + $0x64] sm:$0xf]
    %v2042 = vld [vmem:[#allocation22 + $0x68] sm:$0xf]
    %v2043 = vld [vmem:[#allocation22 + $0x6c] sm:$0xf]
    %v2044 = vld [vmem:[#allocation22 + $0x70] sm:$0xf]
    %v2045 = vld [vmem:[#allocation22 + $0x74] sm:$0xf]
    %v2046 = vld [vmem:[#allocation22 + $0x78] sm:$0xf]
    %v2047 = vld [vmem:[#allocation22 + $0x7c] sm:$0xf]
    %v2048 = vld [vmem:[#allocation22 + $0x80] sm:$0xf]
    %v2049 = vld [vmem:[#allocation22 + $0x84] sm:$0xf]
    %v2050 = vld [vmem:[#allocation22 + $0x88] sm:$0xf]
    %v2051 = vld [vmem:[#allocation22 + $0x8c] sm:$0xf]
    %v2052 = vld [vmem:[#allocation22 + $0x90] sm:$0xf]
    %v2053 = vld [vmem:[#allocation22 + $0x94] sm:$0xf]
    %v2054 = vld [vmem:[#allocation22 + $0x98] sm:$0xf]
    %v2055 = vld [vmem:[#allocation22 + $0x9c] sm:$0xf]
    %v2056 = vld [vmem:[#allocation22 + $0xa0] sm:$0xf]
    %v2057 = vld [vmem:[#allocation22 + $0xa4] sm:$0xf]
    %v2058 = vld [vmem:[#allocation22 + $0xa8] sm:$0xf]
    %v2059 = vld [vmem:[#allocation22 + $0xac] sm:$0xf]
    %v2060 = vld [vmem:[#allocation22 + $0xb0] sm:$0xf]
    %v2061 = vld [vmem:[#allocation22 + $0xb4] sm:$0xf]
    %v2062 = vld [vmem:[#allocation22 + $0xb8] sm:$0xf]
    %v2063 = vld [vmem:[#allocation22 + $0xbc] sm:$0xf]
    %v2064 = vld [vmem:[#allocation22 + $0xc0] sm:$0xf]
    %v2065 = vld [vmem:[#allocation22 + $0xc4] sm:$0xf]
    %v2066 = vld [vmem:[#allocation22 + $0xc8] sm:$0xf]
    %v2067 = vld [vmem:[#allocation22 + $0xcc] sm:$0xf]
    %v2068 = vld [vmem:[#allocation22 + $0xd0] sm:$0xf]
    %v2069 = vld [vmem:[#allocation22 + $0xd4] sm:$0xf]
    %v2070 = vld [vmem:[#allocation22 + $0xd8] sm:$0xf]
    %v2071 = vld [vmem:[#allocation22 + $0xdc] sm:$0xf]
    %v2072 = vld [vmem:[#allocation22 + $0xe0] sm:$0xf]
    %v2073 = vld [vmem:[#allocation22 + $0xe4] sm:$0xf]
    %v2074 = vld [vmem:[#allocation22 + $0xe8] sm:$0xf]
    %v2075 = vld [vmem:[#allocation22 + $0xec] sm:$0xf]
    %v2076 = vld [vmem:[#allocation22 + $0xf0] sm:$0xf]
    %v2077 = vld [vmem:[#allocation22 + $0xf4] sm:$0xf]
    %v2078 = vld [vmem:[#allocation22 + $0xf8] sm:$0xf]
    %v2079 = vld [vmem:[#allocation22 + $0xfc] sm:$0xf]
    %v2080 = vld [vmem:[#allocation22 + $0x100] sm:$0xf]
    %v2081 = vld [vmem:[#allocation22 + $0x104] sm:$0xf]
    %v2082 = vld [vmem:[#allocation22 + $0x108] sm:$0xf]
    %v2083 = vld [vmem:[#allocation22 + $0x10c] sm:$0xf]
    %v2084 = vld [vmem:[#allocation22 + $0x110] sm:$0xf]
    %v2085 = vld [vmem:[#allocation22 + $0x114] sm:$0xf]
    %v2086 = vld [vmem:[#allocation22 + $0x118] sm:$0xf]
    %v2087 = vld [vmem:[#allocation22 + $0x11c] sm:$0xf]
    %v2088 = vld [vmem:[#allocation22 + $0x120] sm:$0xf]
    %v2089 = vld [vmem:[#allocation22 + $0x124] sm:$0xf]
    %v2090 = vld [vmem:[#allocation22 + $0x128] sm:$0xf]
    %v2091 = vld [vmem:[#allocation22 + $0x12c] sm:$0xf]
    %v2092 = vld [vmem:[#allocation22 + $0x130] sm:$0xf]
    %v2093 = vld [vmem:[#allocation22 + $0x134] sm:$0xf]
    %v2094 = vld [vmem:[#allocation22 + $0x138] sm:$0xf]
    %v2095 = vld [vmem:[#allocation22 + $0x13c] sm:$0xf]
    %v2096 = vld [vmem:[#allocation22 + $0x140] sm:$0xf]
    %v2097 = vld [vmem:[#allocation22 + $0x144] sm:$0xf]
    %v2098 = vld [vmem:[#allocation22 + $0x148] sm:$0xf]
    %v2099 = vld [vmem:[#allocation22 + $0x14c] sm:$0xf]
    %v2100 = vld [vmem:[#allocation22 + $0x150] sm:$0xf]
    %v2101 = vld [vmem:[#allocation22 + $0x154] sm:$0xf]
    %v2102 = vld [vmem:[#allocation22 + $0x158] sm:$0xf]
    %v2103 = vld [vmem:[#allocation22 + $0x15c] sm:$0xf]
    %v2104 = vld [vmem:[#allocation22 + $0x160] sm:$0xf]
    %v2105 = vld [vmem:[#allocation22 + $0x164] sm:$0xf]
    %v2106 = vld [vmem:[#allocation22 + $0x168] sm:$0xf]
    %v2107 = vld [vmem:[#allocation22 + $0x16c] sm:$0xf]
    %v2108 = vld [vmem:[#allocation22 + $0x170] sm:$0xf]
    %v2109 = vld [vmem:[#allocation22 + $0x174] sm:$0xf]
    %v2110 = vld [vmem:[#allocation22 + $0x178] sm:$0xf]
    %v2111 = vld [vmem:[#allocation22 + $0x17c] sm:$0xf]
    %v2112 = vld [vmem:[#allocation22 + $0x180] sm:$0xf]
    %v2113 = vld [vmem:[#allocation22 + $0x184] sm:$0xf]
    %v2114 = vld [vmem:[#allocation22 + $0x188] sm:$0xf]
    %v2115 = vld [vmem:[#allocation22 + $0x18c] sm:$0xf]
    %v2116 = vld [vmem:[#allocation22 + $0x190] sm:$0xf]
    %v2117 = vld [vmem:[#allocation22 + $0x194] sm:$0xf]
    %v2118 = vld [vmem:[#allocation22 + $0x198] sm:$0xf]
    %v2119 = vld [vmem:[#allocation22 + $0x19c] sm:$0xf]
    %v2120 = vld [vmem:[#allocation22 + $0x1a0] sm:$0xf]
    %v2121 = vld [vmem:[#allocation22 + $0x1a4] sm:$0xf]
    %v2122 = vld [vmem:[#allocation22 + $0x1a8] sm:$0xf]
    %v2123 = vld [vmem:[#allocation22 + $0x1ac] sm:$0xf]
    %v2124 = vld [vmem:[#allocation22 + $0x1b0] sm:$0xf]
    %v2125 = vld [vmem:[#allocation22 + $0x1b4] sm:$0xf]
    %v2126 = vld [vmem:[#allocation22 + $0x1b8] sm:$0xf]
    %v2127 = vld [vmem:[#allocation22 + $0x1bc] sm:$0xf]
    %v2128 = vld [vmem:[#allocation22 + $0x1c0] sm:$0xf]
    %v2129 = vld [vmem:[#allocation22 + $0x1c4] sm:$0xf]
    %v2130 = vld [vmem:[#allocation22 + $0x1c8] sm:$0xf]
    %v2131 = vld [vmem:[#allocation22 + $0x1cc] sm:$0xf]
    %v2132 = vld [vmem:[#allocation22 + $0x1d0] sm:$0xf]
    %v2133 = vld [vmem:[#allocation22 + $0x1d4] sm:$0xf]
    %v2134 = vld [vmem:[#allocation22 + $0x1d8] sm:$0xf]
    %v2135 = vld [vmem:[#allocation22 + $0x1dc] sm:$0xf]
    %v2136 = vld [vmem:[#allocation22 + $0x1e0] sm:$0xf]
    %v2137 = vld [vmem:[#allocation22 + $0x1e4] sm:$0xf]
    %v2138 = vld [vmem:[#allocation22 + $0x1e8] sm:$0xf]
    %v2139 = vld [vmem:[#allocation22 + $0x1ec] sm:$0xf]
    %v2140 = vld [vmem:[#allocation22 + $0x1f0] sm:$0xf]
    %v2141 = vld [vmem:[#allocation22 + $0x1f4] sm:$0xf]
    %v2142 = vld [vmem:[#allocation22 + $0x1f8] sm:$0xf]
    %v2143 = vld [vmem:[#allocation22 + $0x1fc] sm:$0xf]
    %v2144 = vld [vmem:[%s19] sm:$0x1]
    %v2146 = vlaneseq
    %v2147 = vshrl.u32 %v2146, 7
    %v2148 = vsub.s32 0, %v2147
    %v2149 = vrot.slane %v2144, %v2148
    %v2279 = vunpack.c.l.b16 %v2016
    %v2280 = vunpack.c.l.b16 %v2017
    %v2281 = vunpack.c.l.b16 %v2018
    %v2282 = vunpack.c.l.b16 %v2019
    %v2283 = vunpack.c.l.b16 %v2020
    %v2284 = vunpack.c.l.b16 %v2021
    %v2285 = vunpack.c.l.b16 %v2022
    %v2286 = vunpack.c.l.b16 %v2023
    %v2287 = vunpack.c.l.b16 %v2024
    %v2288 = vunpack.c.l.b16 %v2025
    %v2289 = vunpack.c.l.b16 %v2026
    %v2290 = vunpack.c.l.b16 %v2027
    %v2291 = vunpack.c.l.b16 %v2028
    %v2292 = vunpack.c.l.b16 %v2029
    %v2293 = vunpack.c.l.b16 %v2030
    %v2294 = vunpack.c.l.b16 %v2031
    %v2295 = vunpack.c.l.b16 %v2032
    %v2296 = vunpack.c.l.b16 %v2033
    %v2297 = vunpack.c.l.b16 %v2034
    %v2298 = vunpack.c.l.b16 %v2035
    %v2299 = vunpack.c.l.b16 %v2036
    %v2300 = vunpack.c.l.b16 %v2037
    %v2301 = vunpack.c.l.b16 %v2038
    %v2302 = vunpack.c.l.b16 %v2039
    %v2303 = vunpack.c.l.b16 %v2040
    %v2304 = vunpack.c.l.b16 %v2041
    %v2305 = vunpack.c.l.b16 %v2042
    %v2306 = vunpack.c.l.b16 %v2043
    %v2307 = vunpack.c.l.b16 %v2044
    %v2308 = vunpack.c.l.b16 %v2045
    %v2309 = vunpack.c.l.b16 %v2046
    %v2310 = vunpack.c.l.b16 %v2047
    %v2311 = vunpack.c.l.b16 %v2048
    %v2312 = vunpack.c.l.b16 %v2049
    %v2313 = vunpack.c.l.b16 %v2050
    %v2314 = vunpack.c.l.b16 %v2051
    %v2315 = vunpack.c.l.b16 %v2052
    %v2316 = vunpack.c.l.b16 %v2053
    %v2317 = vunpack.c.l.b16 %v2054
    %v2318 = vunpack.c.l.b16 %v2055
    %v2319 = vunpack.c.l.b16 %v2056
    %v2320 = vunpack.c.l.b16 %v2057
    %v2321 = vunpack.c.l.b16 %v2058
    %v2322 = vunpack.c.l.b16 %v2059
    %v2323 = vunpack.c.l.b16 %v2060
    %v2324 = vunpack.c.l.b16 %v2061
    %v2325 = vunpack.c.l.b16 %v2062
    %v2326 = vunpack.c.l.b16 %v2063
    %v2327 = vunpack.c.l.b16 %v2064
    %v2328 = vunpack.c.l.b16 %v2065
    %v2329 = vunpack.c.l.b16 %v2066
    %v2330 = vunpack.c.l.b16 %v2067
    %v2331 = vunpack.c.l.b16 %v2068
    %v2332 = vunpack.c.l.b16 %v2069
    %v2333 = vunpack.c.l.b16 %v2070
    %v2334 = vunpack.c.l.b16 %v2071
    %v2335 = vunpack.c.l.b16 %v2072
    %v2336 = vunpack.c.l.b16 %v2073
    %v2337 = vunpack.c.l.b16 %v2074
    %v2338 = vunpack.c.l.b16 %v2075
    %v2339 = vunpack.c.l.b16 %v2076
    %v2340 = vunpack.c.l.b16 %v2077
    %v2341 = vunpack.c.l.b16 %v2078
    %v2342 = vunpack.c.l.b16 %v2079
    %v2343 = vunpack.c.l.b16 %v2080
    %v2344 = vunpack.c.l.b16 %v2081
    %v2345 = vunpack.c.l.b16 %v2082
    %v2346 = vunpack.c.l.b16 %v2083
    %v2347 = vunpack.c.l.b16 %v2084
    %v2348 = vunpack.c.l.b16 %v2085
    %v2349 = vunpack.c.l.b16 %v2086
    %v2350 = vunpack.c.l.b16 %v2087
    %v2351 = vunpack.c.l.b16 %v2088
    %v2352 = vunpack.c.l.b16 %v2089
    %v2353 = vunpack.c.l.b16 %v2090
    %v2354 = vunpack.c.l.b16 %v2091
    %v2355 = vunpack.c.l.b16 %v2092
    %v2356 = vunpack.c.l.b16 %v2093
    %v2357 = vunpack.c.l.b16 %v2094
    %v2358 = vunpack.c.l.b16 %v2095
    %v2359 = vunpack.c.l.b16 %v2096
    %v2360 = vunpack.c.l.b16 %v2097
    %v2361 = vunpack.c.l.b16 %v2098
    %v2362 = vunpack.c.l.b16 %v2099
    %v2363 = vunpack.c.l.b16 %v2100
    %v2364 = vunpack.c.l.b16 %v2101
    %v2365 = vunpack.c.l.b16 %v2102
    %v2366 = vunpack.c.l.b16 %v2103
    %v2367 = vunpack.c.l.b16 %v2104
    %v2368 = vunpack.c.l.b16 %v2105
    %v2369 = vunpack.c.l.b16 %v2106
    %v2370 = vunpack.c.l.b16 %v2107
    %v2371 = vunpack.c.l.b16 %v2108
    %v2372 = vunpack.c.l.b16 %v2109
    %v2373 = vunpack.c.l.b16 %v2110
    %v2374 = vunpack.c.l.b16 %v2111
    %v2375 = vunpack.c.l.b16 %v2112
    %v2376 = vunpack.c.l.b16 %v2113
    %v2377 = vunpack.c.l.b16 %v2114
    %v2378 = vunpack.c.l.b16 %v2115
    %v2379 = vunpack.c.l.b16 %v2116
    %v2380 = vunpack.c.l.b16 %v2117
    %v2381 = vunpack.c.l.b16 %v2118
    %v2382 = vunpack.c.l.b16 %v2119
    %v2383 = vunpack.c.l.b16 %v2120
    %v2384 = vunpack.c.l.b16 %v2121
    %v2385 = vunpack.c.l.b16 %v2122
    %v2386 = vunpack.c.l.b16 %v2123
    %v2387 = vunpack.c.l.b16 %v2124
    %v2388 = vunpack.c.l.b16 %v2125
    %v2389 = vunpack.c.l.b16 %v2126
    %v2390 = vunpack.c.l.b16 %v2127
    %v2391 = vunpack.c.l.b16 %v2128
    %v2392 = vunpack.c.l.b16 %v2129
    %v2393 = vunpack.c.l.b16 %v2130
    %v2394 = vunpack.c.l.b16 %v2131
    %v2395 = vunpack.c.l.b16 %v2132
    %v2396 = vunpack.c.l.b16 %v2133
    %v2397 = vunpack.c.l.b16 %v2134
    %v2398 = vunpack.c.l.b16 %v2135
    %v2399 = vunpack.c.l.b16 %v2136
    %v2400 = vunpack.c.l.b16 %v2137
    %v2401 = vunpack.c.l.b16 %v2138
    %v2402 = vunpack.c.l.b16 %v2139
    %v2403 = vunpack.c.l.b16 %v2140
    %v2404 = vunpack.c.l.b16 %v2141
    %v2405 = vunpack.c.l.b16 %v2142
    %v2406 = vunpack.c.l.b16 %v2143
    %v2407 = vpack.c.b16 %v2280, %v2279
    %v2408 = vpack.c.b16 %v2282, %v2281
    %v2409 = vpack.c.b16 %v2284, %v2283
    %v2410 = vpack.c.b16 %v2286, %v2285
    %v2411 = vpack.c.b16 %v2288, %v2287
    %v2412 = vpack.c.b16 %v2290, %v2289
    %v2413 = vpack.c.b16 %v2292, %v2291
    %v2414 = vpack.c.b16 %v2294, %v2293
    %v2415 = vpack.c.b16 %v2296, %v2295
    %v2416 = vpack.c.b16 %v2298, %v2297
    %v2417 = vpack.c.b16 %v2300, %v2299
    %v2418 = vpack.c.b16 %v2302, %v2301
    %v2419 = vpack.c.b16 %v2304, %v2303
    %v2420 = vpack.c.b16 %v2306, %v2305
    %v2421 = vpack.c.b16 %v2308, %v2307
    %v2422 = vpack.c.b16 %v2310, %v2309
    %v2423 = vpack.c.b16 %v2312, %v2311
    %v2424 = vpack.c.b16 %v2314, %v2313
    %v2425 = vpack.c.b16 %v2316, %v2315
    %v2426 = vpack.c.b16 %v2318, %v2317
    %v2427 = vpack.c.b16 %v2320, %v2319
    %v2428 = vpack.c.b16 %v2322, %v2321
    %v2429 = vpack.c.b16 %v2324, %v2323
    %v2430 = vpack.c.b16 %v2326, %v2325
    %v2431 = vpack.c.b16 %v2328, %v2327
    %v2432 = vpack.c.b16 %v2330, %v2329
    %v2433 = vpack.c.b16 %v2332, %v2331
    %v2434 = vpack.c.b16 %v2334, %v2333
    %v2435 = vpack.c.b16 %v2336, %v2335
    %v2436 = vpack.c.b16 %v2338, %v2337
    %v2437 = vpack.c.b16 %v2340, %v2339
    %v2438 = vpack.c.b16 %v2342, %v2341
    %v2439 = vpack.c.b16 %v2344, %v2343
    %v2440 = vpack.c.b16 %v2346, %v2345
    %v2441 = vpack.c.b16 %v2348, %v2347
    %v2442 = vpack.c.b16 %v2350, %v2349
    %v2443 = vpack.c.b16 %v2352, %v2351
    %v2444 = vpack.c.b16 %v2354, %v2353
    %v2445 = vpack.c.b16 %v2356, %v2355
    %v2446 = vpack.c.b16 %v2358, %v2357
    %v2447 = vpack.c.b16 %v2360, %v2359
    %v2448 = vpack.c.b16 %v2362, %v2361
    %v2449 = vpack.c.b16 %v2364, %v2363
    %v2450 = vpack.c.b16 %v2366, %v2365
    %v2451 = vpack.c.b16 %v2368, %v2367
    %v2452 = vpack.c.b16 %v2370, %v2369
    %v2453 = vpack.c.b16 %v2372, %v2371
    %v2454 = vpack.c.b16 %v2374, %v2373
    %v2455 = vpack.c.b16 %v2376, %v2375
    %v2456 = vpack.c.b16 %v2378, %v2377
    %v2457 = vpack.c.b16 %v2380, %v2379
    %v2458 = vpack.c.b16 %v2382, %v2381
    %v2459 = vpack.c.b16 %v2384, %v2383
    %v2460 = vpack.c.b16 %v2386, %v2385
    %v2461 = vpack.c.b16 %v2388, %v2387
    %v2462 = vpack.c.b16 %v2390, %v2389
    %v2463 = vpack.c.b16 %v2392, %v2391
    %v2464 = vpack.c.b16 %v2394, %v2393
    %v2465 = vpack.c.b16 %v2396, %v2395
    %v2466 = vpack.c.b16 %v2398, %v2397
    %v2467 = vpack.c.b16 %v2400, %v2399
    %v2468 = vpack.c.b16 %v2402, %v2401
    %v2469 = vpack.c.b16 %v2404, %v2403
    %v2470 = vpack.c.b16 %v2406, %v2405
    %2535 = vmatprep.subr.bf16.mxu0 0
    %2536 = vmatpush1.bf16.msra.mxu0 %v2407
    %2537 = vmatprep.subr.bf16.mxu0 0
    %2538 = vmatpush1.bf16.msra.mxu0 %v2408
    %2539 = vmatprep.subr.bf16.mxu0 0
    %2540 = vmatpush1.bf16.msra.mxu0 %v2409
    %2541 = vmatprep.subr.bf16.mxu0 0
    %2542 = vmatpush1.bf16.msra.mxu0 %v2410
    %2543 = vmatprep.subr.bf16.mxu0 0
    %2544 = vmatpush1.bf16.msra.mxu0 %v2411
    %2545 = vmatprep.subr.bf16.mxu0 0
    %2546 = vmatpush1.bf16.msra.mxu0 %v2412
    %2547 = vmatprep.subr.bf16.mxu0 0
    %2548 = vmatpush1.bf16.msra.mxu0 %v2413
    %2549 = vmatprep.subr.bf16.mxu0 0
    %2550 = vmatpush1.bf16.msra.mxu0 %v2414
    %2551 = vmatprep.subr.bf16.mxu0 0
    %2552 = vmatpush1.bf16.msra.mxu0 %v2415
    %2553 = vmatprep.subr.bf16.mxu0 0
    %2554 = vmatpush1.bf16.msra.mxu0 %v2416
    %2555 = vmatprep.subr.bf16.mxu0 0
    %2556 = vmatpush1.bf16.msra.mxu0 %v2417
    %2557 = vmatprep.subr.bf16.mxu0 0
    %2558 = vmatpush1.bf16.msra.mxu0 %v2418
    %2559 = vmatprep.subr.bf16.mxu0 0
    %2560 = vmatpush1.bf16.msra.mxu0 %v2419
    %2561 = vmatprep.subr.bf16.mxu0 0
    %2562 = vmatpush1.bf16.msra.mxu0 %v2420
    %2563 = vmatprep.subr.bf16.mxu0 0
    %2564 = vmatpush1.bf16.msra.mxu0 %v2421
    %2565 = vmatprep.subr.bf16.mxu0 0
    %2566 = vmatpush1.bf16.msra.mxu0 %v2422
    %2567 = vmatprep.mubr.bf16.mxu0 %v2009
    %2568 = vmatmul.mubr.bf16.gmra.mrb[0].mxu0 %v2008
    %v2569 = vpop.f32.mrb[0].mxu0
    %v2570 = vadd.f32 %v2149, %v2569
    %v2571 = vpop.f32.mrb[0].mxu0
    %v2572 = vpop.f32.mrb[0].mxu0
    %v2573 = vadd.f32 %v2149, %v2572
    %v2574 = vpop.f32.mrb[0].mxu0
    %2575 = vdwg.mxu0
    %2576 = vmatprep.subr.bf16.mxu0 0
    %2577 = vmatpush1.bf16.msra.mxu0 %v2423
    %2578 = vmatprep.subr.bf16.mxu0 0
    %2579 = vmatpush1.bf16.msra.mxu0 %v2424
    %2580 = vmatprep.subr.bf16.mxu0 0
    %2581 = vmatpush1.bf16.msra.mxu0 %v2425
    %2582 = vmatprep.subr.bf16.mxu0 0
    %2583 = vmatpush1.bf16.msra.mxu0 %v2426
    %2584 = vmatprep.subr.bf16.mxu0 0
    %2585 = vmatpush1.bf16.msra.mxu0 %v2427
    %2586 = vmatprep.subr.bf16.mxu0 0
    %2587 = vmatpush1.bf16.msra.mxu0 %v2428
    %2588 = vmatprep.subr.bf16.mxu0 0
    %2589 = vmatpush1.bf16.msra.mxu0 %v2429
    %2590 = vmatprep.subr.bf16.mxu0 0
    %2591 = vmatpush1.bf16.msra.mxu0 %v2430
    %2592 = vmatprep.subr.bf16.mxu0 0
    %2593 = vmatpush1.bf16.msra.mxu0 %v2431
    %2594 = vmatprep.subr.bf16.mxu0 0
    %2595 = vmatpush1.bf16.msra.mxu0 %v2432
    %2596 = vmatprep.subr.bf16.mxu0 0
    %2597 = vmatpush1.bf16.msra.mxu0 %v2433
    %2598 = vmatprep.subr.bf16.mxu0 0
    %2599 = vmatpush1.bf16.msra.mxu0 %v2434
    %2600 = vmatprep.subr.bf16.mxu0 0
    %2601 = vmatpush1.bf16.msra.mxu0 %v2435
    %2602 = vmatprep.subr.bf16.mxu0 0
    %2603 = vmatpush1.bf16.msra.mxu0 %v2436
    %2604 = vmatprep.subr.bf16.mxu0 0
    %2605 = vmatpush1.bf16.msra.mxu0 %v2437
    %2606 = vmatprep.subr.bf16.mxu0 0
    %2607 = vmatpush1.bf16.msra.mxu0 %v2438
    %2608 = vmatprep.mubr.bf16.mxu0 %v2011
    %2609 = vmatmul.mubr.bf16.gmra.mrb[0].mxu0 %v2010
    %v2610 = vpop.f32.mrb[0].mxu0
    %v2611 = vadd.f32 %v2570, %v2610
    %v2612 = vpop.f32.mrb[0].mxu0
    %v2613 = vpop.f32.mrb[0].mxu0
    %v2614 = vadd.f32 %v2573, %v2613
    %v2615 = vpop.f32.mrb[0].mxu0
    %2616 = vdwg.mxu0
    %2617 = vmatprep.subr.bf16.mxu0 0
    %2618 = vmatpush1.bf16.msra.mxu0 %v2439
    %2619 = vmatprep.subr.bf16.mxu0 0
    %2620 = vmatpush1.bf16.msra.mxu0 %v2440
    %2621 = vmatprep.subr.bf16.mxu0 0
    %2622 = vmatpush1.bf16.msra.mxu0 %v2441
    %2623 = vmatprep.subr.bf16.mxu0 0
    %2624 = vmatpush1.bf16.msra.mxu0 %v2442
    %2625 = vmatprep.subr.bf16.mxu0 0
    %2626 = vmatpush1.bf16.msra.mxu0 %v2443
    %2627 = vmatprep.subr.bf16.mxu0 0
    %2628 = vmatpush1.bf16.msra.mxu0 %v2444
    %2629 = vmatprep.subr.bf16.mxu0 0
    %2630 = vmatpush1.bf16.msra.mxu0 %v2445
    %2631 = vmatprep.subr.bf16.mxu0 0
    %2632 = vmatpush1.bf16.msra.mxu0 %v2446
    %2633 = vmatprep.subr.bf16.mxu0 0
    %2634 = vmatpush1.bf16.msra.mxu0 %v2447
    %2635 = vmatprep.subr.bf16.mxu0 0
    %2636 = vmatpush1.bf16.msra.mxu0 %v2448
    %2637 = vmatprep.subr.bf16.mxu0 0
    %2638 = vmatpush1.bf16.msra.mxu0 %v2449
    %2639 = vmatprep.subr.bf16.mxu0 0
    %2640 = vmatpush1.bf16.msra.mxu0 %v2450
    %2641 = vmatprep.subr.bf16.mxu0 0
    %2642 = vmatpush1.bf16.msra.mxu0 %v2451
    %2643 = vmatprep.subr.bf16.mxu0 0
    %2644 = vmatpush1.bf16.msra.mxu0 %v2452
    %2645 = vmatprep.subr.bf16.mxu0 0
    %2646 = vmatpush1.bf16.msra.mxu0 %v2453
    %2647 = vmatprep.subr.bf16.mxu0 0
    %2648 = vmatpush1.bf16.msra.mxu0 %v2454
    %2649 = vmatprep.mubr.bf16.mxu0 %v2013
    %2650 = vmatmul.mubr.bf16.gmra.mrb[0].mxu0 %v2012
    %v2651 = vpop.f32.mrb[0].mxu0
    %v2652 = vadd.f32 %v2611, %v2651
    %v2653 = vpop.f32.mrb[0].mxu0
    %v2654 = vpop.f32.mrb[0].mxu0
    %v2655 = vadd.f32 %v2614, %v2654
    %v2656 = vpop.f32.mrb[0].mxu0
    %2657 = vdwg.mxu0
    %2658 = vmatprep.subr.bf16.mxu0 0
    %2659 = vmatpush1.bf16.msra.mxu0 %v2455
    %2660 = vmatprep.subr.bf16.mxu0 0
    %2661 = vmatpush1.bf16.msra.mxu0 %v2456
    %2662 = vmatprep.subr.bf16.mxu0 0
    %2663 = vmatpush1.bf16.msra.mxu0 %v2457
    %2664 = vmatprep.subr.bf16.mxu0 0
    %2665 = vmatpush1.bf16.msra.mxu0 %v2458
    %2666 = vmatprep.subr.bf16.mxu0 0
    %2667 = vmatpush1.bf16.msra.mxu0 %v2459
    %2668 = vmatprep.subr.bf16.mxu0 0
    %2669 = vmatpush1.bf16.msra.mxu0 %v2460
    %2670 = vmatprep.subr.bf16.mxu0 0
    %2671 = vmatpush1.bf16.msra.mxu0 %v2461
    %2672 = vmatprep.subr.bf16.mxu0 0
    %2673 = vmatpush1.bf16.msra.mxu0 %v2462
    %2674 = vmatprep.subr.bf16.mxu0 0
    %2675 = vmatpush1.bf16.msra.mxu0 %v2463
    %2676 = vmatprep.subr.bf16.mxu0 0
    %2677 = vmatpush1.bf16.msra.mxu0 %v2464
    %2678 = vmatprep.subr.bf16.mxu0 0
    %2679 = vmatpush1.bf16.msra.mxu0 %v2465
    %2680 = vmatprep.subr.bf16.mxu0 0
    %2681 = vmatpush1.bf16.msra.mxu0 %v2466
    %2682 = vmatprep.subr.bf16.mxu0 0
    %2683 = vmatpush1.bf16.msra.mxu0 %v2467
    %2684 = vmatprep.subr.bf16.mxu0 0
    %2685 = vmatpush1.bf16.msra.mxu0 %v2468
    %2686 = vmatprep.subr.bf16.mxu0 0
    %2687 = vmatpush1.bf16.msra.mxu0 %v2469
    %2688 = vmatprep.subr.bf16.mxu0 0
    %2689 = vmatpush1.bf16.msra.mxu0 %v2470
    %2690 = vmatprep.mubr.bf16.mxu0 %v2015
    %2691 = vmatmul.mubr.bf16.gmra.mrb[0].mxu0 %v2014
    %v2692 = vpop.f32.mrb[0].mxu0
    %v2693 = vadd.f32 %v2652, %v2692
    %v2694 = vpop.f32.mrb[0].mxu0
    %v2695 = vpop.f32.mrb[0].mxu0
    %v2696 = vadd.f32 %v2655, %v2695
    %v2697 = vpop.f32.mrb[0].mxu0
    %2698 = vdwg.mxu0
    %v2699 = vadd.f32 %v1391, %v2693
    %v2700 = vadd.f32 %v1392, %v2696
    %2701 = vadd.xlane.f32.xlu0 %v2699
    %v2702 = vpop.xlane.xlu0 %2701
    %2703 = vadd.xlane.f32.xlu0 %v2700
    %v2704 = vpop.xlane.xlu0 %2703
    %v2705 = vmul.f32 %v2702, 0.03125
    %v2706 = vmul.f32 %v2704, 0.03125
    %v2707 = vsub.f32 %v2699, %v2705
    %v2708 = vsub.f32 %v2700, %v2706
    %v2709 = vld [vmem:[%s22] sm:$0x1]
    %v2711 = vlaneseq
    %v2712 = vshrl.u32 %v2711, 7
    %v2713 = vsub.s32 0, %v2712
    %v2714 = vrot.slane %v2709, %v2713
    %v2716 = vmul.f32 %v2707, %v2714
    %v2717 = vmul.f32 %v2708, %v2714
    %v2718 = vmul.f32 %v2716, %v2716
    %v2719 = vmul.f32 %v2717, %v2717
    %2720 = vadd.xlane.f32.xlu0 %v2718
    %v2721 = vpop.xlane.xlu0 %2720
    %2722 = vadd.xlane.f32.xlu0 %v2719
    %v2723 = vpop.xlane.xlu0 %2722
    %v2724 = vmul.f32 %v2721, 0.03125
    %v2725 = vmul.f32 %v2723, 0.03125
    %v2726 = vadd.f32 %v2724, 1e-05
    %v2727 = vadd.f32 %v2725, 1e-05
    %v2728 = vrsqrt.pop %v2726
    %v2729 = vrsqrt.pop %v2727
    %v2730 = vmul.f32 %v2716, %v2728
    %v2731 = vmul.f32 %v2717, %v2729
    %v2732 = vld [vmem:[%s20] sm:$0x1]
    %v2734 = vlaneseq
    %v2735 = vshrl.u32 %v2734, 7
    %v2736 = vsub.s32 0, %v2735
    %v2737 = vrot.slane %v2732, %v2736
    %v2739 = vmul.f32 %v2730, %v2737
    %v2740 = vmul.f32 %v2731, %v2737
    %v2741 = vld [vmem:[%s21] sm:$0x1]
    %v2743 = vlaneseq
    %v2744 = vshrl.u32 %v2743, 7
    %v2745 = vsub.s32 0, %v2744
    %v2746 = vrot.slane %v2741, %v2745
    %v2748 = vadd.f32 %v2739, %v2746
    %v2749 = vadd.f32 %v2740, %v2746
    %2750 = vst [vmem:[#allocation23] sm:$0xff] %v2748
    %2751 = vst [vmem:[#allocation23 + $0x8] sm:$0xff] %v2749
    %2752 = vst [vmem:[#allocation24] sm:$0xf] 0
    %2753 = vst [vmem:[#allocation24 + $0x4] sm:$0xf] 0
    %vm2754 = vcmask 125952
    %2755 = vst.msk [vmem:[#allocation24] sm:$0xf] %vm2754, %v741
    %2756 = vst.msk [vmem:[#allocation24 + $0x4] sm:$0xf] %vm2754, %v742
    // Predicated region
    $region146: #{tpu_custom_call.1} parent=1 // pred_check
      _
    $region147: #{tpu_custom_call.1} parent=1 // pred_check_branch
      %2758 = sbr.rel (0) target = $region149
    $region148: #{tpu_custom_call.1} parent=1 // pred_region
      %s2760 = ssub.s32 256, 256
      %2761 = vsyncadd [#allocation4], %s2760
      %s2762 = sshll.u32 [#allocation23], 4
      %s2763 = int_to_ptr.vmem [resolvable:$true] %s2762
      %2768 = dma.vmem_to_hbm [thread:$0]  %s2763, 256, %s23, [#allocation4], 128, 128, 8
    $region149: #{tpu_custom_call.1} parent=1 // pred_fallthru
      _
    // Predicated region
    $region150: #{tpu_custom_call.1} parent=1 // pred_check
      _
    $region151: #{tpu_custom_call.1} parent=1 // pred_check_branch
      %2770 = sbr.rel (0) target = $region153
    $region152: #{tpu_custom_call.1} parent=1 // pred_region
      %s2772 = ssub.s32 128, 128
      %2773 = vsyncadd [#allocation25], %s2772
      %s2774 = sshll.u32 [#allocation24], 4
      %s2775 = int_to_ptr.vmem [resolvable:$true] %s2774
      %2780 = dma.vmem_to_hbm [thread:$0]  %s2775, 128, %s24, [#allocation25], 64, 64, 4
    $region153: #{tpu_custom_call.1} parent=1 // pred_fallthru
      _
    // Predicated region
    $region154: #{tpu_custom_call.1} parent=1 // pred_check
      _
    $region155: #{tpu_custom_call.1} parent=1 // pred_check_branch
      %2782 = sbr.rel (0) target = $region157
    $region156: #{tpu_custom_call.1} parent=1 // pred_region
      %2783 = dma.done [#allocation4], 256
    $region157: #{tpu_custom_call.1} parent=1 // pred_fallthru
      _
    // Predicated region
    $region158: #{tpu_custom_call.1} parent=1 // pred_check
      _
    $region159: #{tpu_custom_call.1} parent=1 // pred_check_branch
      %2785 = sbr.rel (0) target = $region161
    $region160: #{tpu_custom_call.1} parent=1 // pred_region
      %2786 = dma.done [#allocation25], 128
    $region161: #{tpu_custom_call.1} parent=1 // pred_fallthru
      _
    %2787 = vsyncpa [#allocation3], 1
    %2788 = vsyncpa [#allocation6], 1
    %2789 = vsyncpa [#allocation9], 1
    %2790 = vsyncpa [#allocation12], 1
    %2791 = vsyncpa [#allocation15], 1
    %2792 = vsyncpa [#allocation18], 1
    %2793 = vsyncpa [#allocation21], 1
    %2794 = vsyncpa [#allocation4], 1
    %2795 = vsyncpa [#allocation25], 1

// kernel: tpu_custom_call.1
$region0: #{tpu_custom_call.1}
  #allocation0 [shape = 'u32[]', space=smem, size = 0x4, offset = 0x4, fixed_abs, tag = 'smem constant byte address 0x4 - core index']
  #allocation1 [shape = 'u32[144,128]{1,0:T(1,128)}', space=vmem, size = 0x12000, scoped, tag = 'internal scratch']
  %s0 = inlined_call_operand.hbm [shape: f32[2,8,128], index: 0, kind: input, shape index: {}]
  %s1 = inlined_call_operand.hbm [shape: bf16[2,16,128], index: 1, kind: input, shape index: {}]
  %s2 = inlined_call_operand.hbm [shape: bf16[2,16,128], index: 2, kind: input, shape index: {}]
  %s3 = inlined_call_operand.hbm [shape: bf16[128,128], index: 3, kind: input, shape index: {}]
  %s4 = inlined_call_operand.hbm [shape: bf16[128,128], index: 4, kind: input, shape index: {}]
  %s5 = inlined_call_operand.hbm [shape: bf16[128,128], index: 5, kind: input, shape index: {}]
  %s6 = inlined_call_operand.vmem [shape: f32[16,128], index: 6, kind: input, shape index: {}]
  %s7 = inlined_call_operand.vmem [shape: f32[1,16], index: 7, kind: input, shape index: {}]
  %s8 = inlined_call_operand.hbm [shape: bf16[128,128], index: 8, kind: input, shape index: {}]
  %s9 = inlined_call_operand.vmem [shape: f32[1,128], index: 9, kind: input, shape index: {}]
  %s10 = inlined_call_operand.hbm [shape: bf16[128,128], index: 10, kind: input, shape index: {}]
  %s11 = inlined_call_operand.vmem [shape: f32[1,128], index: 11, kind: input, shape index: {}]
  %s12 = inlined_call_operand.hbm [shape: bf16[128,128], index: 12, kind: input, shape index: {}]
  %s13 = inlined_call_operand.hbm [shape: bf16[128,128], index: 13, kind: input, shape index: {}]
  %s14 = inlined_call_operand.hbm [shape: bf16[128,128], index: 14, kind: input, shape index: {}]
  %s15 = inlined_call_operand.vmem [shape: f32[1,128], index: 15, kind: input, shape index: {}]
  %s16 = inlined_call_operand.hbm [shape: bf16[128,1024], index: 16, kind: input, shape index: {}]
  %s17 = inlined_call_operand.vmem [shape: f32[1,1024], index: 17, kind: input, shape index: {}]
  %s18 = inlined_call_operand.hbm [shape: bf16[1024,128], index: 18, kind: input, shape index: {}]
  %s19 = inlined_call_operand.vmem [shape: f32[1,128], index: 19, kind: input, shape index: {}]
  %s20 = inlined_call_operand.vmem [shape: f32[1,128], index: 20, kind: input, shape index: {}]
  %s21 = inlined_call_operand.vmem [shape: f32[1,128], index: 21, kind: input, shape index: {}]
  %s22 = inlined_call_operand.vmem [shape: f32[1,128], index: 22, kind: input, shape index: {}]
  %s23 = inlined_call_operand.hbm [shape: f32[2,8,128], index: 23, kind: output, shape index: {0}]
  %s24 = inlined_call_operand.hbm [shape: bf16[2,8,128], index: 24, kind: output, shape index: {1}]
  %25 = xla_tuple %s23, %s24
  %s26 = sld [smem:[#allocation0]]
  $region162: #{tpu_custom_call.1} parent=0
    _
  %s28 = ssub.s32 1, %s26
  %s29 = scalar_select 0, %s28, %s26
  $region1: #{tpu_custom_call.1} parent=0
    #allocation2 [shape = 'u8[8192]{0}', space=vmem, size = 0x2000, scoped, tag = 'input window, operand 0, single buffered']
    #allocation3 [shape = 's32[1]{0}', space=sflag, size = 0x4, scoped, tag = 'scoped memory for tpu_custom_call.1']
    #allocation4 [shape = 's32[1]{0}', space=sflag, size = 0x4, scoped, tag = 'scoped memory for tpu_custom_call.1']
    #allocation5 [shape = 'u8[8192]{0}', space=vmem, size = 0x2000, scoped, tag = 'input window, operand 1, single buffered']
    #allocation6 [shape = 's32[1]{0}', space=sflag, size = 0x4, scoped, tag = 'scoped memory for tpu_custom_call.1']
    #allocation7 [shape = 'u8[8192]{0}', space=vmem, size = 0x2000, scoped, tag = 'input window, operand 2, single buffered']
    #allocation8 [shape = 'u8[32768]{0}', space=vmem, size = 0x8000, scoped, tag = 'input window, operand 3, single buffered']
    #allocation9 [shape = 's32[1]{0}', space=sflag, size = 0x4, scoped, tag = 'scoped memory for tpu_custom_call.1']
    #allocation10 [shape = 'u8[32768]{0}', space=vmem, size = 0x8000, scoped, tag = 'input window, operand 4, single buffered']
    #allocation11 [shape = 'u8[32768]{0}', space=vmem, size = 0x8000, scoped, tag = 'input window, operand 5, single buffered']
    #allocation12 [shape = 's32[1]{0}', space=sflag, size = 0x4, scoped, tag = 'scoped memory for tpu_custom_call.1']
    #allocation13 [shape = 'u8[32768]{0}', space=vmem, size = 0x8000, scoped, tag = 'input window, operand 8, single buffered']
    #allocation14 [shape = 'u8[32768]{0}', space=vmem, size = 0x8000, scoped, tag = 'input window, operand 10, single buffered']
    #allocation15 [shape = 's32[1]{0}', space=sflag, size = 0x4, scoped, tag = 'scoped memory for tpu_custom_call.1']
    #allocation16 [shape = 'u8[32768]{0}', space=vmem, size = 0x8000, scoped, tag = 'input window, operand 12, single buffered']
    #allocation17 [shape = 'u8[32768]{0}', space=vmem, size = 0x8000, scoped, tag = 'input window, operand 13, single buffered']
    #allocation18 [shape = 's32[1]{0}', space=sflag, size = 0x4, scoped, tag = 'scoped memory for tpu_custom_call.1']
    #allocation19 [shape = 'u8[32768]{0}', space=vmem, size = 0x8000, scoped, tag = 'input window, operand 14, single buffered']
    #allocation20 [shape = 'u8[262144]{0}', space=vmem, size = 0x40000, scoped, tag = 'input window, operand 16, single buffered']
    #allocation21 [shape = 's32[1]{0}', space=sflag, size = 0x4, scoped, tag = 'scoped memory for tpu_custom_call.1']
    #allocation22 [shape = 'u8[262144]{0}', space=vmem, size = 0x40000, scoped, tag = 'input window, operand 18, single buffered']
    #allocation23 [shape = 'u8[8192]{0}', space=vmem, size = 0x2000, scoped, tag = 'output window, operand 0, single buffered']
    #allocation24 [shape = 'u8[4096]{0}', space=vmem, size = 0x1000, scoped, tag = 'output window, operand 1, single buffered']
    #allocation25 [shape = 's32[1]{0}', space=sflag, size = 0x4, scoped, tag = 'scoped memory for tpu_custom_call.1']
    %30 = vsyncpa [#allocation3], 0
    %31 = vsyncpa [#allocation6], 0
    %32 = vsyncpa [#allocation9], 0
    %33 = vsyncpa [#allocation12], 0
    %34 = vsyncpa [#allocation15], 0
    %35 = vsyncpa [#allocation18], 0
    %36 = vsyncpa [#allocation21], 0
    %37 = vsyncpa [#allocation4], 0
    %38 = vsyncpa [#allocation25], 0
    // Predicated region
    $region2: #{tpu_custom_call.1} parent=1 // pred_check
      _
    $region3: #{tpu_custom_call.1} parent=1 // pred_check_branch
      %40 = sbr.rel (0) target = $region5
    $region4: #{tpu_custom_call.1} parent=1 // pred_region
      %s42 = ssub.s32 256, 256
      %43 = vsyncadd [#allocation3], %s42
      %s44 = sshll.u32 [#allocation2], 4
      %s45 = int_to_ptr.vmem [resolvable:$true] %s44
      %50 = dma.hbm_to_vmem [thread:$0]  %s0, 256, %s45, [#allocation3], 128, 128, 8
    $region5: #{tpu_custom_call.1} parent=1 // pred_fallthru
      _
    // Predicated region
    $region6: #{tpu_custom_call.1} parent=1 // pred_check
      _
    $region7: #{tpu_custom_call.1} parent=1 // pred_check_branch
      %52 = sbr.rel (0) target = $region9
    $region8: #{tpu_custom_call.1} parent=1 // pred_region
      %s54 = ssub.s32 256, 256
      %55 = vsyncadd [#allocation6], %s54
      %s56 = sshll.u32 [#allocation5], 4
      %s57 = int_to_ptr.vmem [resolvable:$true] %s56
      %62 = dma.hbm_to_vmem [thread:$0]  %s1, 256, %s57, [#allocation6], 64, 64, 4
    $region9: #{tpu_custom_call.1} parent=1 // pred_fallthru
      _
    // Predicated region
    $region10: #{tpu_custom_call.1} parent=1 // pred_check
      _
    $region11: #{tpu_custom_call.1} parent=1 // pred_check_branch
      %64 = sbr.rel (0) target = $region13
    $region12: #{tpu_custom_call.1} parent=1 // pred_region
      %s66 = ssub.s32 256, 256
      %67 = vsyncadd [#allocation6], %s66
      %s68 = sshll.u32 [#allocation7], 4
      %s69 = int_to_ptr.vmem [resolvable:$true] %s68
      %74 = dma.hbm_to_vmem [thread:$0]  %s2, 256, %s69, [#allocation6], 64, 64, 4
    $region13: #{tpu_custom_call.1} parent=1 // pred_fallthru
      _
    // Predicated region
    $region14: #{tpu_custom_call.1} parent=1 // pred_check
      _
    $region15: #{tpu_custom_call.1} parent=1 // pred_check_branch
      %76 = sbr.rel (0) target = $region17
    $region16: #{tpu_custom_call.1} parent=1 // pred_region
      %s78 = ssub.s32 1024, 1024
      %79 = vsyncadd [#allocation9], %s78
      %s80 = sshll.u32 [#allocation8], 4
      %s81 = int_to_ptr.vmem [resolvable:$true] %s80
      %86 = dma.hbm_to_vmem [thread:$0]  %s3, 1024, %s81, [#allocation9], 64, 64, 4
    $region17: #{tpu_custom_call.1} parent=1 // pred_fallthru
      _
    // Predicated region
    $region18: #{tpu_custom_call.1} parent=1 // pred_check
      _
    $region19: #{tpu_custom_call.1} parent=1 // pred_check_branch
      %88 = sbr.rel (0) target = $region21
    $region20: #{tpu_custom_call.1} parent=1 // pred_region
      %s90 = ssub.s32 1024, 1024
      %91 = vsyncadd [#allocation9], %s90
      %s92 = sshll.u32 [#allocation10], 4
      %s93 = int_to_ptr.vmem [resolvable:$true] %s92
      %98 = dma.hbm_to_vmem [thread:$0]  %s4, 1024, %s93, [#allocation9], 64, 64, 4
    $region21: #{tpu_custom_call.1} parent=1 // pred_fallthru
      _
    // Predicated region
    $region22: #{tpu_custom_call.1} parent=1 // pred_check
      _
    $region23: #{tpu_custom_call.1} parent=1 // pred_check_branch
      %100 = sbr.rel (0) target = $region25
    $region24: #{tpu_custom_call.1} parent=1 // pred_region
      %s102 = ssub.s32 1024, 1024
      %103 = vsyncadd [#allocation12], %s102
      %s104 = sshll.u32 [#allocation11], 4
      %s105 = int_to_ptr.vmem [resolvable:$true] %s104
      %110 = dma.hbm_to_vmem [thread:$0]  %s5, 1024, %s105, [#allocation12], 64, 64, 4
    $region25: #{tpu_custom_call.1} parent=1 // pred_fallthru
      _
    // Predicated region
    $region26: #{tpu_custom_call.1} parent=1 // pred_check
      _
    $region27: #{tpu_custom_call.1} parent=1 // pred_check_branch
      %112 = sbr.rel (0) target = $region29
    $region28: #{tpu_custom_call.1} parent=1 // pred_region
      _
    $region29: #{tpu_custom_call.1} parent=1 // pred_fallthru
      _
    // Predicated region
    $region30: #{tpu_custom_call.1} parent=1 // pred_check
      _
    $region31: #{tpu_custom_call.1} parent=1 // pred_check_branch
      %114 = sbr.rel (0) target = $region33
    $region32: #{tpu_custom_call.1} parent=1 // pred_region
      _
    $region33: #{tpu_custom_call.1} parent=1 // pred_fallthru
      _
    // Predicated region
    $region34: #{tpu_custom_call.1} parent=1 // pred_check
      _
    $region35: #{tpu_custom_call.1} parent=1 // pred_check_branch
      %116 = sbr.rel (0) target = $region37
    $region36: #{tpu_custom_call.1} parent=1 // pred_region
      %s118 = ssub.s32 1024, 1024
      %119 = vsyncadd [#allocation12], %s118
      %s120 = sshll.u32 [#allocation13], 4
      %s121 = int_to_ptr.vmem [resolvable:$true] %s120
      %126 = dma.hbm_to_vmem [thread:$0]  %s8, 1024, %s121, [#allocation12], 64, 64, 4
    $region37: #{tpu_custom_call.1} parent=1 // pred_fallthru
      _
    // Predicated region
    $region38: #{tpu_custom_call.1} parent=1 // pred_check
      _
    $region39: #{tpu_custom_call.1} parent=1 // pred_check_branch
      %128 = sbr.rel (0) target = $region41
    $region40: #{tpu_custom_call.1} parent=1 // pred_region
      _
    $region41: #{tpu_custom_call.1} parent=1 // pred_fallthru
      _
    // Predicated region
    $region42: #{tpu_custom_call.1} parent=1 // pred_check
      _
    $region43: #{tpu_custom_call.1} parent=1 // pred_check_branch
      %130 = sbr.rel (0) target = $region45
    $region44: #{tpu_custom_call.1} parent=1 // pred_region
      %s132 = ssub.s32 1024, 1024
      %133 = vsyncadd [#allocation15], %s132
      %s134 = sshll.u32 [#allocation14], 4
      %s135 = int_to_ptr.vmem [resolvable:$true] %s134
      %140 = dma.hbm_to_vmem [thread:$0]  %s10, 1024, %s135, [#allocation15], 64, 64, 4
    $region45: #{tpu_custom_call.1} parent=1 // pred_fallthru
      _
    // Predicated region
    $region46: #{tpu_custom_call.1} parent=1 // pred_check
      _
    $region47: #{tpu_custom_call.1} parent=1 // pred_check_branch
      %142 = sbr.rel (0) target = $region49
    $region48: #{tpu_custom_call.1} parent=1 // pred_region
      _
    $region49: #{tpu_custom_call.1} parent=1 // pred_fallthru
      _
    // Predicated region
    $region50: #{tpu_custom_call.1} parent=1 // pred_check
      _
    $region51: #{tpu_custom_call.1} parent=1 // pred_check_branch
      %144 = sbr.rel (0) target = $region53
    $region52: #{tpu_custom_call.1} parent=1 // pred_region
      %s146 = ssub.s32 1024, 1024
      %147 = vsyncadd [#allocation15], %s146
      %s148 = sshll.u32 [#allocation16], 4
      %s149 = int_to_ptr.vmem [resolvable:$true] %s148
      %154 = dma.hbm_to_vmem [thread:$0]  %s12, 1024, %s149, [#allocation15], 64, 64, 4
    $region53: #{tpu_custom_call.1} parent=1 // pred_fallthru
      _
    // Predicated region
    $region54: #{tpu_custom_call.1} parent=1 // pred_check
      _
    $region55: #{tpu_custom_call.1} parent=1 // pred_check_branch
      %156 = sbr.rel (0) target = $region57
    $region56: #{tpu_custom_call.1} parent=1 // pred_region
      %s158 = ssub.s32 1024, 1024
      %159 = vsyncadd [#allocation18], %s158
      %s160 = sshll.u32 [#allocation17], 4
      %s161 = int_to_ptr.vmem [resolvable:$true] %s160
      %166 = dma.hbm_to_vmem [thread:$0]  %s13, 1024, %s161, [#allocation18], 64, 64, 4
    $region57: #{tpu_custom_call.1} parent=1 // pred_fallthru
      _
    // Predicated region
    $region58: #{tpu_custom_call.1} parent=1 // pred_check
      _
    $region59: #{tpu_custom_call.1} parent=1 // pred_check_branch
      %168 = sbr.rel (0) target = $region61
    $region60: #{tpu_custom_call.1} parent=1 // pred_region
      %s170 = ssub.s32 1024, 1024
      %171 = vsyncadd [#allocation18], %s170
      %s172 = sshll.u32 [#allocation19], 4
      %s173 = int_to_ptr.vmem [resolvable:$true] %s172
      %178 = dma.hbm_to_vmem [thread:$0]  %s14, 1024, %s173, [#allocation18], 64, 64, 4
    $region61: #{tpu_custom_call.1} parent=1 // pred_fallthru
      _
    // Predicated region
    $region62: #{tpu_custom_call.1} parent=1 // pred_check
      _
    $region63: #{tpu_custom_call.1} parent=1 // pred_check_branch
      %180 = sbr.rel (0) target = $region65
    $region64: #{tpu_custom_call.1} parent=1 // pred_region
      _
    $region65: #{tpu_custom_call.1} parent=1 // pred_fallthru
      _
    // Predicated region
    $region66: #{tpu_custom_call.1} parent=1 // pred_check
      _
    $region67: #{tpu_custom_call.1} parent=1 // pred_check_branch
      %182 = sbr.rel (0) target = $region69
    $region68: #{tpu_custom_call.1} parent=1 // pred_region
      %s184 = ssub.s32 8192, 8192
      %185 = vsyncadd [#allocation21], %s184
      %s186 = sshll.u32 [#allocation20], 4
      %s187 = int_to_ptr.vmem [resolvable:$true] %s186
      %192 = dma.hbm_to_vmem [thread:$0]  %s16, 8192, %s187, [#allocation21], 512, 512, 32
    $region69: #{tpu_custom_call.1} parent=1 // pred_fallthru
      _
    // Predicated region
    $region70: #{tpu_custom_call.1} parent=1 // pred_check
      _
    $region71: #{tpu_custom_call.1} parent=1 // pred_check_branch
      %194 = sbr.rel (0) target = $region73
    $region72: #{tpu_custom_call.1} parent=1 // pred_region
      _
    $region73: #{tpu_custom_call.1} parent=1 // pred_fallthru
      _
    // Predicated region
    $region74: #{tpu_custom_call.1} parent=1 // pred_check
      _
    $region75: #{tpu_custom_call.1} parent=1 // pred_check_branch
      %196 = sbr.rel (0) target = $region77
    $region76: #{tpu_custom_call.1} parent=1 // pred_region
      %s198 = ssub.s32 8192, 8192
      %199 = vsyncadd [#allocation21], %s198
      %s200 = sshll.u32 [#allocation22], 4
      %s201 = int_to_ptr.vmem [resolvable:$true] %s200
      %206 = dma.hbm_to_vmem [thread:$0]  %s18, 8192, %s201, [#allocation21], 64, 64, 4
    $region77: #{tpu_custom_call.1} parent=1 // pred_fallthru
      _
    // Predicated region
    $region78: #{tpu_custom_call.1} parent=1 // pred_check
      _
    $region79: #{tpu_custom_call.1} parent=1 // pred_check_branch
      %208 = sbr.rel (0) target = $region81
    $region80: #{tpu_custom_call.1} parent=1 // pred_region
      _
    $region81: #{tpu_custom_call.1} parent=1 // pred_fallthru
      _
    // Predicated region
    $region82: #{tpu_custom_call.1} parent=1 // pred_check
      _
    $region83: #{tpu_custom_call.1} parent=1 // pred_check_branch
      %210 = sbr.rel (0) target = $region85
    $region84: #{tpu_custom_call.1} parent=1 // pred_region
      _
    $region85: #{tpu_custom_call.1} parent=1 // pred_fallthru
      _
    // Predicated region
    $region86: #{tpu_custom_call.1} parent=1 // pred_check
      _
    $region87: #{tpu_custom_call.1} parent=1 // pred_check_branch
      %212 = sbr.rel (0) target = $region89
    $region88: #{tpu_custom_call.1} parent=1 // pred_region
      _
    $region89: #{tpu_custom_call.1} parent=1 // pred_fallthru
      _
    // Predicated region
    $region90: #{tpu_custom_call.1} parent=1 // pred_check
      _
    $region91: #{tpu_custom_call.1} parent=1 // pred_check_branch
      %214 = sbr.rel (0) target = $region93
    $region92: #{tpu_custom_call.1} parent=1 // pred_region
      _
    $region93: #{tpu_custom_call.1} parent=1 // pred_fallthru
      _
    // Predicated region
    $region94: #{tpu_custom_call.1} parent=1 // pred_check
      _
    $region95: #{tpu_custom_call.1} parent=1 // pred_check_branch
      %216 = sbr.rel (0) target = $region97
    $region96: #{tpu_custom_call.1} parent=1 // pred_region
      %217 = dma.done [#allocation3], 256
    $region97: #{tpu_custom_call.1} parent=1 // pred_fallthru
      _
    // Predicated region
    $region98: #{tpu_custom_call.1} parent=1 // pred_check
      _
    $region99: #{tpu_custom_call.1} parent=1 // pred_check_branch
      %219 = sbr.rel (0) target = $region101
    $region100: #{tpu_custom_call.1} parent=1 // pred_region
      %220 = dma.done [#allocation6], 256
    $region101: #{tpu_custom_call.1} parent=1 // pred_fallthru
      _
    // Predicated region
    $region102: #{tpu_custom_call.1} parent=1 // pred_check
      _
    $region103: #{tpu_custom_call.1} parent=1 // pred_check_branch
      %222 = sbr.rel (0) target = $region105
    $region104: #{tpu_custom_call.1} parent=1 // pred_region
      %223 = dma.done [#allocation6], 256
    $region105: #{tpu_custom_call.1} parent=1 // pred_fallthru
      _
    // Predicated region
    $region106: #{tpu_custom_call.1} parent=1 // pred_check
      _
    $region107: #{tpu_custom_call.1} parent=1 // pred_check_branch
      %225 = sbr.rel (0) target = $region109
    $region108: #{tpu_custom_call.1} parent=1 // pred_region
      %226 = dma.done [#allocation9], 1024
    $region109: #{tpu_custom_call.1} parent=1 // pred_fallthru
      _
    // Predicated region
    $region110: #{tpu_custom_call.1} parent=1 // pred_check
      _
    $region111: #{tpu_custom_call.1} parent=1 // pred_check_branch
      %228 = sbr.rel (0) target = $region113
    $region112: #{tpu_custom_call.1} parent=1 // pred_region
      %229 = dma.done [#allocation9], 1024
    $region113: #{tpu_custom_call.1} parent=1 // pred_fallthru
      _
    // Predicated region
    $region114: #{tpu_custom_call.1} parent=1 // pred_check
      _
    $region115: #{tpu_custom_call.1} parent=1 // pred_check_branch
      %231 = sbr.rel (0) target = $region117
    $region116: #{tpu_custom_call.1} parent=1 // pred_region
      %232 = dma.done [#allocation12], 1024
    $region117: #{tpu_custom_call.1} parent=1 // pred_fallthru
      _
    // Predicated region
    $region118: #{tpu_custom_call.1} parent=1 // pred_check
      _
    $region119: #{tpu_custom_call.1} parent=1 // pred_check_branch
      %234 = sbr.rel (0) target = $region121
    $region120: #{tpu_custom_call.1} parent=1 // pred_region
      %235 = dma.done [#allocation12], 1024
    $region121: #{tpu_custom_call.1} parent=1 // pred_fallthru
      _
    // Predicated region
    $region122: #{tpu_custom_call.1} parent=1 // pred_check
      _
    $region123: #{tpu_custom_call.1} parent=1 // pred_check_branch
      %237 = sbr.rel (0) target = $region125
    $region124: #{tpu_custom_call.1} parent=1 // pred_region
      %238 = dma.done [#allocation15], 1024
    $region125: #{tpu_custom_call.1} parent=1 // pred_fallthru
      _
    // Predicated region
    $region126: #{tpu_custom_call.1} parent=1 // pred_check
      _
    $region127: #{tpu_custom_call.1} parent=1 // pred_check_branch
      %240 = sbr.rel (0) target = $region129
    $region128: #{tpu_custom_call.1} parent=1 // pred_region
      %241 = dma.done [#allocation15], 1024
    $region129: #{tpu_custom_call.1} parent=1 // pred_fallthru
      _
    // Predicated region
    $region130: #{tpu_custom_call.1} parent=1 // pred_check
      _
    $region131: #{tpu_custom_call.1} parent=1 // pred_check_branch
      %243 = sbr.rel (0) target = $region133
    $region132: #{tpu_custom_call.1} parent=1 // pred_region
      %244 = dma.done [#allocation18], 1024
    $region133: #{tpu_custom_call.1} parent=1 // pred_fallthru
      _
    // Predicated region
    $region134: #{tpu_custom_call.1} parent=1 // pred_check
      _
    $region135: #{tpu_custom_call.1} parent=1 // pred_check_branch
      %246 = sbr.rel (0) target = $region137
    $region136: #{tpu_custom_call.1} parent=1 // pred_region
      %247 = dma.done [#allocation18], 1024
    $region137: #{tpu_custom_call.1} parent=1 // pred_fallthru
      _
    // Predicated region
    $region138: #{tpu_custom_call.1} parent=1 // pred_check
      _
    $region139: #{tpu_custom_call.1} parent=1 // pred_check_branch
      %249 = sbr.rel (0) target = $region141
    $region140: #{tpu_custom_call.1} parent=1 // pred_region
      %250 = dma.done [#allocation21], 8192
    $region141: #{tpu_custom_call.1} parent=1 // pred_fallthru
      _
    // Predicated region
    $region142: #{tpu_custom_call.1} parent=1 // pred_check
      _
    $region143: #{tpu_custom_call.1} parent=1 // pred_check_branch
      %252 = sbr.rel (0) target = $region145
    $region144: #{tpu_custom_call.1} parent=1 // pred_region
      %253 = dma.done [#allocation21], 8192
    $region145: #{tpu_custom_call.1} parent=1 // pred_fallthru
      _
    %v255 = vld [vmem:[#allocation2] sm:$0xff]
    %v256 = vld [vmem:[#allocation2 + $0x8] sm:$0xff]
    %v257 = vpack.c.bf16 %v256, %v255
    %v258 = vld [vmem:[#allocation5] sm:$0xf]
    %v259 = vld [vmem:[#allocation5 + $0x4] sm:$0xf]
    %v260 = vld [vmem:[#allocation5 + $0x8] sm:$0xf]
    %v261 = vld [vmem:[#allocation5 + $0xc] sm:$0xf]
    %v262 = vld [vmem:[#allocation7] sm:$0xf]
    %v263 = vld [vmem:[#allocation7 + $0x4] sm:$0xf]
    %v264 = vld [vmem:[#allocation7 + $0x8] sm:$0xf]
    %v265 = vld [vmem:[#allocation7 + $0xc] sm:$0xf]
    %v266 = vld [vmem:[#allocation8] sm:$0xf]
    %v267 = vld [vmem:[#allocation8 + $0x4] sm:$0xf]
    %v268 = vld [vmem:[#allocation8 + $0x8] sm:$0xf]
    %v269 = vld [vmem:[#allocation8 + $0xc] sm:$0xf]
    %v270 = vld [vmem:[#allocation8 + $0x10] sm:$0xf]
    %v271 = vld [vmem:[#allocation8 + $0x14] sm:$0xf]
    %v272 = vld [vmem:[#allocation8 + $0x18] sm:$0xf]
    %v273 = vld [vmem:[#allocation8 + $0x1c] sm:$0xf]
    %v274 = vld [vmem:[#allocation8 + $0x20] sm:$0xf]
    %v275 = vld [vmem:[#allocation8 + $0x24] sm:$0xf]
    %v276 = vld [vmem:[#allocation8 + $0x28] sm:$0xf]
    %v277 = vld [vmem:[#allocation8 + $0x2c] sm:$0xf]
    %v278 = vld [vmem:[#allocation8 + $0x30] sm:$0xf]
    %v279 = vld [vmem:[#allocation8 + $0x34] sm:$0xf]
    %v280 = vld [vmem:[#allocation8 + $0x38] sm:$0xf]
    %v281 = vld [vmem:[#allocation8 + $0x3c] sm:$0xf]
    %v298 = vunpack.c.l.b16 %v266
    %v299 = vunpack.c.l.b16 %v267
    %v300 = vunpack.c.l.b16 %v268
    %v301 = vunpack.c.l.b16 %v269
    %v302 = vunpack.c.l.b16 %v270
    %v303 = vunpack.c.l.b16 %v271
    %v304 = vunpack.c.l.b16 %v272
    %v305 = vunpack.c.l.b16 %v273
    %v306 = vunpack.c.l.b16 %v274
    %v307 = vunpack.c.l.b16 %v275
    %v308 = vunpack.c.l.b16 %v276
    %v309 = vunpack.c.l.b16 %v277
    %v310 = vunpack.c.l.b16 %v278
    %v311 = vunpack.c.l.b16 %v279
    %v312 = vunpack.c.l.b16 %v280
    %v313 = vunpack.c.l.b16 %v281
    %v314 = vpack.c.b16 %v299, %v298
    %v315 = vpack.c.b16 %v301, %v300
    %v316 = vpack.c.b16 %v303, %v302
    %v317 = vpack.c.b16 %v305, %v304
    %v318 = vpack.c.b16 %v307, %v306
    %v319 = vpack.c.b16 %v309, %v308
    %v320 = vpack.c.b16 %v311, %v310
    %v321 = vpack.c.b16 %v313, %v312
    %330 = vmatprep.subr.bf16.mxu0 0
    %331 = vmatpush1.bf16.msra.mxu0 %v314
    %332 = vmatprep.subr.bf16.mxu0 0
    %333 = vmatpush1.bf16.msra.mxu0 %v315
    %334 = vmatprep.subr.bf16.mxu0 0
    %335 = vmatpush1.bf16.msra.mxu0 %v316
    %336 = vmatprep.subr.bf16.mxu0 0
    %337 = vmatpush1.bf16.msra.mxu0 %v317
    %338 = vmatprep.subr.bf16.mxu0 0
    %339 = vmatpush1.bf16.msra.mxu0 %v318
    %340 = vmatprep.subr.bf16.mxu0 0
    %341 = vmatpush1.bf16.msra.mxu0 %v319
    %342 = vmatprep.subr.bf16.mxu0 0
    %343 = vmatpush1.bf16.msra.mxu0 %v320
    %344 = vmatprep.subr.bf16.mxu0 0
    %345 = vmatpush1.bf16.msra.mxu0 %v321
    %346 = vmatprep.subr.bf16.mxu0 0
    %347 = vmatpush1.bf16.msra.mxu0 0
    %348 = vmatprep.subr.bf16.mxu0 0
    %349 = vmatpush1.bf16.msra.mxu0 0
    %350 = vmatprep.subr.bf16.mxu0 0
    %351 = vmatpush1.bf16.msra.mxu0 0
    %352 = vmatprep.subr.bf16.mxu0 0
    %353 = vmatpush1.bf16.msra.mxu0 0
    %354 = vmatprep.subr.bf16.mxu0 0
    %355 = vmatpush1.bf16.msra.mxu0 0
    %356 = vmatprep.subr.bf16.mxu0 0
    %357 = vmatpush1.bf16.msra.mxu0 0
    %358 = vmatprep.subr.bf16.mxu0 0
    %359 = vmatpush1.bf16.msra.mxu0 0
    %360 = vmatprep.subr.bf16.mxu0 0
    %361 = vmatpush1.bf16.msra.mxu0 0
    %362 = vmatprep.mubr.bf16.mxu0 0
    %363 = vmatmul.mubr.bf16.gmra.mrb[0].mxu0 %v257
    %v364 = vpop.f32.mrb[0].mxu0
    %v365 = vadd.f32 0.0, %v364
    %v366 = vpop.f32.mrb[0].mxu0
    %v367 = vpop.f32.mrb[0].mxu0
    %v368 = vadd.f32 0.0, %v367
    %v369 = vpop.f32.mrb[0].mxu0
    %370 = vdwg.mxu0
    %v371 = vld [vmem:[#allocation10] sm:$0xf]
    %v372 = vld [vmem:[#allocation10 + $0x4] sm:$0xf]
    %v373 = vld [vmem:[#allocation10 + $0x8] sm:$0xf]
    %v374 = vld [vmem:[#allocation10 + $0xc] sm:$0xf]
    %v375 = vld [vmem:[#allocation10 + $0x10] sm:$0xf]
    %v376 = vld [vmem:[#allocation10 + $0x14] sm:$0xf]
    %v377 = vld [vmem:[#allocation10 + $0x18] sm:$0xf]
    %v378 = vld [vmem:[#allocation10 + $0x1c] sm:$0xf]
    %v379 = vld [vmem:[#allocation10 + $0x20] sm:$0xf]
    %v380 = vld [vmem:[#allocation10 + $0x24] sm:$0xf]
    %v381 = vld [vmem:[#allocation10 + $0x28] sm:$0xf]
    %v382 = vld [vmem:[#allocation10 + $0x2c] sm:$0xf]
    %v383 = vld [vmem:[#allocation10 + $0x30] sm:$0xf]
    %v384 = vld [vmem:[#allocation10 + $0x34] sm:$0xf]
    %v385 = vld [vmem:[#allocation10 + $0x38] sm:$0xf]
    %v386 = vld [vmem:[#allocation10 + $0x3c] sm:$0xf]
    %v391 = vunpack.c.l.b16 %v258
    %v392 = vunpack.c.l.b16 %v259
    %v393 = vunpack.c.l.b16 %v260
    %v394 = vunpack.c.l.b16 %v261
    %v395 = vpack.c.b16 %v392, %v391
    %v396 = vpack.c.b16 %v394, %v393
    %v415 = vunpack.c.l.b16 %v371
    %v416 = vunpack.c.l.b16 %v372
    %v417 = vunpack.c.l.b16 %v373
    %v418 = vunpack.c.l.b16 %v374
    %v419 = vunpack.c.l.b16 %v375
    %v420 = vunpack.c.l.b16 %v376
    %v421 = vunpack.c.l.b16 %v377
    %v422 = vunpack.c.l.b16 %v378
    %v423 = vunpack.c.l.b16 %v379
    %v424 = vunpack.c.l.b16 %v380
    %v425 = vunpack.c.l.b16 %v381
    %v426 = vunpack.c.l.b16 %v382
    %v427 = vunpack.c.l.b16 %v383
    %v428 = vunpack.c.l.b16 %v384
    %v429 = vunpack.c.l.b16 %v385
    %v430 = vunpack.c.l.b16 %v386
    %v431 = vpack.c.b16 %v416, %v415
    %v432 = vpack.c.b16 %v418, %v417
    %v433 = vpack.c.b16 %v420, %v419
    %v434 = vpack.c.b16 %v422, %v421
    %v435 = vpack.c.b16 %v424, %v423
    %v436 = vpack.c.b16 %v426, %v425
    %v437 = vpack.c.b16 %v428, %v427
    %v438 = vpack.c.b16 %v430, %v429
    %447 = vmatprep.subr.bf16.mxu0 0
    %448 = vmatpush1.bf16.msra.mxu0 %v431
    %449 = vmatprep.subr.bf16.mxu0 0
    %450 = vmatpush1.bf16.msra.mxu0 %v432
    %451 = vmatprep.subr.bf16.mxu0 0
    %452 = vmatpush1.bf16.msra.mxu0 %v433
    %453 = vmatprep.subr.bf16.mxu0 0
    %454 = vmatpush1.bf16.msra.mxu0 %v434
    %455 = vmatprep.subr.bf16.mxu0 0
    %456 = vmatpush1.bf16.msra.mxu0 %v435
    %457 = vmatprep.subr.bf16.mxu0 0
    %458 = vmatpush1.bf16.msra.mxu0 %v436
    %459 = vmatprep.subr.bf16.mxu0 0
    %460 = vmatpush1.bf16.msra.mxu0 %v437
    %461 = vmatprep.subr.bf16.mxu0 0
    %462 = vmatpush1.bf16.msra.mxu0 %v438
    %463 = vmatprep.subr.bf16.mxu0 0
    %464 = vmatpush1.bf16.msra.mxu0 0
    %465 = vmatprep.subr.bf16.mxu0 0
    %466 = vmatpush1.bf16.msra.mxu0 0
    %467 = vmatprep.subr.bf16.mxu0 0
    %468 = vmatpush1.bf16.msra.mxu0 0
    %469 = vmatprep.subr.bf16.mxu0 0
    %470 = vmatpush1.bf16.msra.mxu0 0
    %471 = vmatprep.subr.bf16.mxu0 0
    %472 = vmatpush1.bf16.msra.mxu0 0
    %473 = vmatprep.subr.bf16.mxu0 0
    %474 = vmatpush1.bf16.msra.mxu0 0
    %475 = vmatprep.subr.bf16.mxu0 0
    %476 = vmatpush1.bf16.msra.mxu0 0
    %477 = vmatprep.subr.bf16.mxu0 0
    %478 = vmatpush1.bf16.msra.mxu0 0
    %479 = vmatprep.mubr.bf16.mxu0 0
    %480 = vmatmul.mubr.bf16.gmra.mrb[0].mxu0 %v395
    %v481 = vpop.f32.mrb[0].mxu0
    %v482 = vadd.f32 0.0, %v481
    %v483 = vpop.f32.mrb[0].mxu0
    %v484 = vpop.f32.mrb[0].mxu0
    %v485 = vadd.f32 0.0, %v484
    %v486 = vpop.f32.mrb[0].mxu0
    %487 = vmatprep.mubr.bf16.mxu0 0
    %488 = vmatmul.mubr.bf16.gmra.mrb[0].mxu0 %v396
    %v489 = vpop.f32.mrb[0].mxu0
    %v490 = vadd.f32 0.0, %v489
    %v491 = vpop.f32.mrb[0].mxu0
    %v492 = vpop.f32.mrb[0].mxu0
    %v493 = vadd.f32 0.0, %v492
    %v494 = vpop.f32.mrb[0].mxu0
    %495 = vdwg.mxu0
    %v496 = vld [vmem:[#allocation11] sm:$0xf]
    %v497 = vld [vmem:[#allocation11 + $0x4] sm:$0xf]
    %v498 = vld [vmem:[#allocation11 + $0x8] sm:$0xf]
    %v499 = vld [vmem:[#allocation11 + $0xc] sm:$0xf]
    %v500 = vld [vmem:[#allocation11 + $0x10] sm:$0xf]
    %v501 = vld [vmem:[#allocation11 + $0x14] sm:$0xf]
    %v502 = vld [vmem:[#allocation11 + $0x18] sm:$0xf]
    %v503 = vld [vmem:[#allocation11 + $0x1c] sm:$0xf]
    %v504 = vld [vmem:[#allocation11 + $0x20] sm:$0xf]
    %v505 = vld [vmem:[#allocation11 + $0x24] sm:$0xf]
    %v506 = vld [vmem:[#allocation11 + $0x28] sm:$0xf]
    %v507 = vld [vmem:[#allocation11 + $0x2c] sm:$0xf]
    %v508 = vld [vmem:[#allocation11 + $0x30] sm:$0xf]
    %v509 = vld [vmem:[#allocation11 + $0x34] sm:$0xf]
    %v510 = vld [vmem:[#allocation11 + $0x38] sm:$0xf]
    %v511 = vld [vmem:[#allocation11 + $0x3c] sm:$0xf]
    %v516 = vunpack.c.l.b16 %v262
    %v517 = vunpack.c.l.b16 %v263
    %v518 = vunpack.c.l.b16 %v264
    %v519 = vunpack.c.l.b16 %v265
    %v520 = vpack.c.b16 %v517, %v516
    %v521 = vpack.c.b16 %v519, %v518
    %v540 = vunpack.c.l.b16 %v496
    %v541 = vunpack.c.l.b16 %v497
    %v542 = vunpack.c.l.b16 %v498
    %v543 = vunpack.c.l.b16 %v499
    %v544 = vunpack.c.l.b16 %v500
    %v545 = vunpack.c.l.b16 %v501
    %v546 = vunpack.c.l.b16 %v502
    %v547 = vunpack.c.l.b16 %v503
    %v548 = vunpack.c.l.b16 %v504
    %v549 = vunpack.c.l.b16 %v505
    %v550 = vunpack.c.l.b16 %v506
    %v551 = vunpack.c.l.b16 %v507
    %v552 = vunpack.c.l.b16 %v508
    %v553 = vunpack.c.l.b16 %v509
    %v554 = vunpack.c.l.b16 %v510
    %v555 = vunpack.c.l.b16 %v511
    %v556 = vpack.c.b16 %v541, %v540
    %v557 = vpack.c.b16 %v543, %v542
    %v558 = vpack.c.b16 %v545, %v544
    %v559 = vpack.c.b16 %v547, %v546
    %v560 = vpack.c.b16 %v549, %v548
    %v561 = vpack.c.b16 %v551, %v550
    %v562 = vpack.c.b16 %v553, %v552
    %v563 = vpack.c.b16 %v555, %v554
    %572 = vmatprep.subr.bf16.mxu0 0
    %573 = vmatpush1.bf16.msra.mxu0 %v556
    %574 = vmatprep.subr.bf16.mxu0 0
    %575 = vmatpush1.bf16.msra.mxu0 %v557
    %576 = vmatprep.subr.bf16.mxu0 0
    %577 = vmatpush1.bf16.msra.mxu0 %v558
    %578 = vmatprep.subr.bf16.mxu0 0
    %579 = vmatpush1.bf16.msra.mxu0 %v559
    %580 = vmatprep.subr.bf16.mxu0 0
    %581 = vmatpush1.bf16.msra.mxu0 %v560
    %582 = vmatprep.subr.bf16.mxu0 0
    %583 = vmatpush1.bf16.msra.mxu0 %v561
    %584 = vmatprep.subr.bf16.mxu0 0
    %585 = vmatpush1.bf16.msra.mxu0 %v562
    %586 = vmatprep.subr.bf16.mxu0 0
    %587 = vmatpush1.bf16.msra.mxu0 %v563
    %588 = vmatprep.subr.bf16.mxu0 0
    %589 = vmatpush1.bf16.msra.mxu0 0
    %590 = vmatprep.subr.bf16.mxu0 0
    %591 = vmatpush1.bf16.msra.mxu0 0
    %592 = vmatprep.subr.bf16.mxu0 0
    %593 = vmatpush1.bf16.msra.mxu0 0
    %594 = vmatprep.subr.bf16.mxu0 0
    %595 = vmatpush1.bf16.msra.mxu0 0
    %596 = vmatprep.subr.bf16.mxu0 0
    %597 = vmatpush1.bf16.msra.mxu0 0
    %598 = vmatprep.subr.bf16.mxu0 0
    %599 = vmatpush1.bf16.msra.mxu0 0
    %600 = vmatprep.subr.bf16.mxu0 0
    %601 = vmatpush1.bf16.msra.mxu0 0
    %602 = vmatprep.subr.bf16.mxu0 0
    %603 = vmatpush1.bf16.msra.mxu0 0
    %604 = vmatprep.mubr.bf16.mxu0 0
    %605 = vmatmul.mubr.bf16.gmra.mrb[0].mxu0 %v520
    %v606 = vpop.f32.mrb[0].mxu0
    %v607 = vadd.f32 0.0, %v606
    %v608 = vpop.f32.mrb[0].mxu0
    %v609 = vpop.f32.mrb[0].mxu0
    %v610 = vadd.f32 0.0, %v609
    %v611 = vpop.f32.mrb[0].mxu0
    %612 = vmatprep.mubr.bf16.mxu0 0
    %613 = vmatmul.mubr.bf16.gmra.mrb[0].mxu0 %v521
    %v614 = vpop.f32.mrb[0].mxu0
    %v615 = vadd.f32 0.0, %v614
    %v616 = vpop.f32.mrb[0].mxu0
    %v617 = vpop.f32.mrb[0].mxu0
    %v618 = vadd.f32 0.0, %v617
    %v619 = vpop.f32.mrb[0].mxu0
    %620 = vdwg.mxu0
    %v621 = vld [vmem:[%s6] sm:$0xff]
    %v622 = vld [vmem:[%s6 + $0x8] sm:$0xff]
    %v623 = vadd.f32 %v482, %v621
    %v624 = vadd.f32 %v485, %v622
    %v625 = vadd.f32 %v490, %v621
    %v626 = vadd.f32 %v493, %v622
    %v627 = vpack.c.bf16 %v365, %v365
    %v628 = vpack.c.bf16 %v368, %v368
    %v629 = vpack.c.bf16 %v624, %v623
    %v630 = vpack.c.bf16 %v626, %v625
    %v631 = vld [vmem:[%s7] sm:$0x1]
    %v633 = vlaneseq
    %v634 = vshrl.u32 %v633, 7
    %v635 = vsub.s32 0, %v634
    %v636 = vrot.slane %v631, %v635
    %638 = vmatprep.subr.bf16.mxu0 0
    %639 = vmatpush1.bf16.xpose.msra.mxu0 %v629
    %640 = vmatprep.subr.bf16.mxu0 0
    %641 = vmatpush1.bf16.xpose.msra.mxu0 0
    %642 = vmatprep.subr.bf16.mxu0 0
    %643 = vmatpush1.bf16.xpose.msra.mxu0 0
    %644 = vmatprep.subr.bf16.mxu0 0
    %645 = vmatpush1.bf16.xpose.msra.mxu0 0
    %646 = vmatprep.subr.bf16.mxu0 0
    %647 = vmatpush1.bf16.xpose.msra.mxu0 0
    %648 = vmatprep.subr.bf16.mxu0 0
    %649 = vmatpush1.bf16.xpose.msra.mxu0 0
    %650 = vmatprep.subr.bf16.mxu0 0
    %651 = vmatpush1.bf16.xpose.msra.mxu0 0
    %652 = vmatprep.subr.bf16.mxu0 0
    %653 = vmatpush1.bf16.xpose.msra.mxu0 0
    %654 = vmatprep.subr.bf16.mxu0 0
    %655 = vmatpush1.bf16.xpose.msra.mxu0 0
    %656 = vmatprep.subr.bf16.mxu0 0
    %657 = vmatpush1.bf16.xpose.msra.mxu0 0
    %658 = vmatprep.subr.bf16.mxu0 0
    %659 = vmatpush1.bf16.xpose.msra.mxu0 0
    %660 = vmatprep.subr.bf16.mxu0 0
    %661 = vmatpush1.bf16.xpose.msra.mxu0 0
    %662 = vmatprep.subr.bf16.mxu0 0
    %663 = vmatpush1.bf16.xpose.msra.mxu0 0
    %664 = vmatprep.subr.bf16.mxu0 0
    %665 = vmatpush1.bf16.xpose.msra.mxu0 0
    %666 = vmatprep.subr.bf16.mxu0 0
    %667 = vmatpush1.bf16.xpose.msra.mxu0 0
    %668 = vmatprep.subr.bf16.mxu0 0
    %669 = vmatpush1.bf16.xpose.msra.mxu0 0
    %670 = vmatprep.mubr.bf16.mxu0 0
    %671 = vmatmul.mubr.bf16.gmra.mrb[0].mxu0 %v627
    %v672 = vpop.f32.mrb[0].mxu0
    %v673 = vadd.f32 %v636, %v672
    %v674 = vpop.f32.mrb[0].mxu0
    %v675 = vpop.f32.mrb[0].mxu0
    %v676 = vpop.f32.mrb[0].mxu0
    %677 = vdwg.mxu0
    %678 = vmatprep.subr.bf16.mxu0 0
    %679 = vmatpush1.bf16.xpose.msra.mxu0 %v630
    %680 = vmatprep.subr.bf16.mxu0 0
    %681 = vmatpush1.bf16.xpose.msra.mxu0 0
    %682 = vmatprep.subr.bf16.mxu0 0
    %683 = vmatpush1.bf16.xpose.msra.mxu0 0
    %684 = vmatprep.subr.bf16.mxu0 0
    %685 = vmatpush1.bf16.xpose.msra.mxu0 0
    %686 = vmatprep.subr.bf16.mxu0 0
    %687 = vmatpush1.bf16.xpose.msra.mxu0 0
    %688 = vmatprep.subr.bf16.mxu0 0
    %689 = vmatpush1.bf16.xpose.msra.mxu0 0
    %690 = vmatprep.subr.bf16.mxu0 0
    %691 = vmatpush1.bf16.xpose.msra.mxu0 0
    %692 = vmatprep.subr.bf16.mxu0 0
    %693 = vmatpush1.bf16.xpose.msra.mxu0 0
    %694 = vmatprep.subr.bf16.mxu0 0
    %695 = vmatpush1.bf16.xpose.msra.mxu0 0
    %696 = vmatprep.subr.bf16.mxu0 0
    %697 = vmatpush1.bf16.xpose.msra.mxu0 0
    %698 = vmatprep.subr.bf16.mxu0 0
    %699 = vmatpush1.bf16.xpose.msra.mxu0 0
    %700 = vmatprep.subr.bf16.mxu0 0
    %701 = vmatpush1.bf16.xpose.msra.mxu0 0
    %702 = vmatprep.subr.bf16.mxu0 0
    %703 = vmatpush1.bf16.xpose.msra.mxu0 0
    %704 = vmatprep.subr.bf16.mxu0 0
    %705 = vmatpush1.bf16.xpose.msra.mxu0 0
    %706 = vmatprep.subr.bf16.mxu0 0
    %707 = vmatpush1.bf16.xpose.msra.mxu0 0
    %708 = vmatprep.subr.bf16.mxu0 0
    %709 = vmatpush1.bf16.xpose.msra.mxu0 0
    %710 = vmatprep.mubr.bf16.mxu0 0
    %711 = vmatmul.mubr.bf16.gmra.mrb[0].mxu0 %v628
    %v712 = vpop.f32.mrb[0].mxu0
    %v713 = vadd.f32 %v636, %v712
    %v714 = vpop.f32.mrb[0].mxu0
    %v715 = vpop.f32.mrb[0].mxu0
    %v716 = vpop.f32.mrb[0].mxu0
    %717 = vdwg.mxu0
    %vm718 = vcmask 130048
    %v719 = vsel %vm718, %v673, -inf
    %720 = vmax.xlane.f32.xlu0 %v719
    %v721 = vpop.xlane.xlu0 %720
    %v722 = vsel %vm718, %v713, -inf
    %723 = vmax.xlane.f32.xlu0 %v722
    %v724 = vpop.xlane.xlu0 %723
    %v725 = vsub.f32 %v673, %v721
    %v726 = vsub.f32 %v713, %v724
    %v727 = vmul.f32 %v725, 1.442695
    %v728 = vpow.pop %v727
    %v729 = vmul.f32 %v726, 1.442695
    %v730 = vpow.pop %v729
    %v731 = vsel %vm718, %v728, 0.0
    %732 = vadd.xlane.f32.xlu0 %v731
    %v733 = vpop.xlane.xlu0 %732
    %v734 = vsel %vm718, %v730, 0.0
    %735 = vadd.xlane.f32.xlu0 %v734
    %v736 = vpop.xlane.xlu0 %735
    %v737 = vrcp.pop %v733
    %v738 = vrcp.pop %v736
    %v739 = vmul.f32 %v728, %v737
    %v740 = vmul.f32 %v730, %v738
    %v741 = vpack.c.bf16 %v739, %v739
    %v742 = vpack.c.bf16 %v740, %v740
    %v743 = vpack.c.bf16 %v610, %v607
    %v744 = vpack.c.bf16 %v618, %v615
    %v746 = vsel %vm718, %v741, 0
    %748 = vmatprep.subr.bf16.mxu0 0
    %749 = vmatpush1.bf16.msra.mxu0 %v743
    %750 = vmatprep.subr.bf16.mxu0 0
    %751 = vmatpush1.bf16.msra.mxu0 0
    %752 = vmatprep.subr.bf16.mxu0 0
    %753 = vmatpush1.bf16.msra.mxu0 0
    %754 = vmatprep.subr.bf16.mxu0 0
    %755 = vmatpush1.bf16.msra.mxu0 0
    %756 = vmatprep.subr.bf16.mxu0 0
    %757 = vmatpush1.bf16.msra.mxu0 0
    %758 = vmatprep.subr.bf16.mxu0 0
    %759 = vmatpush1.bf16.msra.mxu0 0
    %760 = vmatprep.subr.bf16.mxu0 0
    %761 = vmatpush1.bf16.msra.mxu0 0
    %762 = vmatprep.subr.bf16.mxu0 0
    %763 = vmatpush1.bf16.msra.mxu0 0
    %764 = vmatprep.subr.bf16.mxu0 0
    %765 = vmatpush1.bf16.msra.mxu0 0
    %766 = vmatprep.subr.bf16.mxu0 0
    %767 = vmatpush1.bf16.msra.mxu0 0
    %768 = vmatprep.subr.bf16.mxu0 0
    %769 = vmatpush1.bf16.msra.mxu0 0
    %770 = vmatprep.subr.bf16.mxu0 0
    %771 = vmatpush1.bf16.msra.mxu0 0
    %772 = vmatprep.subr.bf16.mxu0 0
    %773 = vmatpush1.bf16.msra.mxu0 0
    %774 = vmatprep.subr.bf16.mxu0 0
    %775 = vmatpush1.bf16.msra.mxu0 0
    %776 = vmatprep.subr.bf16.mxu0 0
    %777 = vmatpush1.bf16.msra.mxu0 0
    %778 = vmatprep.subr.bf16.mxu0 0
    %779 = vmatpush1.bf16.msra.mxu0 0
    %780 = vmatprep.mubr.bf16.mxu0 0
    %781 = vmatmul.mubr.bf16.gmra.mrb[0].mxu0 %v746
    %v782 = vpop.f32.mrb[0].mxu0
    %v783 = vadd.f32 0.0, %v782
    %v784 = vpop.f32.mrb[0].mxu0
    %v785 = vpop.f32.mrb[0].mxu0
    %v786 = vpop.f32.mrb[0].mxu0
    %787 = vdwg.mxu0
    %v789 = vsel %vm718, %v742, 0
    %791 = vmatprep.subr.bf16.mxu0 0
    %792 = vmatpush1.bf16.msra.mxu0 %v744
    %793 = vmatprep.subr.bf16.mxu0 0
    %794 = vmatpush1.bf16.msra.mxu0 0
    %795 = vmatprep.subr.bf16.mxu0 0
    %796 = vmatpush1.bf16.msra.mxu0 0
    %797 = vmatprep.subr.bf16.mxu0 0
    %798 = vmatpush1.bf16.msra.mxu0 0
    %799 = vmatprep.subr.bf16.mxu0 0
    %800 = vmatpush1.bf16.msra.mxu0 0
    %801 = vmatprep.subr.bf16.mxu0 0
    %802 = vmatpush1.bf16.msra.mxu0 0
    %803 = vmatprep.subr.bf16.mxu0 0
    %804 = vmatpush1.bf16.msra.mxu0 0
    %805 = vmatprep.subr.bf16.mxu0 0
    %806 = vmatpush1.bf16.msra.mxu0 0
    %807 = vmatprep.subr.bf16.mxu0 0
    %808 = vmatpush1.bf16.msra.mxu0 0
    %809 = vmatprep.subr.bf16.mxu0 0
    %810 = vmatpush1.bf16.msra.mxu0 0
    %811 = vmatprep.subr.bf16.mxu0 0
    %812 = vmatpush1.bf16.msra.mxu0 0
    %813 = vmatprep.subr.bf16.mxu0 0
    %814 = vmatpush1.bf16.msra.mxu0 0
    %815 = vmatprep.subr.bf16.mxu0 0
    %816 = vmatpush1.bf16.msra.mxu0 0
    %817 = vmatprep.subr.bf16.mxu0 0
    %818 = vmatpush1.bf16.msra.mxu0 0
    %819 = vmatprep.subr.bf16.mxu0 0
    %820 = vmatpush1.bf16.msra.mxu0 0
    %821 = vmatprep.subr.bf16.mxu0 0
    %822 = vmatpush1.bf16.msra.mxu0 0
    %823 = vmatprep.mubr.bf16.mxu0 0
    %824 = vmatmul.mubr.bf16.gmra.mrb[0].mxu0 %v789
    %v825 = vpop.f32.mrb[0].mxu0
    %v826 = vadd.f32 0.0, %v825
    %v827 = vpop.f32.mrb[0].mxu0
    %v828 = vpop.f32.mrb[0].mxu0
    %v829 = vpop.f32.mrb[0].mxu0
    %830 = vdwg.mxu0
    %v831 = vmul.f32 %v783, %v255
    %v832 = vmul.f32 %v826, %v256
    %v833 = vpack.c.bf16 %v832, %v831
    %v834 = vld [vmem:[#allocation13] sm:$0xf]
    %v835 = vld [vmem:[#allocation13 + $0x4] sm:$0xf]
    %v836 = vld [vmem:[#allocation13 + $0x8] sm:$0xf]
    %v837 = vld [vmem:[#allocation13 + $0xc] sm:$0xf]
    %v838 = vld [vmem:[#allocation13 + $0x10] sm:$0xf]
    %v839 = vld [vmem:[#allocation13 + $0x14] sm:$0xf]
    %v840 = vld [vmem:[#allocation13 + $0x18] sm:$0xf]
    %v841 = vld [vmem:[#allocation13 + $0x1c] sm:$0xf]
    %v842 = vld [vmem:[#allocation13 + $0x20] sm:$0xf]
    %v843 = vld [vmem:[#allocation13 + $0x24] sm:$0xf]
    %v844 = vld [vmem:[#allocation13 + $0x28] sm:$0xf]
    %v845 = vld [vmem:[#allocation13 + $0x2c] sm:$0xf]
    %v846 = vld [vmem:[#allocation13 + $0x30] sm:$0xf]
    %v847 = vld [vmem:[#allocation13 + $0x34] sm:$0xf]
    %v848 = vld [vmem:[#allocation13 + $0x38] sm:$0xf]
    %v849 = vld [vmem:[#allocation13 + $0x3c] sm:$0xf]
    %v850 = vld [vmem:[%s9] sm:$0x1]
    %v852 = vlaneseq
    %v853 = vshrl.u32 %v852, 7
    %v854 = vsub.s32 0, %v853
    %v855 = vrot.slane %v850, %v854
    %v873 = vunpack.c.l.b16 %v834
    %v874 = vunpack.c.l.b16 %v835
    %v875 = vunpack.c.l.b16 %v836
    %v876 = vunpack.c.l.b16 %v837
    %v877 = vunpack.c.l.b16 %v838
    %v878 = vunpack.c.l.b16 %v839
    %v879 = vunpack.c.l.b16 %v840
    %v880 = vunpack.c.l.b16 %v841
    %v881 = vunpack.c.l.b16 %v842
    %v882 = vunpack.c.l.b16 %v843
    %v883 = vunpack.c.l.b16 %v844
    %v884 = vunpack.c.l.b16 %v845
    %v885 = vunpack.c.l.b16 %v846
    %v886 = vunpack.c.l.b16 %v847
    %v887 = vunpack.c.l.b16 %v848
    %v888 = vunpack.c.l.b16 %v849
    %v889 = vpack.c.b16 %v874, %v873
    %v890 = vpack.c.b16 %v876, %v875
    %v891 = vpack.c.b16 %v878, %v877
    %v892 = vpack.c.b16 %v880, %v879
    %v893 = vpack.c.b16 %v882, %v881
    %v894 = vpack.c.b16 %v884, %v883
    %v895 = vpack.c.b16 %v886, %v885
    %v896 = vpack.c.b16 %v888, %v887
    %905 = vmatprep.subr.bf16.mxu0 0
    %906 = vmatpush1.bf16.msra.mxu0 %v889
    %907 = vmatprep.subr.bf16.mxu0 0
    %908 = vmatpush1.bf16.msra.mxu0 %v890
    %909 = vmatprep.subr.bf16.mxu0 0
    %910 = vmatpush1.bf16.msra.mxu0 %v891
    %911 = vmatprep.subr.bf16.mxu0 0
    %912 = vmatpush1.bf16.msra.mxu0 %v892
    %913 = vmatprep.subr.bf16.mxu0 0
    %914 = vmatpush1.bf16.msra.mxu0 %v893
    %915 = vmatprep.subr.bf16.mxu0 0
    %916 = vmatpush1.bf16.msra.mxu0 %v894
    %917 = vmatprep.subr.bf16.mxu0 0
    %918 = vmatpush1.bf16.msra.mxu0 %v895
    %919 = vmatprep.subr.bf16.mxu0 0
    %920 = vmatpush1.bf16.msra.mxu0 %v896
    %921 = vmatprep.subr.bf16.mxu0 0
    %922 = vmatpush1.bf16.msra.mxu0 0
    %923 = vmatprep.subr.bf16.mxu0 0
    %924 = vmatpush1.bf16.msra.mxu0 0
    %925 = vmatprep.subr.bf16.mxu0 0
    %926 = vmatpush1.bf16.msra.mxu0 0
    %927 = vmatprep.subr.bf16.mxu0 0
    %928 = vmatpush1.bf16.msra.mxu0 0
    %929 = vmatprep.subr.bf16.mxu0 0
    %930 = vmatpush1.bf16.msra.mxu0 0
    %931 = vmatprep.subr.bf16.mxu0 0
    %932 = vmatpush1.bf16.msra.mxu0 0
    %933 = vmatprep.subr.bf16.mxu0 0
    %934 = vmatpush1.bf16.msra.mxu0 0
    %935 = vmatprep.subr.bf16.mxu0 0
    %936 = vmatpush1.bf16.msra.mxu0 0
    %937 = vmatprep.mubr.bf16.mxu0 0
    %938 = vmatmul.mubr.bf16.gmra.mrb[0].mxu0 %v833
    %v939 = vpop.f32.mrb[0].mxu0
    %v940 = vadd.f32 %v855, %v939
    %v941 = vpop.f32.mrb[0].mxu0
    %v942 = vpop.f32.mrb[0].mxu0
    %v943 = vadd.f32 %v855, %v942
    %v944 = vpop.f32.mrb[0].mxu0
    %945 = vdwg.mxu0
    %v946 = vmax.f32 %v940, 0.0
    %v947 = vmax.f32 %v943, 0.0
    %v948 = vsub.f32 %v255, %v783
    %v949 = vsub.f32 %v256, %v826
    %v950 = vpack.c.bf16 %v949, %v948
    %v951 = vld [vmem:[#allocation14] sm:$0xf]
    %v952 = vld [vmem:[#allocation14 + $0x4] sm:$0xf]
    %v953 = vld [vmem:[#allocation14 + $0x8] sm:$0xf]
    %v954 = vld [vmem:[#allocation14 + $0xc] sm:$0xf]
    %v955 = vld [vmem:[#allocation14 + $0x10] sm:$0xf]
    %v956 = vld [vmem:[#allocation14 + $0x14] sm:$0xf]
    %v957 = vld [vmem:[#allocation14 + $0x18] sm:$0xf]
    %v958 = vld [vmem:[#allocation14 + $0x1c] sm:$0xf]
    %v959 = vld [vmem:[#allocation14 + $0x20] sm:$0xf]
    %v960 = vld [vmem:[#allocation14 + $0x24] sm:$0xf]
    %v961 = vld [vmem:[#allocation14 + $0x28] sm:$0xf]
    %v962 = vld [vmem:[#allocation14 + $0x2c] sm:$0xf]
    %v963 = vld [vmem:[#allocation14 + $0x30] sm:$0xf]
    %v964 = vld [vmem:[#allocation14 + $0x34] sm:$0xf]
    %v965 = vld [vmem:[#allocation14 + $0x38] sm:$0xf]
    %v966 = vld [vmem:[#allocation14 + $0x3c] sm:$0xf]
    %v967 = vld [vmem:[%s11] sm:$0x1]
    %v969 = vlaneseq
    %v970 = vshrl.u32 %v969, 7
    %v971 = vsub.s32 0, %v970
    %v972 = vrot.slane %v967, %v971
    %v990 = vunpack.c.l.b16 %v951
    %v991 = vunpack.c.l.b16 %v952
    %v992 = vunpack.c.l.b16 %v953
    %v993 = vunpack.c.l.b16 %v954
    %v994 = vunpack.c.l.b16 %v955
    %v995 = vunpack.c.l.b16 %v956
    %v996 = vunpack.c.l.b16 %v957
    %v997 = vunpack.c.l.b16 %v958
    %v998 = vunpack.c.l.b16 %v959
    %v999 = vunpack.c.l.b16 %v960
    %v1000 = vunpack.c.l.b16 %v961
    %v1001 = vunpack.c.l.b16 %v962
    %v1002 = vunpack.c.l.b16 %v963
    %v1003 = vunpack.c.l.b16 %v964
    %v1004 = vunpack.c.l.b16 %v965
    %v1005 = vunpack.c.l.b16 %v966
    %v1006 = vpack.c.b16 %v991, %v990
    %v1007 = vpack.c.b16 %v993, %v992
    %v1008 = vpack.c.b16 %v995, %v994
    %v1009 = vpack.c.b16 %v997, %v996
    %v1010 = vpack.c.b16 %v999, %v998
    %v1011 = vpack.c.b16 %v1001, %v1000
    %v1012 = vpack.c.b16 %v1003, %v1002
    %v1013 = vpack.c.b16 %v1005, %v1004
    %1022 = vmatprep.subr.bf16.mxu0 0
    %1023 = vmatpush1.bf16.msra.mxu0 %v1006
    %1024 = vmatprep.subr.bf16.mxu0 0
    %1025 = vmatpush1.bf16.msra.mxu0 %v1007
    %1026 = vmatprep.subr.bf16.mxu0 0
    %1027 = vmatpush1.bf16.msra.mxu0 %v1008
    %1028 = vmatprep.subr.bf16.mxu0 0
    %1029 = vmatpush1.bf16.msra.mxu0 %v1009
    %1030 = vmatprep.subr.bf16.mxu0 0
    %1031 = vmatpush1.bf16.msra.mxu0 %v1010
    %1032 = vmatprep.subr.bf16.mxu0 0
    %1033 = vmatpush1.bf16.msra.mxu0 %v1011
    %1034 = vmatprep.subr.bf16.mxu0 0
    %1035 = vmatpush1.bf16.msra.mxu0 %v1012
    %1036 = vmatprep.subr.bf16.mxu0 0
    %1037 = vmatpush1.bf16.msra.mxu0 %v1013
    %1038 = vmatprep.subr.bf16.mxu0 0
    %1039 = vmatpush1.bf16.msra.mxu0 0
    %1040 = vmatprep.subr.bf16.mxu0 0
    %1041 = vmatpush1.bf16.msra.mxu0 0
    %1042 = vmatprep.subr.bf16.mxu0 0
    %1043 = vmatpush1.bf16.msra.mxu0 0
    %1044 = vmatprep.subr.bf16.mxu0 0
    %1045 = vmatpush1.bf16.msra.mxu0 0
    %1046 = vmatprep.subr.bf16.mxu0 0
    %1047 = vmatpush1.bf16.msra.mxu0 0
    %1048 = vmatprep.subr.bf16.mxu0 0
    %1049 = vmatpush1.bf16.msra.mxu0 0
    %1050 = vmatprep.subr.bf16.mxu0 0
    %1051 = vmatpush1.bf16.msra.mxu0 0
    %1052 = vmatprep.subr.bf16.mxu0 0
    %1053 = vmatpush1.bf16.msra.mxu0 0
    %1054 = vmatprep.mubr.bf16.mxu0 0
    %1055 = vmatmul.mubr.bf16.gmra.mrb[0].mxu0 %v950
    %v1056 = vpop.f32.mrb[0].mxu0
    %v1057 = vadd.f32 %v972, %v1056
    %v1058 = vpop.f32.mrb[0].mxu0
    %v1059 = vpop.f32.mrb[0].mxu0
    %v1060 = vadd.f32 %v972, %v1059
    %v1061 = vpop.f32.mrb[0].mxu0
    %1062 = vdwg.mxu0
    %v1063 = vmax.f32 %v1057, 0.0
    %v1064 = vmax.f32 %v1060, 0.0
    %v1065 = vpack.c.bf16 %v947, %v946
    %v1066 = vld [vmem:[#allocation16] sm:$0xf]
    %v1067 = vld [vmem:[#allocation16 + $0x4] sm:$0xf]
    %v1068 = vld [vmem:[#allocation16 + $0x8] sm:$0xf]
    %v1069 = vld [vmem:[#allocation16 + $0xc] sm:$0xf]
    %v1070 = vld [vmem:[#allocation16 + $0x10] sm:$0xf]
    %v1071 = vld [vmem:[#allocation16 + $0x14] sm:$0xf]
    %v1072 = vld [vmem:[#allocation16 + $0x18] sm:$0xf]
    %v1073 = vld [vmem:[#allocation16 + $0x1c] sm:$0xf]
    %v1074 = vld [vmem:[#allocation16 + $0x20] sm:$0xf]
    %v1075 = vld [vmem:[#allocation16 + $0x24] sm:$0xf]
    %v1076 = vld [vmem:[#allocation16 + $0x28] sm:$0xf]
    %v1077 = vld [vmem:[#allocation16 + $0x2c] sm:$0xf]
    %v1078 = vld [vmem:[#allocation16 + $0x30] sm:$0xf]
    %v1079 = vld [vmem:[#allocation16 + $0x34] sm:$0xf]
    %v1080 = vld [vmem:[#allocation16 + $0x38] sm:$0xf]
    %v1081 = vld [vmem:[#allocation16 + $0x3c] sm:$0xf]
    %v1082 = vpack.c.bf16 %v1064, %v1063
    %v1083 = vld [vmem:[#allocation17] sm:$0xf]
    %v1084 = vld [vmem:[#allocation17 + $0x4] sm:$0xf]
    %v1085 = vld [vmem:[#allocation17 + $0x8] sm:$0xf]
    %v1086 = vld [vmem:[#allocation17 + $0xc] sm:$0xf]
    %v1087 = vld [vmem:[#allocation17 + $0x10] sm:$0xf]
    %v1088 = vld [vmem:[#allocation17 + $0x14] sm:$0xf]
    %v1089 = vld [vmem:[#allocation17 + $0x18] sm:$0xf]
    %v1090 = vld [vmem:[#allocation17 + $0x1c] sm:$0xf]
    %v1091 = vld [vmem:[#allocation17 + $0x20] sm:$0xf]
    %v1092 = vld [vmem:[#allocation17 + $0x24] sm:$0xf]
    %v1093 = vld [vmem:[#allocation17 + $0x28] sm:$0xf]
    %v1094 = vld [vmem:[#allocation17 + $0x2c] sm:$0xf]
    %v1095 = vld [vmem:[#allocation17 + $0x30] sm:$0xf]
    %v1096 = vld [vmem:[#allocation17 + $0x34] sm:$0xf]
    %v1097 = vld [vmem:[#allocation17 + $0x38] sm:$0xf]
    %v1098 = vld [vmem:[#allocation17 + $0x3c] sm:$0xf]
    %v1115 = vunpack.c.l.b16 %v1083
    %v1116 = vunpack.c.l.b16 %v1084
    %v1117 = vunpack.c.l.b16 %v1085
    %v1118 = vunpack.c.l.b16 %v1086
    %v1119 = vunpack.c.l.b16 %v1087
    %v1120 = vunpack.c.l.b16 %v1088
    %v1121 = vunpack.c.l.b16 %v1089
    %v1122 = vunpack.c.l.b16 %v1090
    %v1123 = vunpack.c.l.b16 %v1091
    %v1124 = vunpack.c.l.b16 %v1092
    %v1125 = vunpack.c.l.b16 %v1093
    %v1126 = vunpack.c.l.b16 %v1094
    %v1127 = vunpack.c.l.b16 %v1095
    %v1128 = vunpack.c.l.b16 %v1096
    %v1129 = vunpack.c.l.b16 %v1097
    %v1130 = vunpack.c.l.b16 %v1098
    %v1131 = vpack.c.b16 %v1116, %v1115
    %v1132 = vpack.c.b16 %v1118, %v1117
    %v1133 = vpack.c.b16 %v1120, %v1119
    %v1134 = vpack.c.b16 %v1122, %v1121
    %v1135 = vpack.c.b16 %v1124, %v1123
    %v1136 = vpack.c.b16 %v1126, %v1125
    %v1137 = vpack.c.b16 %v1128, %v1127
    %v1138 = vpack.c.b16 %v1130, %v1129
    %1147 = vmatprep.subr.bf16.mxu0 0
    %1148 = vmatpush1.bf16.msra.mxu0 %v1131
    %1149 = vmatprep.subr.bf16.mxu0 0
    %1150 = vmatpush1.bf16.msra.mxu0 %v1132
    %1151 = vmatprep.subr.bf16.mxu0 0
    %1152 = vmatpush1.bf16.msra.mxu0 %v1133
    %1153 = vmatprep.subr.bf16.mxu0 0
    %1154 = vmatpush1.bf16.msra.mxu0 %v1134
    %1155 = vmatprep.subr.bf16.mxu0 0
    %1156 = vmatpush1.bf16.msra.mxu0 %v1135
    %1157 = vmatprep.subr.bf16.mxu0 0
    %1158 = vmatpush1.bf16.msra.mxu0 %v1136
    %1159 = vmatprep.subr.bf16.mxu0 0
    %1160 = vmatpush1.bf16.msra.mxu0 %v1137
    %1161 = vmatprep.subr.bf16.mxu0 0
    %1162 = vmatpush1.bf16.msra.mxu0 %v1138
    %1163 = vmatprep.subr.bf16.mxu0 0
    %1164 = vmatpush1.bf16.msra.mxu0 0
    %1165 = vmatprep.subr.bf16.mxu0 0
    %1166 = vmatpush1.bf16.msra.mxu0 0
    %1167 = vmatprep.subr.bf16.mxu0 0
    %1168 = vmatpush1.bf16.msra.mxu0 0
    %1169 = vmatprep.subr.bf16.mxu0 0
    %1170 = vmatpush1.bf16.msra.mxu0 0
    %1171 = vmatprep.subr.bf16.mxu0 0
    %1172 = vmatpush1.bf16.msra.mxu0 0
    %1173 = vmatprep.subr.bf16.mxu0 0
    %1174 = vmatpush1.bf16.msra.mxu0 0
    %1175 = vmatprep.subr.bf16.mxu0 0
    %1176 = vmatpush1.bf16.msra.mxu0 0
    %1177 = vmatprep.subr.bf16.mxu0 0
    %1178 = vmatpush1.bf16.msra.mxu0 0
    %1179 = vmatprep.mubr.bf16.mxu0 0
    %1180 = vmatmul.mubr.bf16.gmra.mrb[0].mxu0 %v1082
    %v1181 = vpop.f32.mrb[0].mxu0
    %v1182 = vadd.f32 0.0, %v1181
    %v1183 = vpop.f32.mrb[0].mxu0
    %v1184 = vpop.f32.mrb[0].mxu0
    %v1185 = vadd.f32 0.0, %v1184
    %v1186 = vpop.f32.mrb[0].mxu0
    %1187 = vdwg.mxu0
    %v1204 = vunpack.c.l.b16 %v1066
    %v1205 = vunpack.c.l.b16 %v1067
    %v1206 = vunpack.c.l.b16 %v1068
    %v1207 = vunpack.c.l.b16 %v1069
    %v1208 = vunpack.c.l.b16 %v1070
    %v1209 = vunpack.c.l.b16 %v1071
    %v1210 = vunpack.c.l.b16 %v1072
    %v1211 = vunpack.c.l.b16 %v1073
    %v1212 = vunpack.c.l.b16 %v1074
    %v1213 = vunpack.c.l.b16 %v1075
    %v1214 = vunpack.c.l.b16 %v1076
    %v1215 = vunpack.c.l.b16 %v1077
    %v1216 = vunpack.c.l.b16 %v1078
    %v1217 = vunpack.c.l.b16 %v1079
    %v1218 = vunpack.c.l.b16 %v1080
    %v1219 = vunpack.c.l.b16 %v1081
    %v1220 = vpack.c.b16 %v1205, %v1204
    %v1221 = vpack.c.b16 %v1207, %v1206
    %v1222 = vpack.c.b16 %v1209, %v1208
    %v1223 = vpack.c.b16 %v1211, %v1210
    %v1224 = vpack.c.b16 %v1213, %v1212
    %v1225 = vpack.c.b16 %v1215, %v1214
    %v1226 = vpack.c.b16 %v1217, %v1216
    %v1227 = vpack.c.b16 %v1219, %v1218
    %1236 = vmatprep.subr.bf16.mxu0 0
    %1237 = vmatpush1.bf16.msra.mxu0 %v1220
    %1238 = vmatprep.subr.bf16.mxu0 0
    %1239 = vmatpush1.bf16.msra.mxu0 %v1221
    %1240 = vmatprep.subr.bf16.mxu0 0
    %1241 = vmatpush1.bf16.msra.mxu0 %v1222
    %1242 = vmatprep.subr.bf16.mxu0 0
    %1243 = vmatpush1.bf16.msra.mxu0 %v1223
    %1244 = vmatprep.subr.bf16.mxu0 0
    %1245 = vmatpush1.bf16.msra.mxu0 %v1224
    %1246 = vmatprep.subr.bf16.mxu0 0
    %1247 = vmatpush1.bf16.msra.mxu0 %v1225
    %1248 = vmatprep.subr.bf16.mxu0 0
    %1249 = vmatpush1.bf16.msra.mxu0 %v1226
    %1250 = vmatprep.subr.bf16.mxu0 0
    %1251 = vmatpush1.bf16.msra.mxu0 %v1227
    %1252 = vmatprep.subr.bf16.mxu0 0
    %1253 = vmatpush1.bf16.msra.mxu0 0
    %1254 = vmatprep.subr.bf16.mxu0 0
    %1255 = vmatpush1.bf16.msra.mxu0 0
    %1256 = vmatprep.subr.bf16.mxu0 0
    %1257 = vmatpush1.bf16.msra.mxu0 0
    %1258 = vmatprep.subr.bf16.mxu0 0
    %1259 = vmatpush1.bf16.msra.mxu0 0
    %1260 = vmatprep.subr.bf16.mxu0 0
    %1261 = vmatpush1.bf16.msra.mxu0 0
    %1262 = vmatprep.subr.bf16.mxu0 0
    %1263 = vmatpush1.bf16.msra.mxu0 0
    %1264 = vmatprep.subr.bf16.mxu0 0
    %1265 = vmatpush1.bf16.msra.mxu0 0
    %1266 = vmatprep.subr.bf16.mxu0 0
    %1267 = vmatpush1.bf16.msra.mxu0 0
    %1268 = vmatprep.mubr.bf16.mxu0 0
    %1269 = vmatmul.mubr.bf16.gmra.mrb[0].mxu0 %v1065
    %v1270 = vpop.f32.mrb[0].mxu0
    %v1271 = vadd.f32 %v1182, %v1270
    %v1272 = vpop.f32.mrb[0].mxu0
    %v1273 = vpop.f32.mrb[0].mxu0
    %v1274 = vadd.f32 %v1185, %v1273
    %v1275 = vpop.f32.mrb[0].mxu0
    %1276 = vdwg.mxu0
    %v1277 = vld [vmem:[#allocation19] sm:$0xf]
    %v1278 = vld [vmem:[#allocation19 + $0x4] sm:$0xf]
    %v1279 = vld [vmem:[#allocation19 + $0x8] sm:$0xf]
    %v1280 = vld [vmem:[#allocation19 + $0xc] sm:$0xf]
    %v1281 = vld [vmem:[#allocation19 + $0x10] sm:$0xf]
    %v1282 = vld [vmem:[#allocation19 + $0x14] sm:$0xf]
    %v1283 = vld [vmem:[#allocation19 + $0x18] sm:$0xf]
    %v1284 = vld [vmem:[#allocation19 + $0x1c] sm:$0xf]
    %v1285 = vld [vmem:[#allocation19 + $0x20] sm:$0xf]
    %v1286 = vld [vmem:[#allocation19 + $0x24] sm:$0xf]
    %v1287 = vld [vmem:[#allocation19 + $0x28] sm:$0xf]
    %v1288 = vld [vmem:[#allocation19 + $0x2c] sm:$0xf]
    %v1289 = vld [vmem:[#allocation19 + $0x30] sm:$0xf]
    %v1290 = vld [vmem:[#allocation19 + $0x34] sm:$0xf]
    %v1291 = vld [vmem:[#allocation19 + $0x38] sm:$0xf]
    %v1292 = vld [vmem:[#allocation19 + $0x3c] sm:$0xf]
    %v1309 = vunpack.c.l.b16 %v1277
    %v1310 = vunpack.c.l.b16 %v1278
    %v1311 = vunpack.c.l.b16 %v1279
    %v1312 = vunpack.c.l.b16 %v1280
    %v1313 = vunpack.c.l.b16 %v1281
    %v1314 = vunpack.c.l.b16 %v1282
    %v1315 = vunpack.c.l.b16 %v1283
    %v1316 = vunpack.c.l.b16 %v1284
    %v1317 = vunpack.c.l.b16 %v1285
    %v1318 = vunpack.c.l.b16 %v1286
    %v1319 = vunpack.c.l.b16 %v1287
    %v1320 = vunpack.c.l.b16 %v1288
    %v1321 = vunpack.c.l.b16 %v1289
    %v1322 = vunpack.c.l.b16 %v1290
    %v1323 = vunpack.c.l.b16 %v1291
    %v1324 = vunpack.c.l.b16 %v1292
    %v1325 = vpack.c.b16 %v1310, %v1309
    %v1326 = vpack.c.b16 %v1312, %v1311
    %v1327 = vpack.c.b16 %v1314, %v1313
    %v1328 = vpack.c.b16 %v1316, %v1315
    %v1329 = vpack.c.b16 %v1318, %v1317
    %v1330 = vpack.c.b16 %v1320, %v1319
    %v1331 = vpack.c.b16 %v1322, %v1321
    %v1332 = vpack.c.b16 %v1324, %v1323
    %1341 = vmatprep.subr.bf16.mxu0 0
    %1342 = vmatpush1.bf16.msra.mxu0 %v1325
    %1343 = vmatprep.subr.bf16.mxu0 0
    %1344 = vmatpush1.bf16.msra.mxu0 %v1326
    %1345 = vmatprep.subr.bf16.mxu0 0
    %1346 = vmatpush1.bf16.msra.mxu0 %v1327
    %1347 = vmatprep.subr.bf16.mxu0 0
    %1348 = vmatpush1.bf16.msra.mxu0 %v1328
    %1349 = vmatprep.subr.bf16.mxu0 0
    %1350 = vmatpush1.bf16.msra.mxu0 %v1329
    %1351 = vmatprep.subr.bf16.mxu0 0
    %1352 = vmatpush1.bf16.msra.mxu0 %v1330
    %1353 = vmatprep.subr.bf16.mxu0 0
    %1354 = vmatpush1.bf16.msra.mxu0 %v1331
    %1355 = vmatprep.subr.bf16.mxu0 0
    %1356 = vmatpush1.bf16.msra.mxu0 %v1332
    %1357 = vmatprep.subr.bf16.mxu0 0
    %1358 = vmatpush1.bf16.msra.mxu0 0
    %1359 = vmatprep.subr.bf16.mxu0 0
    %1360 = vmatpush1.bf16.msra.mxu0 0
    %1361 = vmatprep.subr.bf16.mxu0 0
    %1362 = vmatpush1.bf16.msra.mxu0 0
    %1363 = vmatprep.subr.bf16.mxu0 0
    %1364 = vmatpush1.bf16.msra.mxu0 0
    %1365 = vmatprep.subr.bf16.mxu0 0
    %1366 = vmatpush1.bf16.msra.mxu0 0
    %1367 = vmatprep.subr.bf16.mxu0 0
    %1368 = vmatpush1.bf16.msra.mxu0 0
    %1369 = vmatprep.subr.bf16.mxu0 0
    %1370 = vmatpush1.bf16.msra.mxu0 0
    %1371 = vmatprep.subr.bf16.mxu0 0
    %1372 = vmatpush1.bf16.msra.mxu0 0
    %1373 = vmatprep.mubr.bf16.mxu0 0
    %1374 = vmatmul.mubr.bf16.gmra.mrb[0].mxu0 %v257
    %v1375 = vpop.f32.mrb[0].mxu0
    %v1376 = vadd.f32 0.0, %v1375
    %v1377 = vpop.f32.mrb[0].mxu0
    %v1378 = vpop.f32.mrb[0].mxu0
    %v1379 = vadd.f32 0.0, %v1378
    %v1380 = vpop.f32.mrb[0].mxu0
    %1381 = vdwg.mxu0
    %v1382 = vadd.f32 %v1271, %v1376
    %v1383 = vadd.f32 %v1274, %v1379
    %v1384 = vld [vmem:[%s15] sm:$0x1]
    %v1386 = vlaneseq
    %v1387 = vshrl.u32 %v1386, 7
    %v1388 = vsub.s32 0, %v1387
    %v1389 = vrot.slane %v1384, %v1388
    %v1391 = vadd.f32 %v1382, %v1389
    %v1392 = vadd.f32 %v1383, %v1389
    %v1393 = vpack.c.bf16 %v1392, %v1391
    %v1394 = vld [vmem:[#allocation20] sm:$0xff]
    %v1395 = vld [vmem:[#allocation20 + $0x8] sm:$0xff]
    %v1396 = vld [vmem:[#allocation20 + $0x10] sm:$0xff]
    %v1397 = vld [vmem:[#allocation20 + $0x18] sm:$0xff]
    %v1398 = vld [vmem:[#allocation20 + $0x20] sm:$0xff]
    %v1399 = vld [vmem:[#allocation20 + $0x28] sm:$0xff]
    %v1400 = vld [vmem:[#allocation20 + $0x30] sm:$0xff]
    %v1401 = vld [vmem:[#allocation20 + $0x38] sm:$0xff]
    %v1402 = vld [vmem:[#allocation20 + $0x40] sm:$0xff]
    %v1403 = vld [vmem:[#allocation20 + $0x48] sm:$0xff]
    %v1404 = vld [vmem:[#allocation20 + $0x50] sm:$0xff]
    %v1405 = vld [vmem:[#allocation20 + $0x58] sm:$0xff]
    %v1406 = vld [vmem:[#allocation20 + $0x60] sm:$0xff]
    %v1407 = vld [vmem:[#allocation20 + $0x68] sm:$0xff]
    %v1408 = vld [vmem:[#allocation20 + $0x70] sm:$0xff]
    %v1409 = vld [vmem:[#allocation20 + $0x78] sm:$0xff]
    %v1410 = vld [vmem:[#allocation20 + $0x80] sm:$0xff]
    %v1411 = vld [vmem:[#allocation20 + $0x88] sm:$0xff]
    %v1412 = vld [vmem:[#allocation20 + $0x90] sm:$0xff]
    %v1413 = vld [vmem:[#allocation20 + $0x98] sm:$0xff]
    %v1414 = vld [vmem:[#allocation20 + $0xa0] sm:$0xff]
    %v1415 = vld [vmem:[#allocation20 + $0xa8] sm:$0xff]
    %v1416 = vld [vmem:[#allocation20 + $0xb0] sm:$0xff]
    %v1417 = vld [vmem:[#allocation20 + $0xb8] sm:$0xff]
    %v1418 = vld [vmem:[#allocation20 + $0xc0] sm:$0xff]
    %v1419 = vld [vmem:[#allocation20 + $0xc8] sm:$0xff]
    %v1420 = vld [vmem:[#allocation20 + $0xd0] sm:$0xff]
    %v1421 = vld [vmem:[#allocation20 + $0xd8] sm:$0xff]
    %v1422 = vld [vmem:[#allocation20 + $0xe0] sm:$0xff]
    %v1423 = vld [vmem:[#allocation20 + $0xe8] sm:$0xff]
    %v1424 = vld [vmem:[#allocation20 + $0xf0] sm:$0xff]
    %v1425 = vld [vmem:[#allocation20 + $0xf8] sm:$0xff]
    %v1426 = vld [vmem:[#allocation20 + $0x100] sm:$0xff]
    %v1427 = vld [vmem:[#allocation20 + $0x108] sm:$0xff]
    %v1428 = vld [vmem:[#allocation20 + $0x110] sm:$0xff]
    %v1429 = vld [vmem:[#allocation20 + $0x118] sm:$0xff]
    %v1430 = vld [vmem:[#allocation20 + $0x120] sm:$0xff]
    %v1431 = vld [vmem:[#allocation20 + $0x128] sm:$0xff]
    %v1432 = vld [vmem:[#allocation20 + $0x130] sm:$0xff]
    %v1433 = vld [vmem:[#allocation20 + $0x138] sm:$0xff]
    %v1434 = vld [vmem:[#allocation20 + $0x140] sm:$0xff]
    %v1435 = vld [vmem:[#allocation20 + $0x148] sm:$0xff]
    %v1436 = vld [vmem:[#allocation20 + $0x150] sm:$0xff]
    %v1437 = vld [vmem:[#allocation20 + $0x158] sm:$0xff]
    %v1438 = vld [vmem:[#allocation20 + $0x160] sm:$0xff]
    %v1439 = vld [vmem:[#allocation20 + $0x168] sm:$0xff]
    %v1440 = vld [vmem:[#allocation20 + $0x170] sm:$0xff]
    %v1441 = vld [vmem:[#allocation20 + $0x178] sm:$0xff]
    %v1442 = vld [vmem:[#allocation20 + $0x180] sm:$0xff]
    %v1443 = vld [vmem:[#allocation20 + $0x188] sm:$0xff]
    %v1444 = vld [vmem:[#allocation20 + $0x190] sm:$0xff]
    %v1445 = vld [vmem:[#allocation20 + $0x198] sm:$0xff]
    %v1446 = vld [vmem:[#allocation20 + $0x1a0] sm:$0xff]
    %v1447 = vld [vmem:[#allocation20 + $0x1a8] sm:$0xff]
    %v1448 = vld [vmem:[#allocation20 + $0x1b0] sm:$0xff]
    %v1449 = vld [vmem:[#allocation20 + $0x1b8] sm:$0xff]
    %v1450 = vld [vmem:[#allocation20 + $0x1c0] sm:$0xff]
    %v1451 = vld [vmem:[#allocation20 + $0x1c8] sm:$0xff]
    %v1452 = vld [vmem:[#allocation20 + $0x1d0] sm:$0xff]
    %v1453 = vld [vmem:[#allocation20 + $0x1d8] sm:$0xff]
    %v1454 = vld [vmem:[#allocation20 + $0x1e0] sm:$0xff]
    %v1455 = vld [vmem:[#allocation20 + $0x1e8] sm:$0xff]
    %v1456 = vld [vmem:[#allocation20 + $0x1f0] sm:$0xff]
    %v1457 = vld [vmem:[#allocation20 + $0x1f8] sm:$0xff]
    %v1458 = vld [vmem:[%s17] sm:$0xff]
    %v1460 = vlaneseq
    %v1461 = vshrl.u32 %v1460, 7
    %v1462 = vsub.s32 0, %v1461
    %v1463 = vrot.slane %v1458, %v1462
    %v1464 = vlaneseq
    %v1465 = vshrl.u32 %v1464, 7
    %v1466 = vsub.s32 1, %v1465
    %v1467 = vrot.slane %v1458, %v1466
    %v1468 = vlaneseq
    %v1469 = vshrl.u32 %v1468, 7
    %v1470 = vsub.s32 2, %v1469
    %v1471 = vrot.slane %v1458, %v1470
    %v1472 = vlaneseq
    %v1473 = vshrl.u32 %v1472, 7
    %v1474 = vsub.s32 3, %v1473
    %v1475 = vrot.slane %v1458, %v1474
    %v1476 = vlaneseq
    %v1477 = vshrl.u32 %v1476, 7
    %v1478 = vsub.s32 4, %v1477
    %v1479 = vrot.slane %v1458, %v1478
    %v1480 = vlaneseq
    %v1481 = vshrl.u32 %v1480, 7
    %v1482 = vsub.s32 5, %v1481
    %v1483 = vrot.slane %v1458, %v1482
    %v1484 = vlaneseq
    %v1485 = vshrl.u32 %v1484, 7
    %v1486 = vsub.s32 6, %v1485
    %v1487 = vrot.slane %v1458, %v1486
    %v1488 = vlaneseq
    %v1489 = vshrl.u32 %v1488, 7
    %v1490 = vsub.s32 7, %v1489
    %v1491 = vrot.slane %v1458, %v1490
    %v1564 = vunpack.c.l.b16 %v1394
    %v1565 = vunpack.c.h.b16 %v1394
    %v1566 = vunpack.c.l.b16 %v1395
    %v1567 = vunpack.c.h.b16 %v1395
    %v1568 = vunpack.c.l.b16 %v1396
    %v1569 = vunpack.c.h.b16 %v1396
    %v1570 = vunpack.c.l.b16 %v1397
    %v1571 = vunpack.c.h.b16 %v1397
    %v1572 = vunpack.c.l.b16 %v1398
    %v1573 = vunpack.c.h.b16 %v1398
    %v1574 = vunpack.c.l.b16 %v1399
    %v1575 = vunpack.c.h.b16 %v1399
    %v1576 = vunpack.c.l.b16 %v1400
    %v1577 = vunpack.c.h.b16 %v1400
    %v1578 = vunpack.c.l.b16 %v1401
    %v1579 = vunpack.c.h.b16 %v1401
    %v1580 = vunpack.c.l.b16 %v1402
    %v1581 = vunpack.c.h.b16 %v1402
    %v1582 = vunpack.c.l.b16 %v1403
    %v1583 = vunpack.c.h.b16 %v1403
    %v1584 = vunpack.c.l.b16 %v1404
    %v1585 = vunpack.c.h.b16 %v1404
    %v1586 = vunpack.c.l.b16 %v1405
    %v1587 = vunpack.c.h.b16 %v1405
    %v1588 = vunpack.c.l.b16 %v1406
    %v1589 = vunpack.c.h.b16 %v1406
    %v1590 = vunpack.c.l.b16 %v1407
    %v1591 = vunpack.c.h.b16 %v1407
    %v1592 = vunpack.c.l.b16 %v1408
    %v1593 = vunpack.c.h.b16 %v1408
    %v1594 = vunpack.c.l.b16 %v1409
    %v1595 = vunpack.c.h.b16 %v1409
    %v1596 = vunpack.c.l.b16 %v1410
    %v1597 = vunpack.c.h.b16 %v1410
    %v1598 = vunpack.c.l.b16 %v1411
    %v1599 = vunpack.c.h.b16 %v1411
    %v1600 = vunpack.c.l.b16 %v1412
    %v1601 = vunpack.c.h.b16 %v1412
    %v1602 = vunpack.c.l.b16 %v1413
    %v1603 = vunpack.c.h.b16 %v1413
    %v1604 = vunpack.c.l.b16 %v1414
    %v1605 = vunpack.c.h.b16 %v1414
    %v1606 = vunpack.c.l.b16 %v1415
    %v1607 = vunpack.c.h.b16 %v1415
    %v1608 = vunpack.c.l.b16 %v1416
    %v1609 = vunpack.c.h.b16 %v1416
    %v1610 = vunpack.c.l.b16 %v1417
    %v1611 = vunpack.c.h.b16 %v1417
    %v1612 = vunpack.c.l.b16 %v1418
    %v1613 = vunpack.c.h.b16 %v1418
    %v1614 = vunpack.c.l.b16 %v1419
    %v1615 = vunpack.c.h.b16 %v1419
    %v1616 = vunpack.c.l.b16 %v1420
    %v1617 = vunpack.c.h.b16 %v1420
    %v1618 = vunpack.c.l.b16 %v1421
    %v1619 = vunpack.c.h.b16 %v1421
    %v1620 = vunpack.c.l.b16 %v1422
    %v1621 = vunpack.c.h.b16 %v1422
    %v1622 = vunpack.c.l.b16 %v1423
    %v1623 = vunpack.c.h.b16 %v1423
    %v1624 = vunpack.c.l.b16 %v1424
    %v1625 = vunpack.c.h.b16 %v1424
    %v1626 = vunpack.c.l.b16 %v1425
    %v1627 = vunpack.c.h.b16 %v1425
    %v1628 = vunpack.c.l.b16 %v1426
    %v1629 = vunpack.c.h.b16 %v1426
    %v1630 = vunpack.c.l.b16 %v1427
    %v1631 = vunpack.c.h.b16 %v1427
    %v1632 = vunpack.c.l.b16 %v1428
    %v1633 = vunpack.c.h.b16 %v1428
    %v1634 = vunpack.c.l.b16 %v1429
    %v1635 = vunpack.c.h.b16 %v1429
    %v1636 = vunpack.c.l.b16 %v1430
    %v1637 = vunpack.c.h.b16 %v1430
    %v1638 = vunpack.c.l.b16 %v1431
    %v1639 = vunpack.c.h.b16 %v1431
    %v1640 = vunpack.c.l.b16 %v1432
    %v1641 = vunpack.c.h.b16 %v1432
    %v1642 = vunpack.c.l.b16 %v1433
    %v1643 = vunpack.c.h.b16 %v1433
    %v1644 = vunpack.c.l.b16 %v1434
    %v1645 = vunpack.c.h.b16 %v1434
    %v1646 = vunpack.c.l.b16 %v1435
    %v1647 = vunpack.c.h.b16 %v1435
    %v1648 = vunpack.c.l.b16 %v1436
    %v1649 = vunpack.c.h.b16 %v1436
    %v1650 = vunpack.c.l.b16 %v1437
    %v1651 = vunpack.c.h.b16 %v1437
    %v1652 = vunpack.c.l.b16 %v1438
    %v1653 = vunpack.c.h.b16 %v1438
    %v1654 = vunpack.c.l.b16 %v1439
    %v1655 = vunpack.c.h.b16 %v1439
    %v1656 = vunpack.c.l.b16 %v1440
    %v1657 = vunpack.c.h.b16 %v1440
    %v1658 = vunpack.c.l.b16 %v1441
    %v1659 = vunpack.c.h.b16 %v1441
    %v1660 = vunpack.c.l.b16 %v1442
    %v1661 = vunpack.c.h.b16 %v1442
    %v1662 = vunpack.c.l.b16 %v1443
    %v1663 = vunpack.c.h.b16 %v1443
    %v1664 = vunpack.c.l.b16 %v1444
    %v1665 = vunpack.c.h.b16 %v1444
    %v1666 = vunpack.c.l.b16 %v1445
    %v1667 = vunpack.c.h.b16 %v1445
    %v1668 = vunpack.c.l.b16 %v1446
    %v1669 = vunpack.c.h.b16 %v1446
    %v1670 = vunpack.c.l.b16 %v1447
    %v1671 = vunpack.c.h.b16 %v1447
    %v1672 = vunpack.c.l.b16 %v1448
    %v1673 = vunpack.c.h.b16 %v1448
    %v1674 = vunpack.c.l.b16 %v1449
    %v1675 = vunpack.c.h.b16 %v1449
    %v1676 = vunpack.c.l.b16 %v1450
    %v1677 = vunpack.c.h.b16 %v1450
    %v1678 = vunpack.c.l.b16 %v1451
    %v1679 = vunpack.c.h.b16 %v1451
    %v1680 = vunpack.c.l.b16 %v1452
    %v1681 = vunpack.c.h.b16 %v1452
    %v1682 = vunpack.c.l.b16 %v1453
    %v1683 = vunpack.c.h.b16 %v1453
    %v1684 = vunpack.c.l.b16 %v1454
    %v1685 = vunpack.c.h.b16 %v1454
    %v1686 = vunpack.c.l.b16 %v1455
    %v1687 = vunpack.c.h.b16 %v1455
    %v1688 = vunpack.c.l.b16 %v1456
    %v1689 = vunpack.c.h.b16 %v1456
    %v1690 = vunpack.c.l.b16 %v1457
    %v1691 = vunpack.c.h.b16 %v1457
    %v1692 = vpack.c.b16 %v1572, %v1564
    %v1693 = vpack.c.b16 %v1573, %v1565
    %v1694 = vpack.c.b16 %v1574, %v1566
    %v1695 = vpack.c.b16 %v1575, %v1567
    %v1696 = vpack.c.b16 %v1576, %v1568
    %v1697 = vpack.c.b16 %v1577, %v1569
    %v1698 = vpack.c.b16 %v1578, %v1570
    %v1699 = vpack.c.b16 %v1579, %v1571
    %v1700 = vpack.c.b16 %v1588, %v1580
    %v1701 = vpack.c.b16 %v1589, %v1581
    %v1702 = vpack.c.b16 %v1590, %v1582
    %v1703 = vpack.c.b16 %v1591, %v1583
    %v1704 = vpack.c.b16 %v1592, %v1584
    %v1705 = vpack.c.b16 %v1593, %v1585
    %v1706 = vpack.c.b16 %v1594, %v1586
    %v1707 = vpack.c.b16 %v1595, %v1587
    %v1708 = vpack.c.b16 %v1604, %v1596
    %v1709 = vpack.c.b16 %v1605, %v1597
    %v1710 = vpack.c.b16 %v1606, %v1598
    %v1711 = vpack.c.b16 %v1607, %v1599
    %v1712 = vpack.c.b16 %v1608, %v1600
    %v1713 = vpack.c.b16 %v1609, %v1601
    %v1714 = vpack.c.b16 %v1610, %v1602
    %v1715 = vpack.c.b16 %v1611, %v1603
    %v1716 = vpack.c.b16 %v1620, %v1612
    %v1717 = vpack.c.b16 %v1621, %v1613
    %v1718 = vpack.c.b16 %v1622, %v1614
    %v1719 = vpack.c.b16 %v1623, %v1615
    %v1720 = vpack.c.b16 %v1624, %v1616
    %v1721 = vpack.c.b16 %v1625, %v1617
    %v1722 = vpack.c.b16 %v1626, %v1618
    %v1723 = vpack.c.b16 %v1627, %v1619
    %v1724 = vpack.c.b16 %v1636, %v1628
    %v1725 = vpack.c.b16 %v1637, %v1629
    %v1726 = vpack.c.b16 %v1638, %v1630
    %v1727 = vpack.c.b16 %v1639, %v1631
    %v1728 = vpack.c.b16 %v1640, %v1632
    %v1729 = vpack.c.b16 %v1641, %v1633
    %v1730 = vpack.c.b16 %v1642, %v1634
    %v1731 = vpack.c.b16 %v1643, %v1635
    %v1732 = vpack.c.b16 %v1652, %v1644
    %v1733 = vpack.c.b16 %v1653, %v1645
    %v1734 = vpack.c.b16 %v1654, %v1646
    %v1735 = vpack.c.b16 %v1655, %v1647
    %v1736 = vpack.c.b16 %v1656, %v1648
    %v1737 = vpack.c.b16 %v1657, %v1649
    %v1738 = vpack.c.b16 %v1658, %v1650
    %v1739 = vpack.c.b16 %v1659, %v1651
    %v1740 = vpack.c.b16 %v1668, %v1660
    %v1741 = vpack.c.b16 %v1669, %v1661
    %v1742 = vpack.c.b16 %v1670, %v1662
    %v1743 = vpack.c.b16 %v1671, %v1663
    %v1744 = vpack.c.b16 %v1672, %v1664
    %v1745 = vpack.c.b16 %v1673, %v1665
    %v1746 = vpack.c.b16 %v1674, %v1666
    %v1747 = vpack.c.b16 %v1675, %v1667
    %v1748 = vpack.c.b16 %v1684, %v1676
    %v1749 = vpack.c.b16 %v1685, %v1677
    %v1750 = vpack.c.b16 %v1686, %v1678
    %v1751 = vpack.c.b16 %v1687, %v1679
    %v1752 = vpack.c.b16 %v1688, %v1680
    %v1753 = vpack.c.b16 %v1689, %v1681
    %v1754 = vpack.c.b16 %v1690, %v1682
    %v1755 = vpack.c.b16 %v1691, %v1683
    %1820 = vmatprep.subr.bf16.mxu0 %v1693
    %1821 = vmatpush1.bf16.msra.mxu0 %v1692
    %1822 = vmatprep.subr.bf16.mxu0 %v1701
    %1823 = vmatpush1.bf16.msra.mxu0 %v1700
    %1824 = vmatprep.subr.bf16.mxu0 %v1709
    %1825 = vmatpush1.bf16.msra.mxu0 %v1708
    %1826 = vmatprep.subr.bf16.mxu0 %v1717
    %1827 = vmatpush1.bf16.msra.mxu0 %v1716
    %1828 = vmatprep.subr.bf16.mxu0 %v1725
    %1829 = vmatpush1.bf16.msra.mxu0 %v1724
    %1830 = vmatprep.subr.bf16.mxu0 %v1733
    %1831 = vmatpush1.bf16.msra.mxu0 %v1732
    %1832 = vmatprep.subr.bf16.mxu0 %v1741
    %1833 = vmatpush1.bf16.msra.mxu0 %v1740
    %1834 = vmatprep.subr.bf16.mxu0 %v1749
    %1835 = vmatpush1.bf16.msra.mxu0 %v1748
    %1836 = vmatprep.subr.bf16.mxu0 0
    %1837 = vmatpush1.bf16.msra.mxu0 0
    %1838 = vmatprep.subr.bf16.mxu0 0
    %1839 = vmatpush1.bf16.msra.mxu0 0
    %1840 = vmatprep.subr.bf16.mxu0 0
    %1841 = vmatpush1.bf16.msra.mxu0 0
    %1842 = vmatprep.subr.bf16.mxu0 0
    %1843 = vmatpush1.bf16.msra.mxu0 0
    %1844 = vmatprep.subr.bf16.mxu0 0
    %1845 = vmatpush1.bf16.msra.mxu0 0
    %1846 = vmatprep.subr.bf16.mxu0 0
    %1847 = vmatpush1.bf16.msra.mxu0 0
    %1848 = vmatprep.subr.bf16.mxu0 0
    %1849 = vmatpush1.bf16.msra.mxu0 0
    %1850 = vmatprep.subr.bf16.mxu0 0
    %1851 = vmatpush1.bf16.msra.mxu0 0
    %1852 = vmatprep.mubr.bf16.mxu0 0
    %1853 = vmatmul.mubr.bf16.gmra.mrb[0].mxu0 %v1393
    %v1854 = vpop.f32.mrb[0].mxu0
    %v1855 = vadd.f32 %v1463, %v1854
    %v1856 = vpop.f32.mrb[0].mxu0
    %v1857 = vadd.f32 %v1467, %v1856
    %v1858 = vpop.f32.mrb[0].mxu0
    %v1859 = vadd.f32 %v1463, %v1858
    %v1860 = vpop.f32.mrb[0].mxu0
    %v1861 = vadd.f32 %v1467, %v1860
    %1862 = vdwg.mxu0
    %1863 = vmatprep.subr.bf16.mxu0 %v1695
    %1864 = vmatpush1.bf16.msra.mxu0 %v1694
    %1865 = vmatprep.subr.bf16.mxu0 %v1703
    %1866 = vmatpush1.bf16.msra.mxu0 %v1702
    %1867 = vmatprep.subr.bf16.mxu0 %v1711
    %1868 = vmatpush1.bf16.msra.mxu0 %v1710
    %1869 = vmatprep.subr.bf16.mxu0 %v1719
    %1870 = vmatpush1.bf16.msra.mxu0 %v1718
    %1871 = vmatprep.subr.bf16.mxu0 %v1727
    %1872 = vmatpush1.bf16.msra.mxu0 %v1726
    %1873 = vmatprep.subr.bf16.mxu0 %v1735
    %1874 = vmatpush1.bf16.msra.mxu0 %v1734
    %1875 = vmatprep.subr.bf16.mxu0 %v1743
    %1876 = vmatpush1.bf16.msra.mxu0 %v1742
    %1877 = vmatprep.subr.bf16.mxu0 %v1751
    %1878 = vmatpush1.bf16.msra.mxu0 %v1750
    %1879 = vmatprep.subr.bf16.mxu0 0
    %1880 = vmatpush1.bf16.msra.mxu0 0
    %1881 = vmatprep.subr.bf16.mxu0 0
    %1882 = vmatpush1.bf16.msra.mxu0 0
    %1883 = vmatprep.subr.bf16.mxu0 0
    %1884 = vmatpush1.bf16.msra.mxu0 0
    %1885 = vmatprep.subr.bf16.mxu0 0
    %1886 = vmatpush1.bf16.msra.mxu0 0
    %1887 = vmatprep.subr.bf16.mxu0 0
    %1888 = vmatpush1.bf16.msra.mxu0 0
    %1889 = vmatprep.subr.bf16.mxu0 0
    %1890 = vmatpush1.bf16.msra.mxu0 0
    %1891 = vmatprep.subr.bf16.mxu0 0
    %1892 = vmatpush1.bf16.msra.mxu0 0
    %1893 = vmatprep.subr.bf16.mxu0 0
    %1894 = vmatpush1.bf16.msra.mxu0 0
    %1895 = vmatprep.mubr.bf16.mxu0 0
    %1896 = vmatmul.mubr.bf16.gmra.mrb[0].mxu0 %v1393
    %v1897 = vpop.f32.mrb[0].mxu0
    %v1898 = vadd.f32 %v1471, %v1897
    %v1899 = vpop.f32.mrb[0].mxu0
    %v1900 = vadd.f32 %v1475, %v1899
    %v1901 = vpop.f32.mrb[0].mxu0
    %v1902 = vadd.f32 %v1471, %v1901
    %v1903 = vpop.f32.mrb[0].mxu0
    %v1904 = vadd.f32 %v1475, %v1903
    %1905 = vdwg.mxu0
    %1906 = vmatprep.subr.bf16.mxu0 %v1697
    %1907 = vmatpush1.bf16.msra.mxu0 %v1696
    %1908 = vmatprep.subr.bf16.mxu0 %v1705
    %1909 = vmatpush1.bf16.msra.mxu0 %v1704
    %1910 = vmatprep.subr.bf16.mxu0 %v1713
    %1911 = vmatpush1.bf16.msra.mxu0 %v1712
    %1912 = vmatprep.subr.bf16.mxu0 %v1721
    %1913 = vmatpush1.bf16.msra.mxu0 %v1720
    %1914 = vmatprep.subr.bf16.mxu0 %v1729
    %1915 = vmatpush1.bf16.msra.mxu0 %v1728
    %1916 = vmatprep.subr.bf16.mxu0 %v1737
    %1917 = vmatpush1.bf16.msra.mxu0 %v1736
    %1918 = vmatprep.subr.bf16.mxu0 %v1745
    %1919 = vmatpush1.bf16.msra.mxu0 %v1744
    %1920 = vmatprep.subr.bf16.mxu0 %v1753
    %1921 = vmatpush1.bf16.msra.mxu0 %v1752
    %1922 = vmatprep.subr.bf16.mxu0 0
    %1923 = vmatpush1.bf16.msra.mxu0 0
    %1924 = vmatprep.subr.bf16.mxu0 0
    %1925 = vmatpush1.bf16.msra.mxu0 0
    %1926 = vmatprep.subr.bf16.mxu0 0
    %1927 = vmatpush1.bf16.msra.mxu0 0
    %1928 = vmatprep.subr.bf16.mxu0 0
    %1929 = vmatpush1.bf16.msra.mxu0 0
    %1930 = vmatprep.subr.bf16.mxu0 0
    %1931 = vmatpush1.bf16.msra.mxu0 0
    %1932 = vmatprep.subr.bf16.mxu0 0
    %1933 = vmatpush1.bf16.msra.mxu0 0
    %1934 = vmatprep.subr.bf16.mxu0 0
    %1935 = vmatpush1.bf16.msra.mxu0 0
    %1936 = vmatprep.subr.bf16.mxu0 0
    %1937 = vmatpush1.bf16.msra.mxu0 0
    %1938 = vmatprep.mubr.bf16.mxu0 0
    %1939 = vmatmul.mubr.bf16.gmra.mrb[0].mxu0 %v1393
    %v1940 = vpop.f32.mrb[0].mxu0
    %v1941 = vadd.f32 %v1479, %v1940
    %v1942 = vpop.f32.mrb[0].mxu0
    %v1943 = vadd.f32 %v1483, %v1942
    %v1944 = vpop.f32.mrb[0].mxu0
    %v1945 = vadd.f32 %v1479, %v1944
    %v1946 = vpop.f32.mrb[0].mxu0
    %v1947 = vadd.f32 %v1483, %v1946
    %1948 = vdwg.mxu0
    %1949 = vmatprep.subr.bf16.mxu0 %v1699
    %1950 = vmatpush1.bf16.msra.mxu0 %v1698
    %1951 = vmatprep.subr.bf16.mxu0 %v1707
    %1952 = vmatpush1.bf16.msra.mxu0 %v1706
    %1953 = vmatprep.subr.bf16.mxu0 %v1715
    %1954 = vmatpush1.bf16.msra.mxu0 %v1714
    %1955 = vmatprep.subr.bf16.mxu0 %v1723
    %1956 = vmatpush1.bf16.msra.mxu0 %v1722
    %1957 = vmatprep.subr.bf16.mxu0 %v1731
    %1958 = vmatpush1.bf16.msra.mxu0 %v1730
    %1959 = vmatprep.subr.bf16.mxu0 %v1739
    %1960 = vmatpush1.bf16.msra.mxu0 %v1738
    %1961 = vmatprep.subr.bf16.mxu0 %v1747
    %1962 = vmatpush1.bf16.msra.mxu0 %v1746
    %1963 = vmatprep.subr.bf16.mxu0 %v1755
    %1964 = vmatpush1.bf16.msra.mxu0 %v1754
    %1965 = vmatprep.subr.bf16.mxu0 0
    %1966 = vmatpush1.bf16.msra.mxu0 0
    %1967 = vmatprep.subr.bf16.mxu0 0
    %1968 = vmatpush1.bf16.msra.mxu0 0
    %1969 = vmatprep.subr.bf16.mxu0 0
    %1970 = vmatpush1.bf16.msra.mxu0 0
    %1971 = vmatprep.subr.bf16.mxu0 0
    %1972 = vmatpush1.bf16.msra.mxu0 0
    %1973 = vmatprep.subr.bf16.mxu0 0
    %1974 = vmatpush1.bf16.msra.mxu0 0
    %1975 = vmatprep.subr.bf16.mxu0 0
    %1976 = vmatpush1.bf16.msra.mxu0 0
    %1977 = vmatprep.subr.bf16.mxu0 0
    %1978 = vmatpush1.bf16.msra.mxu0 0
    %1979 = vmatprep.subr.bf16.mxu0 0
    %1980 = vmatpush1.bf16.msra.mxu0 0
    %1981 = vmatprep.mubr.bf16.mxu0 0
    %1982 = vmatmul.mubr.bf16.gmra.mrb[0].mxu0 %v1393
    %v1983 = vpop.f32.mrb[0].mxu0
    %v1984 = vadd.f32 %v1487, %v1983
    %v1985 = vpop.f32.mrb[0].mxu0
    %v1986 = vadd.f32 %v1491, %v1985
    %v1987 = vpop.f32.mrb[0].mxu0
    %v1988 = vadd.f32 %v1487, %v1987
    %v1989 = vpop.f32.mrb[0].mxu0
    %v1990 = vadd.f32 %v1491, %v1989
    %1991 = vdwg.mxu0
    %v1992 = vmax.f32 %v1855, 0.0
    %v1993 = vmax.f32 %v1857, 0.0
    %v1994 = vmax.f32 %v1898, 0.0
    %v1995 = vmax.f32 %v1900, 0.0
    %v1996 = vmax.f32 %v1941, 0.0
    %v1997 = vmax.f32 %v1943, 0.0
    %v1998 = vmax.f32 %v1984, 0.0
    %v1999 = vmax.f32 %v1986, 0.0
    %v2000 = vmax.f32 %v1859, 0.0
    %v2001 = vmax.f32 %v1861, 0.0
    %v2002 = vmax.f32 %v1902, 0.0
    %v2003 = vmax.f32 %v1904, 0.0
    %v2004 = vmax.f32 %v1945, 0.0
    %v2005 = vmax.f32 %v1947, 0.0
    %v2006 = vmax.f32 %v1988, 0.0
    %v2007 = vmax.f32 %v1990, 0.0
    %v2008 = vpack.c.bf16 %v2000, %v1992
    %v2009 = vpack.c.bf16 %v2001, %v1993
    %v2010 = vpack.c.bf16 %v2002, %v1994
    %v2011 = vpack.c.bf16 %v2003, %v1995
    %v2012 = vpack.c.bf16 %v2004, %v1996
    %v2013 = vpack.c.bf16 %v2005, %v1997
    %v2014 = vpack.c.bf16 %v2006, %v1998
    %v2015 = vpack.c.bf16 %v2007, %v1999
    %v2016 = vld [vmem:[#allocation22] sm:$0xf]
    %v2017 = vld [vmem:[#allocation22 + $0x4] sm:$0xf]
    %v2018 = vld [vmem:[#allocation22 + $0x8] sm:$0xf]
    %v2019 = vld [vmem:[#allocation22 + $0xc] sm:$0xf]
    %v2020 = vld [vmem:[#allocation22 + $0x10] sm:$0xf]
    %v2021 = vld [vmem:[#allocation22 + $0x14] sm:$0xf]
    %v2022 = vld [vmem:[#allocation22 + $0x18] sm:$0xf]
    %v2023 = vld [vmem:[#allocation22 + $0x1c] sm:$0xf]
    %v2024 = vld [vmem:[#allocation22 + $0x20] sm:$0xf]
    %v2025 = vld [vmem:[#allocation22 + $0x24] sm:$0xf]
    %v2026 = vld [vmem:[#allocation22 + $0x28] sm:$0xf]
    %v2027 = vld [vmem:[#allocation22 + $0x2c] sm:$0xf]
    %v2028 = vld [vmem:[#allocation22 + $0x30] sm:$0xf]
    %v2029 = vld [vmem:[#allocation22 + $0x34] sm:$0xf]
    %v2030 = vld [vmem:[#allocation22 + $0x38] sm:$0xf]
    %v2031 = vld [vmem:[#allocation22 + $0x3c] sm:$0xf]
    %v2032 = vld [vmem:[#allocation22 + $0x40] sm:$0xf]
    %v2033 = vld [vmem:[#allocation22 + $0x44] sm:$0xf]
    %v2034 = vld [vmem:[#allocation22 + $0x48] sm:$0xf]
    %v2035 = vld [vmem:[#allocation22 + $0x4c] sm:$0xf]
    %v2036 = vld [vmem:[#allocation22 + $0x50] sm:$0xf]
    %v2037 = vld [vmem:[#allocation22 + $0x54] sm:$0xf]
    %v2038 = vld [vmem:[#allocation22 + $0x58] sm:$0xf]
    %v2039 = vld [vmem:[#allocation22 + $0x5c] sm:$0xf]
    %v2040 = vld [vmem:[#allocation22 + $0x60] sm:$0xf]
    %v2041 = vld [vmem:[#allocation22 + $0x64] sm:$0xf]
    %v2042 = vld [vmem:[#allocation22 + $0x68] sm:$0xf]
    %v2043 = vld [vmem:[#allocation22 + $0x6c] sm:$0xf]
    %v2044 = vld [vmem:[#allocation22 + $0x70] sm:$0xf]
    %v2045 = vld [vmem:[#allocation22 + $0x74] sm:$0xf]
    %v2046 = vld [vmem:[#allocation22 + $0x78] sm:$0xf]
    %v2047 = vld [vmem:[#allocation22 + $0x7c] sm:$0xf]
    %v2048 = vld [vmem:[#allocation22 + $0x80] sm:$0xf]
    %v2049 = vld [vmem:[#allocation22 + $0x84] sm:$0xf]
    %v2050 = vld [vmem:[#allocation22 + $0x88] sm:$0xf]
    %v2051 = vld [vmem:[#allocation22 + $0x8c] sm:$0xf]
    %v2052 = vld [vmem:[#allocation22 + $0x90] sm:$0xf]
    %v2053 = vld [vmem:[#allocation22 + $0x94] sm:$0xf]
    %v2054 = vld [vmem:[#allocation22 + $0x98] sm:$0xf]
    %v2055 = vld [vmem:[#allocation22 + $0x9c] sm:$0xf]
    %v2056 = vld [vmem:[#allocation22 + $0xa0] sm:$0xf]
    %v2057 = vld [vmem:[#allocation22 + $0xa4] sm:$0xf]
    %v2058 = vld [vmem:[#allocation22 + $0xa8] sm:$0xf]
    %v2059 = vld [vmem:[#allocation22 + $0xac] sm:$0xf]
    %v2060 = vld [vmem:[#allocation22 + $0xb0] sm:$0xf]
    %v2061 = vld [vmem:[#allocation22 + $0xb4] sm:$0xf]
    %v2062 = vld [vmem:[#allocation22 + $0xb8] sm:$0xf]
    %v2063 = vld [vmem:[#allocation22 + $0xbc] sm:$0xf]
    %v2064 = vld [vmem:[#allocation22 + $0xc0] sm:$0xf]
    %v2065 = vld [vmem:[#allocation22 + $0xc4] sm:$0xf]
    %v2066 = vld [vmem:[#allocation22 + $0xc8] sm:$0xf]
    %v2067 = vld [vmem:[#allocation22 + $0xcc] sm:$0xf]
    %v2068 = vld [vmem:[#allocation22 + $0xd0] sm:$0xf]
    %v2069 = vld [vmem:[#allocation22 + $0xd4] sm:$0xf]
    %v2070 = vld [vmem:[#allocation22 + $0xd8] sm:$0xf]
    %v2071 = vld [vmem:[#allocation22 + $0xdc] sm:$0xf]
    %v2072 = vld [vmem:[#allocation22 + $0xe0] sm:$0xf]
    %v2073 = vld [vmem:[#allocation22 + $0xe4] sm:$0xf]
    %v2074 = vld [vmem:[#allocation22 + $0xe8] sm:$0xf]
    %v2075 = vld [vmem:[#allocation22 + $0xec] sm:$0xf]
    %v2076 = vld [vmem:[#allocation22 + $0xf0] sm:$0xf]
    %v2077 = vld [vmem:[#allocation22 + $0xf4] sm:$0xf]
    %v2078 = vld [vmem:[#allocation22 + $0xf8] sm:$0xf]
    %v2079 = vld [vmem:[#allocation22 + $0xfc] sm:$0xf]
    %v2080 = vld [vmem:[#allocation22 + $0x100] sm:$0xf]
    %v2081 = vld [vmem:[#allocation22 + $0x104] sm:$0xf]
    %v2082 = vld [vmem:[#allocation22 + $0x108] sm:$0xf]
    %v2083 = vld [vmem:[#allocation22 + $0x10c] sm:$0xf]
    %v2084 = vld [vmem:[#allocation22 + $0x110] sm:$0xf]
    %v2085 = vld [vmem:[#allocation22 + $0x114] sm:$0xf]
    %v2086 = vld [vmem:[#allocation22 + $0x118] sm:$0xf]
    %v2087 = vld [vmem:[#allocation22 + $0x11c] sm:$0xf]
    %v2088 = vld [vmem:[#allocation22 + $0x120] sm:$0xf]
    %v2089 = vld [vmem:[#allocation22 + $0x124] sm:$0xf]
    %v2090 = vld [vmem:[#allocation22 + $0x128] sm:$0xf]
    %v2091 = vld [vmem:[#allocation22 + $0x12c] sm:$0xf]
    %v2092 = vld [vmem:[#allocation22 + $0x130] sm:$0xf]
    %v2093 = vld [vmem:[#allocation22 + $0x134] sm:$0xf]
    %v2094 = vld [vmem:[#allocation22 + $0x138] sm:$0xf]
    %v2095 = vld [vmem:[#allocation22 + $0x13c] sm:$0xf]
    %v2096 = vld [vmem:[#allocation22 + $0x140] sm:$0xf]
    %v2097 = vld [vmem:[#allocation22 + $0x144] sm:$0xf]
    %v2098 = vld [vmem:[#allocation22 + $0x148] sm:$0xf]
    %v2099 = vld [vmem:[#allocation22 + $0x14c] sm:$0xf]
    %v2100 = vld [vmem:[#allocation22 + $0x150] sm:$0xf]
    %v2101 = vld [vmem:[#allocation22 + $0x154] sm:$0xf]
    %v2102 = vld [vmem:[#allocation22 + $0x158] sm:$0xf]
    %v2103 = vld [vmem:[#allocation22 + $0x15c] sm:$0xf]
    %v2104 = vld [vmem:[#allocation22 + $0x160] sm:$0xf]
    %v2105 = vld [vmem:[#allocation22 + $0x164] sm:$0xf]
    %v2106 = vld [vmem:[#allocation22 + $0x168] sm:$0xf]
    %v2107 = vld [vmem:[#allocation22 + $0x16c] sm:$0xf]
    %v2108 = vld [vmem:[#allocation22 + $0x170] sm:$0xf]
    %v2109 = vld [vmem:[#allocation22 + $0x174] sm:$0xf]
    %v2110 = vld [vmem:[#allocation22 + $0x178] sm:$0xf]
    %v2111 = vld [vmem:[#allocation22 + $0x17c] sm:$0xf]
    %v2112 = vld [vmem:[#allocation22 + $0x180] sm:$0xf]
    %v2113 = vld [vmem:[#allocation22 + $0x184] sm:$0xf]
    %v2114 = vld [vmem:[#allocation22 + $0x188] sm:$0xf]
    %v2115 = vld [vmem:[#allocation22 + $0x18c] sm:$0xf]
    %v2116 = vld [vmem:[#allocation22 + $0x190] sm:$0xf]
    %v2117 = vld [vmem:[#allocation22 + $0x194] sm:$0xf]
    %v2118 = vld [vmem:[#allocation22 + $0x198] sm:$0xf]
    %v2119 = vld [vmem:[#allocation22 + $0x19c] sm:$0xf]
    %v2120 = vld [vmem:[#allocation22 + $0x1a0] sm:$0xf]
    %v2121 = vld [vmem:[#allocation22 + $0x1a4] sm:$0xf]
    %v2122 = vld [vmem:[#allocation22 + $0x1a8] sm:$0xf]
    %v2123 = vld [vmem:[#allocation22 + $0x1ac] sm:$0xf]
    %v2124 = vld [vmem:[#allocation22 + $0x1b0] sm:$0xf]
    %v2125 = vld [vmem:[#allocation22 + $0x1b4] sm:$0xf]
    %v2126 = vld [vmem:[#allocation22 + $0x1b8] sm:$0xf]
    %v2127 = vld [vmem:[#allocation22 + $0x1bc] sm:$0xf]
    %v2128 = vld [vmem:[#allocation22 + $0x1c0] sm:$0xf]
    %v2129 = vld [vmem:[#allocation22 + $0x1c4] sm:$0xf]
    %v2130 = vld [vmem:[#allocation22 + $0x1c8] sm:$0xf]
    %v2131 = vld [vmem:[#allocation22 + $0x1cc] sm:$0xf]
    %v2132 = vld [vmem:[#allocation22 + $0x1d0] sm:$0xf]
    %v2133 = vld [vmem:[#allocation22 + $0x1d4] sm:$0xf]
    %v2134 = vld [vmem:[#allocation22 + $0x1d8] sm:$0xf]
    %v2135 = vld [vmem:[#allocation22 + $0x1dc] sm:$0xf]
    %v2136 = vld [vmem:[#allocation22 + $0x1e0] sm:$0xf]
    %v2137 = vld [vmem:[#allocation22 + $0x1e4] sm:$0xf]
    %v2138 = vld [vmem:[#allocation22 + $0x1e8] sm:$0xf]
    %v2139 = vld [vmem:[#allocation22 + $0x1ec] sm:$0xf]
    %v2140 = vld [vmem:[#allocation22 + $0x1f0] sm:$0xf]
    %v2141 = vld [vmem:[#allocation22 + $0x1f4] sm:$0xf]
    %v2142 = vld [vmem:[#allocation22 + $0x1f8] sm:$0xf]
    %v2143 = vld [vmem:[#allocation22 + $0x1fc] sm:$0xf]
    %v2144 = vld [vmem:[%s19] sm:$0x1]
    %v2146 = vlaneseq
    %v2147 = vshrl.u32 %v2146, 7
    %v2148 = vsub.s32 0, %v2147
    %v2149 = vrot.slane %v2144, %v2148
    %v2279 = vunpack.c.l.b16 %v2016
    %v2280 = vunpack.c.l.b16 %v2017
    %v2281 = vunpack.c.l.b16 %v2018
    %v2282 = vunpack.c.l.b16 %v2019
    %v2283 = vunpack.c.l.b16 %v2020
    %v2284 = vunpack.c.l.b16 %v2021
    %v2285 = vunpack.c.l.b16 %v2022
    %v2286 = vunpack.c.l.b16 %v2023
    %v2287 = vunpack.c.l.b16 %v2024
    %v2288 = vunpack.c.l.b16 %v2025
    %v2289 = vunpack.c.l.b16 %v2026
    %v2290 = vunpack.c.l.b16 %v2027
    %v2291 = vunpack.c.l.b16 %v2028
    %v2292 = vunpack.c.l.b16 %v2029
    %v2293 = vunpack.c.l.b16 %v2030
    %v2294 = vunpack.c.l.b16 %v2031
    %v2295 = vunpack.c.l.b16 %v2032
    %v2296 = vunpack.c.l.b16 %v2033
    %v2297 = vunpack.c.l.b16 %v2034
    %v2298 = vunpack.c.l.b16 %v2035
    %v2299 = vunpack.c.l.b16 %v2036
    %v2300 = vunpack.c.l.b16 %v2037
    %v2301 = vunpack.c.l.b16 %v2038
    %v2302 = vunpack.c.l.b16 %v2039
    %v2303 = vunpack.c.l.b16 %v2040
    %v2304 = vunpack.c.l.b16 %v2041
    %v2305 = vunpack.c.l.b16 %v2042
    %v2306 = vunpack.c.l.b16 %v2043
    %v2307 = vunpack.c.l.b16 %v2044
    %v2308 = vunpack.c.l.b16 %v2045
    %v2309 = vunpack.c.l.b16 %v2046
    %v2310 = vunpack.c.l.b16 %v2047
    %v2311 = vunpack.c.l.b16 %v2048
    %v2312 = vunpack.c.l.b16 %v2049
    %v2313 = vunpack.c.l.b16 %v2050
    %v2314 = vunpack.c.l.b16 %v2051
    %v2315 = vunpack.c.l.b16 %v2052
    %v2316 = vunpack.c.l.b16 %v2053
    %v2317 = vunpack.c.l.b16 %v2054
    %v2318 = vunpack.c.l.b16 %v2055
    %v2319 = vunpack.c.l.b16 %v2056
    %v2320 = vunpack.c.l.b16 %v2057
    %v2321 = vunpack.c.l.b16 %v2058
    %v2322 = vunpack.c.l.b16 %v2059
    %v2323 = vunpack.c.l.b16 %v2060
    %v2324 = vunpack.c.l.b16 %v2061
    %v2325 = vunpack.c.l.b16 %v2062
    %v2326 = vunpack.c.l.b16 %v2063
    %v2327 = vunpack.c.l.b16 %v2064
    %v2328 = vunpack.c.l.b16 %v2065
    %v2329 = vunpack.c.l.b16 %v2066
    %v2330 = vunpack.c.l.b16 %v2067
    %v2331 = vunpack.c.l.b16 %v2068
    %v2332 = vunpack.c.l.b16 %v2069
    %v2333 = vunpack.c.l.b16 %v2070
    %v2334 = vunpack.c.l.b16 %v2071
    %v2335 = vunpack.c.l.b16 %v2072
    %v2336 = vunpack.c.l.b16 %v2073
    %v2337 = vunpack.c.l.b16 %v2074
    %v2338 = vunpack.c.l.b16 %v2075
    %v2339 = vunpack.c.l.b16 %v2076
    %v2340 = vunpack.c.l.b16 %v2077
    %v2341 = vunpack.c.l.b16 %v2078
    %v2342 = vunpack.c.l.b16 %v2079
    %v2343 = vunpack.c.l.b16 %v2080
    %v2344 = vunpack.c.l.b16 %v2081
    %v2345 = vunpack.c.l.b16 %v2082
    %v2346 = vunpack.c.l.b16 %v2083
    %v2347 = vunpack.c.l.b16 %v2084
    %v2348 = vunpack.c.l.b16 %v2085
    %v2349 = vunpack.c.l.b16 %v2086
    %v2350 = vunpack.c.l.b16 %v2087
    %v2351 = vunpack.c.l.b16 %v2088
    %v2352 = vunpack.c.l.b16 %v2089
    %v2353 = vunpack.c.l.b16 %v2090
    %v2354 = vunpack.c.l.b16 %v2091
    %v2355 = vunpack.c.l.b16 %v2092
    %v2356 = vunpack.c.l.b16 %v2093
    %v2357 = vunpack.c.l.b16 %v2094
    %v2358 = vunpack.c.l.b16 %v2095
    %v2359 = vunpack.c.l.b16 %v2096
    %v2360 = vunpack.c.l.b16 %v2097
    %v2361 = vunpack.c.l.b16 %v2098
    %v2362 = vunpack.c.l.b16 %v2099
    %v2363 = vunpack.c.l.b16 %v2100
    %v2364 = vunpack.c.l.b16 %v2101
    %v2365 = vunpack.c.l.b16 %v2102
    %v2366 = vunpack.c.l.b16 %v2103
    %v2367 = vunpack.c.l.b16 %v2104
    %v2368 = vunpack.c.l.b16 %v2105
    %v2369 = vunpack.c.l.b16 %v2106
    %v2370 = vunpack.c.l.b16 %v2107
    %v2371 = vunpack.c.l.b16 %v2108
    %v2372 = vunpack.c.l.b16 %v2109
    %v2373 = vunpack.c.l.b16 %v2110
    %v2374 = vunpack.c.l.b16 %v2111
    %v2375 = vunpack.c.l.b16 %v2112
    %v2376 = vunpack.c.l.b16 %v2113
    %v2377 = vunpack.c.l.b16 %v2114
    %v2378 = vunpack.c.l.b16 %v2115
    %v2379 = vunpack.c.l.b16 %v2116
    %v2380 = vunpack.c.l.b16 %v2117
    %v2381 = vunpack.c.l.b16 %v2118
    %v2382 = vunpack.c.l.b16 %v2119
    %v2383 = vunpack.c.l.b16 %v2120
    %v2384 = vunpack.c.l.b16 %v2121
    %v2385 = vunpack.c.l.b16 %v2122
    %v2386 = vunpack.c.l.b16 %v2123
    %v2387 = vunpack.c.l.b16 %v2124
    %v2388 = vunpack.c.l.b16 %v2125
    %v2389 = vunpack.c.l.b16 %v2126
    %v2390 = vunpack.c.l.b16 %v2127
    %v2391 = vunpack.c.l.b16 %v2128
    %v2392 = vunpack.c.l.b16 %v2129
    %v2393 = vunpack.c.l.b16 %v2130
    %v2394 = vunpack.c.l.b16 %v2131
    %v2395 = vunpack.c.l.b16 %v2132
    %v2396 = vunpack.c.l.b16 %v2133
    %v2397 = vunpack.c.l.b16 %v2134
    %v2398 = vunpack.c.l.b16 %v2135
    %v2399 = vunpack.c.l.b16 %v2136
    %v2400 = vunpack.c.l.b16 %v2137
    %v2401 = vunpack.c.l.b16 %v2138
    %v2402 = vunpack.c.l.b16 %v2139
    %v2403 = vunpack.c.l.b16 %v2140
    %v2404 = vunpack.c.l.b16 %v2141
    %v2405 = vunpack.c.l.b16 %v2142
    %v2406 = vunpack.c.l.b16 %v2143
    %v2407 = vpack.c.b16 %v2280, %v2279
    %v2408 = vpack.c.b16 %v2282, %v2281
    %v2409 = vpack.c.b16 %v2284, %v2283
    %v2410 = vpack.c.b16 %v2286, %v2285
    %v2411 = vpack.c.b16 %v2288, %v2287
    %v2412 = vpack.c.b16 %v2290, %v2289
    %v2413 = vpack.c.b16 %v2292, %v2291
    %v2414 = vpack.c.b16 %v2294, %v2293
    %v2415 = vpack.c.b16 %v2296, %v2295
    %v2416 = vpack.c.b16 %v2298, %v2297
    %v2417 = vpack.c.b16 %v2300, %v2299
    %v2418 = vpack.c.b16 %v2302, %v2301
    %v2419 = vpack.c.b16 %v2304, %v2303
    %v2420 = vpack.c.b16 %v2306, %v2305
    %v2421 = vpack.c.b16 %v2308, %v2307
    %v2422 = vpack.c.b16 %v2310, %v2309
    %v2423 = vpack.c.b16 %v2312, %v2311
    %v2424 = vpack.c.b16 %v2314, %v2313
    %v2425 = vpack.c.b16 %v2316, %v2315
    %v2426 = vpack.c.b16 %v2318, %v2317
    %v2427 = vpack.c.b16 %v2320, %v2319
    %v2428 = vpack.c.b16 %v2322, %v2321
    %v2429 = vpack.c.b16 %v2324, %v2323
    %v2430 = vpack.c.b16 %v2326, %v2325
    %v2431 = vpack.c.b16 %v2328, %v2327
    %v2432 = vpack.c.b16 %v2330, %v2329
    %v2433 = vpack.c.b16 %v2332, %v2331
    %v2434 = vpack.c.b16 %v2334, %v2333
    %v2435 = vpack.c.b16 %v2336, %v2335
    %v2436 = vpack.c.b16 %v2338, %v2337
    %v2437 = vpack.c.b16 %v2340, %v2339
    %v2438 = vpack.c.b16 %v2342, %v2341
    %v2439 = vpack.c.b16 %v2344, %v2343
    %v2440 = vpack.c.b16 %v2346, %v2345
    %v2441 = vpack.c.b16 %v2348, %v2347
    %v2442 = vpack.c.b16 %v2350, %v2349
    %v2443 = vpack.c.b16 %v2352, %v2351
    %v2444 = vpack.c.b16 %v2354, %v2353
    %v2445 = vpack.c.b16 %v2356, %v2355
    %v2446 = vpack.c.b16 %v2358, %v2357
    %v2447 = vpack.c.b16 %v2360, %v2359
    %v2448 = vpack.c.b16 %v2362, %v2361
    %v2449 = vpack.c.b16 %v2364, %v2363
    %v2450 = vpack.c.b16 %v2366, %v2365
    %v2451 = vpack.c.b16 %v2368, %v2367
    %v2452 = vpack.c.b16 %v2370, %v2369
    %v2453 = vpack.c.b16 %v2372, %v2371
    %v2454 = vpack.c.b16 %v2374, %v2373
    %v2455 = vpack.c.b16 %v2376, %v2375
    %v2456 = vpack.c.b16 %v2378, %v2377
    %v2457 = vpack.c.b16 %v2380, %v2379
    %v2458 = vpack.c.b16 %v2382, %v2381
    %v2459 = vpack.c.b16 %v2384, %v2383
    %v2460 = vpack.c.b16 %v2386, %v2385
    %v2461 = vpack.c.b16 %v2388, %v2387
    %v2462 = vpack.c.b16 %v2390, %v2389
    %v2463 = vpack.c.b16 %v2392, %v2391
    %v2464 = vpack.c.b16 %v2394, %v2393
    %v2465 = vpack.c.b16 %v2396, %v2395
    %v2466 = vpack.c.b16 %v2398, %v2397
    %v2467 = vpack.c.b16 %v2400, %v2399
    %v2468 = vpack.c.b16 %v2402, %v2401
    %v2469 = vpack.c.b16 %v2404, %v2403
    %v2470 = vpack.c.b16 %v2406, %v2405
    %2535 = vmatprep.subr.bf16.mxu0 0
    %2536 = vmatpush1.bf16.msra.mxu0 %v2407
    %2537 = vmatprep.subr.bf16.mxu0 0
    %2538 = vmatpush1.bf16.msra.mxu0 %v2408
    %2539 = vmatprep.subr.bf16.mxu0 0
    %2540 = vmatpush1.bf16.msra.mxu0 %v2409
    %2541 = vmatprep.subr.bf16.mxu0 0
    %2542 = vmatpush1.bf16.msra.mxu0 %v2410
    %2543 = vmatprep.subr.bf16.mxu0 0
    %2544 = vmatpush1.bf16.msra.mxu0 %v2411
    %2545 = vmatprep.subr.bf16.mxu0 0
    %2546 = vmatpush1.bf16.msra.mxu0 %v2412
    %2547 = vmatprep.subr.bf16.mxu0 0
    %2548 = vmatpush1.bf16.msra.mxu0 %v2413
    %2549 = vmatprep.subr.bf16.mxu0 0
    %2550 = vmatpush1.bf16.msra.mxu0 %v2414
    %2551 = vmatprep.subr.bf16.mxu0 0
    %2552 = vmatpush1.bf16.msra.mxu0 %v2415
    %2553 = vmatprep.subr.bf16.mxu0 0
    %2554 = vmatpush1.bf16.msra.mxu0 %v2416
    %2555 = vmatprep.subr.bf16.mxu0 0
    %2556 = vmatpush1.bf16.msra.mxu0 %v2417
    %2557 = vmatprep.subr.bf16.mxu0 0
    %2558 = vmatpush1.bf16.msra.mxu0 %v2418
    %2559 = vmatprep.subr.bf16.mxu0 0
    %2560 = vmatpush1.bf16.msra.mxu0 %v2419
    %2561 = vmatprep.subr.bf16.mxu0 0
    %2562 = vmatpush1.bf16.msra.mxu0 %v2420
    %2563 = vmatprep.subr.bf16.mxu0 0
    %2564 = vmatpush1.bf16.msra.mxu0 %v2421
    %2565 = vmatprep.subr.bf16.mxu0 0
    %2566 = vmatpush1.bf16.msra.mxu0 %v2422
    %2567 = vmatprep.mubr.bf16.mxu0 %v2009
    %2568 = vmatmul.mubr.bf16.gmra.mrb[0].mxu0 %v2008
    %v2569 = vpop.f32.mrb[0].mxu0
    %v2570 = vadd.f32 %v2149, %v2569
    %v2571 = vpop.f32.mrb[0].mxu0
    %v2572 = vpop.f32.mrb[0].mxu0
    %v2573 = vadd.f32 %v2149, %v2572
    %v2574 = vpop.f32.mrb[0].mxu0
    %2575 = vdwg.mxu0
    %2576 = vmatprep.subr.bf16.mxu0 0
    %2577 = vmatpush1.bf16.msra.mxu0 %v2423
    %2578 = vmatprep.subr.bf16.mxu0 0
    %2579 = vmatpush1.bf16.msra.mxu0 %v2424
    %2580 = vmatprep.subr.bf16.mxu0 0
    %2581 = vmatpush1.bf16.msra.mxu0 %v2425
    %2582 = vmatprep.subr.bf16.mxu0 0
    %2583 = vmatpush1.bf16.msra.mxu0 %v2426
    %2584 = vmatprep.subr.bf16.mxu0 0
    %2585 = vmatpush1.bf16.msra.mxu0 %v2427
    %2586 = vmatprep.subr.bf16.mxu0 0
    %2587 = vmatpush1.bf16.msra.mxu0 %v2428
    %2588 = vmatprep.subr.bf16.mxu0 0
    %2589 = vmatpush1.bf16.msra.mxu0 %v2429
    %2590 = vmatprep.subr.bf16.mxu0 0
    %2591 = vmatpush1.bf16.msra.mxu0 %v2430
    %2592 = vmatprep.subr.bf16.mxu0 0
    %2593 = vmatpush1.bf16.msra.mxu0 %v2431
    %2594 = vmatprep.subr.bf16.mxu0 0
    %2595 = vmatpush1.bf16.msra.mxu0 %v2432
    %2596 = vmatprep.subr.bf16.mxu0 0
    %2597 = vmatpush1.bf16.msra.mxu0 %v2433
    %2598 = vmatprep.subr.bf16.mxu0 0
    %2599 = vmatpush1.bf16.msra.mxu0 %v2434
    %2600 = vmatprep.subr.bf16.mxu0 0
    %2601 = vmatpush1.bf16.msra.mxu0 %v2435
    %2602 = vmatprep.subr.bf16.mxu0 0
    %2603 = vmatpush1.bf16.msra.mxu0 %v2436
    %2604 = vmatprep.subr.bf16.mxu0 0
    %2605 = vmatpush1.bf16.msra.mxu0 %v2437
    %2606 = vmatprep.subr.bf16.mxu0 0
    %2607 = vmatpush1.bf16.msra.mxu0 %v2438
    %2608 = vmatprep.mubr.bf16.mxu0 %v2011
    %2609 = vmatmul.mubr.bf16.gmra.mrb[0].mxu0 %v2010
    %v2610 = vpop.f32.mrb[0].mxu0
    %v2611 = vadd.f32 %v2570, %v2610
    %v2612 = vpop.f32.mrb[0].mxu0
    %v2613 = vpop.f32.mrb[0].mxu0
    %v2614 = vadd.f32 %v2573, %v2613
    %v2615 = vpop.f32.mrb[0].mxu0
    %2616 = vdwg.mxu0
    %2617 = vmatprep.subr.bf16.mxu0 0
    %2618 = vmatpush1.bf16.msra.mxu0 %v2439
    %2619 = vmatprep.subr.bf16.mxu0 0
    %2620 = vmatpush1.bf16.msra.mxu0 %v2440
    %2621 = vmatprep.subr.bf16.mxu0 0
    %2622 = vmatpush1.bf16.msra.mxu0 %v2441
    %2623 = vmatprep.subr.bf16.mxu0 0
    %2624 = vmatpush1.bf16.msra.mxu0 %v2442
    %2625 = vmatprep.subr.bf16.mxu0 0
    %2626 = vmatpush1.bf16.msra.mxu0 %v2443
    %2627 = vmatprep.subr.bf16.mxu0 0
    %2628 = vmatpush1.bf16.msra.mxu0 %v2444
    %2629 = vmatprep.subr.bf16.mxu0 0
    %2630 = vmatpush1.bf16.msra.mxu0 %v2445
    %2631 = vmatprep.subr.bf16.mxu0 0
    %2632 = vmatpush1.bf16.msra.mxu0 %v2446
    %2633 = vmatprep.subr.bf16.mxu0 0
    %2634 = vmatpush1.bf16.msra.mxu0 %v2447
    %2635 = vmatprep.subr.bf16.mxu0 0
    %2636 = vmatpush1.bf16.msra.mxu0 %v2448
    %2637 = vmatprep.subr.bf16.mxu0 0
    %2638 = vmatpush1.bf16.msra.mxu0 %v2449
    %2639 = vmatprep.subr.bf16.mxu0 0
    %2640 = vmatpush1.bf16.msra.mxu0 %v2450
    %2641 = vmatprep.subr.bf16.mxu0 0
    %2642 = vmatpush1.bf16.msra.mxu0 %v2451
    %2643 = vmatprep.subr.bf16.mxu0 0
    %2644 = vmatpush1.bf16.msra.mxu0 %v2452
    %2645 = vmatprep.subr.bf16.mxu0 0
    %2646 = vmatpush1.bf16.msra.mxu0 %v2453
    %2647 = vmatprep.subr.bf16.mxu0 0
    %2648 = vmatpush1.bf16.msra.mxu0 %v2454
    %2649 = vmatprep.mubr.bf16.mxu0 %v2013
    %2650 = vmatmul.mubr.bf16.gmra.mrb[0].mxu0 %v2012
    %v2651 = vpop.f32.mrb[0].mxu0
    %v2652 = vadd.f32 %v2611, %v2651
    %v2653 = vpop.f32.mrb[0].mxu0
    %v2654 = vpop.f32.mrb[0].mxu0
    %v2655 = vadd.f32 %v2614, %v2654
    %v2656 = vpop.f32.mrb[0].mxu0
    %2657 = vdwg.mxu0
    %2658 = vmatprep.subr.bf16.mxu0 0
    %2659 = vmatpush1.bf16.msra.mxu0 %v2455
    %2660 = vmatprep.subr.bf16.mxu0 0
    %2661 = vmatpush1.bf16.msra.mxu0 %v2456
    %2662 = vmatprep.subr.bf16.mxu0 0
    %2663 = vmatpush1.bf16.msra.mxu0 %v2457
    %2664 = vmatprep.subr.bf16.mxu0 0
    %2665 = vmatpush1.bf16.msra.mxu0 %v2458
    %2666 = vmatprep.subr.bf16.mxu0 0
    %2667 = vmatpush1.bf16.msra.mxu0 %v2459
    %2668 = vmatprep.subr.bf16.mxu0 0
    %2669 = vmatpush1.bf16.msra.mxu0 %v2460
    %2670 = vmatprep.subr.bf16.mxu0 0
    %2671 = vmatpush1.bf16.msra.mxu0 %v2461
    %2672 = vmatprep.subr.bf16.mxu0 0
    %2673 = vmatpush1.bf16.msra.mxu0 %v2462
    %2674 = vmatprep.subr.bf16.mxu0 0
    %2675 = vmatpush1.bf16.msra.mxu0 %v2463
    %2676 = vmatprep.subr.bf16.mxu0 0
    %2677 = vmatpush1.bf16.msra.mxu0 %v2464
    %2678 = vmatprep.subr.bf16.mxu0 0
    %2679 = vmatpush1.bf16.msra.mxu0 %v2465
    %2680 = vmatprep.subr.bf16.mxu0 0
    %2681 = vmatpush1.bf16.msra.mxu0 %v2466
    %2682 = vmatprep.subr.bf16.mxu0 0
    %2683 = vmatpush1.bf16.msra.mxu0 %v2467
    %2684 = vmatprep.subr.bf16.mxu0 0
    %2685 = vmatpush1.bf16.msra.mxu0 %v2468
    %2686 = vmatprep.subr.bf16.mxu0 0
    %2687 = vmatpush1.bf16.msra.mxu0 %v2469
    %2688 = vmatprep.subr.bf16.mxu0 0
    %2689 = vmatpush1.bf16.msra.mxu0 %v2470
    %2690 = vmatprep.mubr.bf16.mxu0 %v2015
    %2691 = vmatmul.mubr.bf16.gmra.mrb[0].mxu0 %v2014
    %v2692 = vpop.f32.mrb[0].mxu0
    %v2693 = vadd.f32 %v2652, %v2692
    %v2694 = vpop.f32.mrb[0].mxu0
    %v2695 = vpop.f32.mrb[0].mxu0
    %v2696 = vadd.f32 %v2655, %v2695
    %v2697 = vpop.f32.mrb[0].mxu0
    %2698 = vdwg.mxu0
    %v2699 = vadd.f32 %v1391, %v2693
    %v2700 = vadd.f32 %v1392, %v2696
    %2701 = vadd.xlane.f32.xlu0 %v2699
    %v2702 = vpop.xlane.xlu0 %2701
    %2703 = vadd.xlane.f32.xlu0 %v2700
    %v2704 = vpop.xlane.xlu0 %2703
    %v2705 = vmul.f32 %v2702, 0.03125
    %v2706 = vmul.f32 %v2704, 0.03125
    %v2707 = vsub.f32 %v2699, %v2705
    %v2708 = vsub.f32 %v2700, %v2706
    %v2709 = vld [vmem:[%s22] sm:$0x1]
    %v2711 = vlaneseq
    %v2712 = vshrl.u32 %v2711, 7
    %v2713 = vsub.s32 0, %v2712
    %v2714 = vrot.slane %v2709, %v2713
    %v2716 = vmul.f32 %v2707, %v2714
    %v2717 = vmul.f32 %v2708, %v2714
    %v2718 = vmul.f32 %v2716, %v2716
    %v2719 = vmul.f32 %v2717, %v2717
    %2720 = vadd.xlane.f32.xlu0 %v2718
    %v2721 = vpop.xlane.xlu0 %2720
    %2722 = vadd.xlane.f32.xlu0 %v2719
    %v2723 = vpop.xlane.xlu0 %2722
    %v2724 = vmul.f32 %v2721, 0.03125
    %v2725 = vmul.f32 %v2723, 0.03125
    %v2726 = vadd.f32 %v2724, 1e-05
    %v2727 = vadd.f32 %v2725, 1e-05
    %v2728 = vrsqrt.pop %v2726
    %v2729 = vrsqrt.pop %v2727
    %v2730 = vmul.f32 %v2716, %v2728
    %v2731 = vmul.f32 %v2717, %v2729
    %v2732 = vld [vmem:[%s20] sm:$0x1]
    %v2734 = vlaneseq
    %v2735 = vshrl.u32 %v2734, 7
    %v2736 = vsub.s32 0, %v2735
    %v2737 = vrot.slane %v2732, %v2736
    %v2739 = vmul.f32 %v2730, %v2737
    %v2740 = vmul.f32 %v2731, %v2737
    %v2741 = vld [vmem:[%s21] sm:$0x1]
    %v2743 = vlaneseq
    %v2744 = vshrl.u32 %v2743, 7
    %v2745 = vsub.s32 0, %v2744
    %v2746 = vrot.slane %v2741, %v2745
    %v2748 = vadd.f32 %v2739, %v2746
    %v2749 = vadd.f32 %v2740, %v2746
    %2750 = vst [vmem:[#allocation23] sm:$0xff] %v2748
    %2751 = vst [vmem:[#allocation23 + $0x8] sm:$0xff] %v2749
    %2752 = vst [vmem:[#allocation24] sm:$0xf] 0
    %2753 = vst [vmem:[#allocation24 + $0x4] sm:$0xf] 0
    %vm2754 = vcmask 125952
    %2755 = vst.msk [vmem:[#allocation24] sm:$0xf] %vm2754, %v741
    %2756 = vst.msk [vmem:[#allocation24 + $0x4] sm:$0xf] %vm2754, %v742
    // Predicated region
    $region146: #{tpu_custom_call.1} parent=1 // pred_check
      _
    $region147: #{tpu_custom_call.1} parent=1 // pred_check_branch
      %2758 = sbr.rel (0) target = $region149
    $region148: #{tpu_custom_call.1} parent=1 // pred_region
      %s2760 = ssub.s32 256, 256
      %2761 = vsyncadd [#allocation4], %s2760
      %s2762 = sshll.u32 [#allocation23], 4
      %s2763 = int_to_ptr.vmem [resolvable:$true] %s2762
      %2768 = dma.vmem_to_hbm [thread:$0]  %s2763, 256, %s23, [#allocation4], 128, 128, 8
    $region149: #{tpu_custom_call.1} parent=1 // pred_fallthru
      _
    // Predicated region
    $region150: #{tpu_custom_call.1} parent=1 // pred_check
      _
    $region151: #{tpu_custom_call.1} parent=1 // pred_check_branch
      %2770 = sbr.rel (0) target = $region153
    $region152: #{tpu_custom_call.1} parent=1 // pred_region
      %s2772 = ssub.s32 128, 128
      %2773 = vsyncadd [#allocation25], %s2772
      %s2774 = sshll.u32 [#allocation24], 4
      %s2775 = int_to_ptr.vmem [resolvable:$true] %s2774
      %2780 = dma.vmem_to_hbm [thread:$0]  %s2775, 128, %s24, [#allocation25], 64, 64, 4
    $region153: #{tpu_custom_call.1} parent=1 // pred_fallthru
      _
    // Predicated region
    $region154: #{tpu_custom_call.1} parent=1 // pred_check
      _
    $region155: #{tpu_custom_call.1} parent=1 // pred_check_branch
      %2782 = sbr.rel (0) target = $region157
    $region156: #{tpu_custom_call.1} parent=1 // pred_region
      %2783 = dma.done [#allocation4], 256
    $region157: #{tpu_custom_call.1} parent=1 // pred_fallthru
      _
    // Predicated region
    $region158: #{tpu_custom_call.1} parent=1 // pred_check
      _
    $region159: #{tpu_custom_call.1} parent=1 // pred_check_branch
      %2785 = sbr.rel (0) target = $region161
    $region160: #{tpu_custom_call.1} parent=1 // pred_region
      %2786 = dma.done [#allocation25], 128
    $region161: #{tpu_custom_call.1} parent=1 // pred_fallthru
      _
    %2787 = vsyncpa [#allocation3], 1
    %2788 = vsyncpa [#allocation6], 1
    %2789 = vsyncpa [#allocation9], 1
    %2790 = vsyncpa [#allocation12], 1
    %2791 = vsyncpa [#allocation15], 1
    %2792 = vsyncpa [#allocation18], 1
    %2793 = vsyncpa [#allocation21], 1
    %2794 = vsyncpa [#allocation4], 1
    %2795 = vsyncpa [#allocation25], 1

</llo_original>
